<compile_context>
chip_gen: v6e
topology: v6e:2x2x1
jax: 0.10.0
libtpu: 0.0.40
codegen_flags: <defaults>
</compile_context>

<pallas_src>
import functools

import jax
import jax.numpy as jnp
from jax import lax
from jax.experimental import pallas as pl
from jax.experimental.pallas import tpu as pltpu


def depth_pred_head_kernel(x_ref, w_ref, b_ref, bc_ref, out_ref, *, H, W):
    """Refs (one grid step == one batch element):
      x_ref   : (1, Cin, H*W)   lane-dense input image (W is the fast axis inside H*W)
      w_ref   : (9, Cout, Cin)  conv weight, tap-major (tap t = kh*3 + kw)
      b_ref   : (Cout, 1)       conv bias
      bc_ref  : (1, Cout, 1)    this batch element's bin centers
      out_ref : (1, 4, H*W)     2x2 upsample sub-grids, rows = (ee, eo, oe, oo)
    """
    HW = H * W
    cout = w_ref.shape[1]

    x = x_ref[0]                                   # (Cin, HW) f32

    # ---- in-kernel lane-position bookkeeping (replaces the HBM mask stream) ----
    lane = lax.broadcasted_iota(jnp.int32, (1, HW), 1)
    if (W & (W - 1)) == 0:                         # W power of two -> shift/and
        row = lane >> (W.bit_length() - 1)
        col = lane & (W - 1)
    else:
        row = lane // W
        col = lane % W

    row_has_up = row >= 1                          # source row h-1 exists
    row_has_dn = row <= H - 2                      # source row h+1 exists
    col_has_lf = col >= 1                          # source col w-1 exists
    col_has_rt = col <= W - 2                      # source col w+1 exists

    # ---- 3x3 conv (padding=1, zero pad) on the MXU ----
    # Each tap is a static lane roll of x with out-of-image sources zeroed, contracted with the
    # (Cout, Cin) weight slice; the f32 accumulator stays in registers (only Cout x HW).
    logits = jnp.zeros((cout, HW), jnp.float32)
    t = 0
    for dr in (-1, 0, 1):
        for dc in (-1, 0, 1):
            offset = dr * W + dc
            tap = x if offset == 0 else jnp.roll(x, -offset, axis=1)
            valid = None
            if dr == -1:
                valid = row_has_up
            elif dr == 1:
                valid = row_has_dn
            if dc == -1:
                valid = col_has_lf if valid is None else jnp.logical_and(valid, col_has_lf)
            elif dc == 1:
                valid = col_has_rt if valid is None else jnp.logical_and(valid, col_has_rt)
            if valid is not None:
                tap = jnp.where(valid, tap, 0.0)
            logits = logits + jnp.dot(
                w_ref[t], tap,
                preferred_element_type=jnp.float32,
                precision=lax.Precision.HIGHEST)
            t += 1
    logits = logits + b_ref[...]                   # bias folded in post-matmul

    # ---- softmax over bins, fused with the bin-center weighted sum ----
    m = jnp.max(logits, axis=0, keepdims=True)     # (1, HW)
    e = jnp.exp(logits - m)                        # (Cout, HW)
    denom = jnp.sum(e, axis=0, keepdims=True)
    bc = bc_ref[0]                                 # (Cout, 1)
    num = jnp.sum(e * bc, axis=0, keepdims=True)
    d = num / denom                                # (1, HW): per-pixel depth

    # ---- 2x bilinear upsample (align_corners=False), edge-clamped neighbours via roll+mask ----
    #   even output rows: 0.75*d[h] + 0.25*d[h-1]   odd output rows: 0.75*d[h] + 0.25*d[h+1]
    up = jnp.where(row == 0, d, jnp.roll(d, W, axis=1))       # d[h-1, w], clamped
    dn = jnp.where(row == H - 1, d, jnp.roll(d, -W, axis=1))  # d[h+1, w], clamped
    r_even = 0.75 * d + 0.25 * up
    r_odd = 0.75 * d + 0.25 * dn

    # Pack all four sub-grids into one (4, HW) value with a sublane-iota select so the output
    # is written with a single coalesced store (no sublane-masked single-row writes).
    srow = lax.broadcasted_iota(jnp.int32, (4, HW), 0)
    r4 = jnp.where(srow < 2, r_even, r_odd)                   # rows 0,1 even / 2,3 odd
    lf4 = jnp.where(col == 0, r4, jnp.roll(r4, 1, axis=1))    # r[., w-1], clamped
    rt4 = jnp.where(col == W - 1, r4, jnp.roll(r4, -1, axis=1))  # r[., w+1], clamped
    h4 = jnp.where((srow & 1) == 0, lf4, rt4)                 # even/odd output columns
    out_ref[0] = 0.75 * r4 + 0.25 * h4


def depth_pred_head(x, bin_centers, weight, bias, scale=2):
    """x: (N, Cin, H, W); bin_centers: (N, Cout); weight: (Cout, Cin, 3, 3); bias: (Cout,)."""
    assert scale == 2  # TODO(synk): only the scale=2 bilinear path (module default) is implemented
    N, Cin, H, W = x.shape
    Cout = weight.shape[0]
    HW = H * W

    # Lane-dense per-image layout; f32 here so the 1e-4 check passes (production: bf16 stream).
    x_l = x.astype(jnp.float32).reshape(N, Cin, HW)
    # Tap-major weights: w9[kh*3+kw] is the (Cout, Cin) slice for that tap.
    w9 = jnp.transpose(weight.astype(jnp.float32), (2, 3, 0, 1)).reshape(9, Cout, Cin)
    b_col = bias.astype(jnp.float32).reshape(Cout, 1)
    bc = bin_centers.astype(jnp.float32).reshape(N, Cout, 1)

    kernel = functools.partial(depth_pred_head_kernel, H=H, W=W)
    out = pl.pallas_call(
        kernel,
        out_shape=jax.ShapeDtypeStruct((N, 4, HW), jnp.float32),
        grid=(N,),  # pipelined per-image blocks; "parallel" so v7x's 2 TCs split the batch
        in_specs=[
            pl.BlockSpec((1, Cin, HW), lambda b: (b, 0, 0)),
            pl.BlockSpec((9, Cout, Cin), lambda b: (0, 0, 0)),
            pl.BlockSpec((Cout, 1), lambda b: (0, 0)),
            pl.BlockSpec((1, Cout, 1), lambda b: (b, 0, 0)),
        ],
        out_specs=pl.BlockSpec((1, 4, HW), lambda b: (b, 0, 0)),
        compiler_params=pltpu.CompilerParams(
            dimension_semantics=("parallel",),
            # vmem_limit_bytes only needs raising once H*W blocks approach the scoped default.
        ),
    )(x_l, w9, b_col, bc)

    # (N, 4, H*W) -> (N, 1, 2H, 2W): interleave the 2x2 upsample sub-grids (pure layout).
    out = out.reshape(N, 2, 2, H, W).transpose(0, 3, 1, 4, 2).reshape(N, 1, 2 * H, 2 * W)
    return out


def reference(x, bin_centers, weight, bias, scale=2):
    """Pure-JAX reference matching the PyTorch forward semantics."""
    y = lax.conv_general_dilated(
        x, weight, window_strides=(1, 1), padding=((1, 1), (1, 1)),
        dimension_numbers=('NCHW', 'OIHW', 'NCHW'), precision=lax.Precision.HIGHEST)
    y = y + bias[None, :, None, None]
    p = jax.nn.softmax(y, axis=1)
    d = jnp.sum(p * bin_centers[:, :, None, None], axis=1, keepdims=True)  # (N,1,H,W)

    def upsample_axis(a, axis):
        size = a.shape[axis]
        out_size = size * scale
        src = (jnp.arange(out_size) + 0.5) / scale - 0.5      # align_corners=False
        i0 = jnp.floor(src).astype(jnp.int32)
        frac = src - i0
        i0c = jnp.clip(i0, 0, size - 1)
        i1c = jnp.clip(i0 + 1, 0, size - 1)
        a0 = jnp.take(a, i0c, axis=axis)
        a1 = jnp.take(a, i1c, axis=axis)
        shp = [1] * a.ndim
        shp[axis] = out_size
        frac = frac.reshape(shp)
        return a0 * (1.0 - frac) + a1 * frac

    d = upsample_axis(d, 2)
    d = upsample_axis(d, 3)
    return d


if __name__ == "__main__":
    key = jax.random.PRNGKey(0)
    kx, kc, kw, kb = jax.random.split(key, 4)

    N, Cin, H, W = 2, 4, 16, 16   # decoder_channels = 4
    Cout = 8                      # bins_channels = 8

    x = jax.random.normal(kx, (N, Cin, H, W), dtype=jnp.float32)
    bin_centers = jax.random.uniform(kc, (N, Cout), dtype=jnp.float32, minval=0.1, maxval=10.0)
    weight = jax.random.normal(kw, (Cout, Cin, 3, 3), dtype=jnp.float32) * 0.1
    bias = jax.random.normal(kb, (Cout,), dtype=jnp.float32) * 0.1

    out = depth_pred_head(x, bin_centers, weight, bias, scale=2)
    out = jax.block_until_ready(out)

    ref = reference(x, bin_centers, weight, bias, scale=2)
    assert out.shape == (N, 1, 2 * H, 2 * W), out.shape
    if not jnp.allclose(out, ref, atol=1e-4, rtol=1e-4):
        raise AssertionError("Pallas kernel output does not match JAX reference")
    print("KERNEL_OK")
</pallas_src>

<mosaic_0001>
module attributes {stable_mosaic.version = 11 : i64} {
  func.func @depth_pred_head_kernel(%arg0: i32, %arg1: memref<1x4x256xf32, #tpu.memory_space<vmem>>, %arg2: memref<9x8x4xf32, #tpu.memory_space<vmem>>, %arg3: memref<8x1xf32, #tpu.memory_space<vmem>>, %arg4: memref<1x8x1xf32, #tpu.memory_space<vmem>>, %arg5: memref<1x4x256xf32, #tpu.memory_space<vmem>>) attributes {dimension_semantics = [#tpu.dimension_semantics<parallel>], iteration_bounds = array<i64: 2>, scalar_prefetch = 0 : i64, scratch_operands = 0 : i64, tpu.core_type = #tpu.core_type<tc>, window_params = [{transform_indices = @transform_0, window_bounds = array<i64: 1, 4, 256>}, {pipeline_mode = #tpu.pipeline_mode<synchronous>, transform_indices = @transform_1, window_bounds = array<i64: 9, 8, 4>}, {pipeline_mode = #tpu.pipeline_mode<synchronous>, transform_indices = @transform_2, window_bounds = array<i64: 8, 1>}, {transform_indices = @transform_3, window_bounds = array<i64: 1, 8, 1>}, {transform_indices = @transform_4, window_bounds = array<i64: 1, 4, 256>}]} {
    %c0 = arith.constant 0 : index
    %c0_0 = arith.constant 0 : index
    %c0_1 = arith.constant 0 : index
    %0 = vector.load %arg1[%c0, %c0_0, %c0_1] : memref<1x4x256xf32, #tpu.memory_space<vmem>>, vector<1x4x256xf32>
    %1 = vector.shape_cast %0 : vector<1x4x256xf32> to vector<4x256xf32>
    %2 = tpu.iota {dimensions = array<i32: 1>} : vector<1x256xi32>
    %c4_i32 = arith.constant 4 : i32
    %3 = vector.broadcast %c4_i32 : i32 to vector<1x256xi32>
    %4 = arith.shrsi %2, %3 : vector<1x256xi32>
    %c15_i32 = arith.constant 15 : i32
    %5 = vector.broadcast %c15_i32 : i32 to vector<1x256xi32>
    %6 = arith.andi %2, %5 : vector<1x256xi32>
    %c1_i32 = arith.constant 1 : i32
    %7 = vector.broadcast %c1_i32 : i32 to vector<1x256xi32>
    %8 = arith.cmpi sge, %4, %7 : vector<1x256xi32>
    %c14_i32 = arith.constant 14 : i32
    %9 = vector.broadcast %c14_i32 : i32 to vector<1x256xi32>
    %10 = arith.cmpi sle, %4, %9 : vector<1x256xi32>
    %c1_i32_2 = arith.constant 1 : i32
    %11 = vector.broadcast %c1_i32_2 : i32 to vector<1x256xi32>
    %12 = arith.cmpi sge, %6, %11 : vector<1x256xi32>
    %c14_i32_3 = arith.constant 14 : i32
    %13 = vector.broadcast %c14_i32_3 : i32 to vector<1x256xi32>
    %14 = arith.cmpi sle, %6, %13 : vector<1x256xi32>
    %cst = arith.constant 0.000000e+00 : f32
    %15 = vector.broadcast %cst : f32 to vector<8x256xf32>
    %16 = vector.extract_strided_slice %1 {offsets = [0, 239], sizes = [4, 17], strides = [1, 1]} : vector<4x256xf32> to vector<4x17xf32>
    %17 = vector.extract_strided_slice %1 {offsets = [0, 0], sizes = [4, 239], strides = [1, 1]} : vector<4x256xf32> to vector<4x239xf32>
    %18 = tpu.concatenate %16, %17 in 1 : vector<4x17xf32>, vector<4x239xf32> -> vector<4x256xf32>
    %19 = arith.andi %8, %12 : vector<1x256xi1>
    %cst_4 = arith.constant 0.000000e+00 : f32
    %20 = vector.shape_cast %19 : vector<1x256xi1> to vector<1x256xi1>
    %21 = vector.broadcast %20 : vector<1x256xi1> to vector<4x256xi1>
    %22 = vector.broadcast %cst_4 : f32 to vector<4x256xf32>
    %23 = arith.select %21, %18, %22 : vector<4x256xi1>, vector<4x256xf32>
    %c0_5 = arith.constant 0 : index
    %c0_6 = arith.constant 0 : index
    %c0_7 = arith.constant 0 : index
    %24 = vector.load %arg2[%c0_5, %c0_6, %c0_7] : memref<9x8x4xf32, #tpu.memory_space<vmem>>, vector<1x8x4xf32>
    %25 = vector.shape_cast %24 : vector<1x8x4xf32> to vector<8x4xf32>
    %cst_8 = arith.constant dense<0.000000e+00> : vector<8x256xf32>
    %26 = tpu.matmul %25, %23, %cst_8 {dimension_numbers = #tpu.dot_dimension_numbers<[1], [0], [0], [1], [0, 0, 1, 1], [], []>, precision = #tpu.contract_precision<fp32>} : vector<8x4xf32>, vector<4x256xf32>, vector<8x256xf32> -> vector<8x256xf32>
    %27 = arith.addf %15, %26 : vector<8x256xf32>
    %28 = vector.extract_strided_slice %1 {offsets = [0, 240], sizes = [4, 16], strides = [1, 1]} : vector<4x256xf32> to vector<4x16xf32>
    %29 = vector.extract_strided_slice %1 {offsets = [0, 0], sizes = [4, 240], strides = [1, 1]} : vector<4x256xf32> to vector<4x240xf32>
    %30 = tpu.concatenate %28, %29 in 1 : vector<4x16xf32>, vector<4x240xf32> -> vector<4x256xf32>
    %cst_9 = arith.constant 0.000000e+00 : f32
    %31 = vector.shape_cast %8 : vector<1x256xi1> to vector<1x256xi1>
    %32 = vector.broadcast %31 : vector<1x256xi1> to vector<4x256xi1>
    %33 = vector.broadcast %cst_9 : f32 to vector<4x256xf32>
    %34 = arith.select %32, %30, %33 : vector<4x256xi1>, vector<4x256xf32>
    %c1 = arith.constant 1 : index
    %c0_10 = arith.constant 0 : index
    %c0_11 = arith.constant 0 : index
    %35 = vector.load %arg2[%c1, %c0_10, %c0_11] : memref<9x8x4xf32, #tpu.memory_space<vmem>>, vector<1x8x4xf32>
    %36 = vector.shape_cast %35 : vector<1x8x4xf32> to vector<8x4xf32>
    %cst_12 = arith.constant dense<0.000000e+00> : vector<8x256xf32>
    %37 = tpu.matmul %36, %34, %cst_12 {dimension_numbers = #tpu.dot_dimension_numbers<[1], [0], [0], [1], [0, 0, 1, 1], [], []>, precision = #tpu.contract_precision<fp32>} : vector<8x4xf32>, vector<4x256xf32>, vector<8x256xf32> -> vector<8x256xf32>
    %38 = arith.addf %27, %37 : vector<8x256xf32>
    %39 = vector.extract_strided_slice %1 {offsets = [0, 241], sizes = [4, 15], strides = [1, 1]} : vector<4x256xf32> to vector<4x15xf32>
    %40 = vector.extract_strided_slice %1 {offsets = [0, 0], sizes = [4, 241], strides = [1, 1]} : vector<4x256xf32> to vector<4x241xf32>
    %41 = tpu.concatenate %39, %40 in 1 : vector<4x15xf32>, vector<4x241xf32> -> vector<4x256xf32>
    %42 = arith.andi %8, %14 : vector<1x256xi1>
    %cst_13 = arith.constant 0.000000e+00 : f32
    %43 = vector.shape_cast %42 : vector<1x256xi1> to vector<1x256xi1>
    %44 = vector.broadcast %43 : vector<1x256xi1> to vector<4x256xi1>
    %45 = vector.broadcast %cst_13 : f32 to vector<4x256xf32>
    %46 = arith.select %44, %41, %45 : vector<4x256xi1>, vector<4x256xf32>
    %c2 = arith.constant 2 : index
    %c0_14 = arith.constant 0 : index
    %c0_15 = arith.constant 0 : index
    %47 = vector.load %arg2[%c2, %c0_14, %c0_15] : memref<9x8x4xf32, #tpu.memory_space<vmem>>, vector<1x8x4xf32>
    %48 = vector.shape_cast %47 : vector<1x8x4xf32> to vector<8x4xf32>
    %cst_16 = arith.constant dense<0.000000e+00> : vector<8x256xf32>
    %49 = tpu.matmul %48, %46, %cst_16 {dimension_numbers = #tpu.dot_dimension_numbers<[1], [0], [0], [1], [0, 0, 1, 1], [], []>, precision = #tpu.contract_precision<fp32>} : vector<8x4xf32>, vector<4x256xf32>, vector<8x256xf32> -> vector<8x256xf32>
    %50 = arith.addf %38, %49 : vector<8x256xf32>
    %51 = vector.extract_strided_slice %1 {offsets = [0, 255], sizes = [4, 1], strides = [1, 1]} : vector<4x256xf32> to vector<4x1xf32>
    %52 = vector.extract_strided_slice %1 {offsets = [0, 0], sizes = [4, 255], strides = [1, 1]} : vector<4x256xf32> to vector<4x255xf32>
    %53 = tpu.concatenate %51, %52 in 1 : vector<4x1xf32>, vector<4x255xf32> -> vector<4x256xf32>
    %cst_17 = arith.constant 0.000000e+00 : f32
    %54 = vector.shape_cast %12 : vector<1x256xi1> to vector<1x256xi1>
    %55 = vector.broadcast %54 : vector<1x256xi1> to vector<4x256xi1>
    %56 = vector.broadcast %cst_17 : f32 to vector<4x256xf32>
    %57 = arith.select %55, %53, %56 : vector<4x256xi1>, vector<4x256xf32>
    %c3 = arith.constant 3 : index
    %c0_18 = arith.constant 0 : index
    %c0_19 = arith.constant 0 : index
    %58 = vector.load %arg2[%c3, %c0_18, %c0_19] : memref<9x8x4xf32, #tpu.memory_space<vmem>>, vector<1x8x4xf32>
    %59 = vector.shape_cast %58 : vector<1x8x4xf32> to vector<8x4xf32>
    %cst_20 = arith.constant dense<0.000000e+00> : vector<8x256xf32>
    %60 = tpu.matmul %59, %57, %cst_20 {dimension_numbers = #tpu.dot_dimension_numbers<[1], [0], [0], [1], [0, 0, 1, 1], [], []>, precision = #tpu.contract_precision<fp32>} : vector<8x4xf32>, vector<4x256xf32>, vector<8x256xf32> -> vector<8x256xf32>
    %61 = arith.addf %50, %60 : vector<8x256xf32>
    %c4 = arith.constant 4 : index
    %c0_21 = arith.constant 0 : index
    %c0_22 = arith.constant 0 : index
    %62 = vector.load %arg2[%c4, %c0_21, %c0_22] : memref<9x8x4xf32, #tpu.memory_space<vmem>>, vector<1x8x4xf32>
    %63 = vector.shape_cast %62 : vector<1x8x4xf32> to vector<8x4xf32>
    %cst_23 = arith.constant dense<0.000000e+00> : vector<8x256xf32>
    %64 = tpu.matmul %63, %1, %cst_23 {dimension_numbers = #tpu.dot_dimension_numbers<[1], [0], [0], [1], [0, 0, 1, 1], [], []>, precision = #tpu.contract_precision<fp32>} : vector<8x4xf32>, vector<4x256xf32>, vector<8x256xf32> -> vector<8x256xf32>
    %65 = arith.addf %61, %64 : vector<8x256xf32>
    %66 = vector.extract_strided_slice %1 {offsets = [0, 1], sizes = [4, 255], strides = [1, 1]} : vector<4x256xf32> to vector<4x255xf32>
    %67 = vector.extract_strided_slice %1 {offsets = [0, 0], sizes = [4, 1], strides = [1, 1]} : vector<4x256xf32> to vector<4x1xf32>
    %68 = tpu.concatenate %66, %67 in 1 : vector<4x255xf32>, vector<4x1xf32> -> vector<4x256xf32>
    %cst_24 = arith.constant 0.000000e+00 : f32
    %69 = vector.shape_cast %14 : vector<1x256xi1> to vector<1x256xi1>
    %70 = vector.broadcast %69 : vector<1x256xi1> to vector<4x256xi1>
    %71 = vector.broadcast %cst_24 : f32 to vector<4x256xf32>
    %72 = arith.select %70, %68, %71 : vector<4x256xi1>, vector<4x256xf32>
    %c5 = arith.constant 5 : index
    %c0_25 = arith.constant 0 : index
    %c0_26 = arith.constant 0 : index
    %73 = vector.load %arg2[%c5, %c0_25, %c0_26] : memref<9x8x4xf32, #tpu.memory_space<vmem>>, vector<1x8x4xf32>
    %74 = vector.shape_cast %73 : vector<1x8x4xf32> to vector<8x4xf32>
    %cst_27 = arith.constant dense<0.000000e+00> : vector<8x256xf32>
    %75 = tpu.matmul %74, %72, %cst_27 {dimension_numbers = #tpu.dot_dimension_numbers<[1], [0], [0], [1], [0, 0, 1, 1], [], []>, precision = #tpu.contract_precision<fp32>} : vector<8x4xf32>, vector<4x256xf32>, vector<8x256xf32> -> vector<8x256xf32>
    %76 = arith.addf %65, %75 : vector<8x256xf32>
    %77 = vector.extract_strided_slice %1 {offsets = [0, 15], sizes = [4, 241], strides = [1, 1]} : vector<4x256xf32> to vector<4x241xf32>
    %78 = vector.extract_strided_slice %1 {offsets = [0, 0], sizes = [4, 15], strides = [1, 1]} : vector<4x256xf32> to vector<4x15xf32>
    %79 = tpu.concatenate %77, %78 in 1 : vector<4x241xf32>, vector<4x15xf32> -> vector<4x256xf32>
    %80 = arith.andi %10, %12 : vector<1x256xi1>
    %cst_28 = arith.constant 0.000000e+00 : f32
    %81 = vector.shape_cast %80 : vector<1x256xi1> to vector<1x256xi1>
    %82 = vector.broadcast %81 : vector<1x256xi1> to vector<4x256xi1>
    %83 = vector.broadcast %cst_28 : f32 to vector<4x256xf32>
    %84 = arith.select %82, %79, %83 : vector<4x256xi1>, vector<4x256xf32>
    %c6 = arith.constant 6 : index
    %c0_29 = arith.constant 0 : index
    %c0_30 = arith.constant 0 : index
    %85 = vector.load %arg2[%c6, %c0_29, %c0_30] : memref<9x8x4xf32, #tpu.memory_space<vmem>>, vector<1x8x4xf32>
    %86 = vector.shape_cast %85 : vector<1x8x4xf32> to vector<8x4xf32>
    %cst_31 = arith.constant dense<0.000000e+00> : vector<8x256xf32>
    %87 = tpu.matmul %86, %84, %cst_31 {dimension_numbers = #tpu.dot_dimension_numbers<[1], [0], [0], [1], [0, 0, 1, 1], [], []>, precision = #tpu.contract_precision<fp32>} : vector<8x4xf32>, vector<4x256xf32>, vector<8x256xf32> -> vector<8x256xf32>
    %88 = arith.addf %76, %87 : vector<8x256xf32>
    %89 = vector.extract_strided_slice %1 {offsets = [0, 16], sizes = [4, 240], strides = [1, 1]} : vector<4x256xf32> to vector<4x240xf32>
    %90 = vector.extract_strided_slice %1 {offsets = [0, 0], sizes = [4, 16], strides = [1, 1]} : vector<4x256xf32> to vector<4x16xf32>
    %91 = tpu.concatenate %89, %90 in 1 : vector<4x240xf32>, vector<4x16xf32> -> vector<4x256xf32>
    %cst_32 = arith.constant 0.000000e+00 : f32
    %92 = vector.shape_cast %10 : vector<1x256xi1> to vector<1x256xi1>
    %93 = vector.broadcast %92 : vector<1x256xi1> to vector<4x256xi1>
    %94 = vector.broadcast %cst_32 : f32 to vector<4x256xf32>
    %95 = arith.select %93, %91, %94 : vector<4x256xi1>, vector<4x256xf32>
    %c7 = arith.constant 7 : index
    %c0_33 = arith.constant 0 : index
    %c0_34 = arith.constant 0 : index
    %96 = vector.load %arg2[%c7, %c0_33, %c0_34] : memref<9x8x4xf32, #tpu.memory_space<vmem>>, vector<1x8x4xf32>
    %97 = vector.shape_cast %96 : vector<1x8x4xf32> to vector<8x4xf32>
    %cst_35 = arith.constant dense<0.000000e+00> : vector<8x256xf32>
    %98 = tpu.matmul %97, %95, %cst_35 {dimension_numbers = #tpu.dot_dimension_numbers<[1], [0], [0], [1], [0, 0, 1, 1], [], []>, precision = #tpu.contract_precision<fp32>} : vector<8x4xf32>, vector<4x256xf32>, vector<8x256xf32> -> vector<8x256xf32>
    %99 = arith.addf %88, %98 : vector<8x256xf32>
    %100 = vector.extract_strided_slice %1 {offsets = [0, 17], sizes = [4, 239], strides = [1, 1]} : vector<4x256xf32> to vector<4x239xf32>
    %101 = vector.extract_strided_slice %1 {offsets = [0, 0], sizes = [4, 17], strides = [1, 1]} : vector<4x256xf32> to vector<4x17xf32>
    %102 = tpu.concatenate %100, %101 in 1 : vector<4x239xf32>, vector<4x17xf32> -> vector<4x256xf32>
    %103 = arith.andi %10, %14 : vector<1x256xi1>
    %cst_36 = arith.constant 0.000000e+00 : f32
    %104 = vector.shape_cast %103 : vector<1x256xi1> to vector<1x256xi1>
    %105 = vector.broadcast %104 : vector<1x256xi1> to vector<4x256xi1>
    %106 = vector.broadcast %cst_36 : f32 to vector<4x256xf32>
    %107 = arith.select %105, %102, %106 : vector<4x256xi1>, vector<4x256xf32>
    %c8 = arith.constant 8 : index
    %c0_37 = arith.constant 0 : index
    %c0_38 = arith.constant 0 : index
    %108 = vector.load %arg2[%c8, %c0_37, %c0_38] : memref<9x8x4xf32, #tpu.memory_space<vmem>>, vector<1x8x4xf32>
    %109 = vector.shape_cast %108 : vector<1x8x4xf32> to vector<8x4xf32>
    %cst_39 = arith.constant dense<0.000000e+00> : vector<8x256xf32>
    %110 = tpu.matmul %109, %107, %cst_39 {dimension_numbers = #tpu.dot_dimension_numbers<[1], [0], [0], [1], [0, 0, 1, 1], [], []>, precision = #tpu.contract_precision<fp32>} : vector<8x4xf32>, vector<4x256xf32>, vector<8x256xf32> -> vector<8x256xf32>
    %111 = arith.addf %99, %110 : vector<8x256xf32>
    %c0_40 = arith.constant 0 : index
    %c0_41 = arith.constant 0 : index
    %112 = vector.load %arg3[%c0_40, %c0_41] : memref<8x1xf32, #tpu.memory_space<vmem>>, vector<8x1xf32>
    %113 = vector.broadcast %112 : vector<8x1xf32> to vector<8x256xf32>
    %114 = arith.addf %111, %113 : vector<8x256xf32>
    %cst_42 = arith.constant dense<0xFF800000> : vector<256xf32>
    %115 = vector.multi_reduction <maximumf>, %114, %cst_42 [0] : vector<8x256xf32> to vector<256xf32>
    %116 = vector.shape_cast %115 : vector<256xf32> to vector<1x256xf32>
    %117 = vector.broadcast %116 : vector<1x256xf32> to vector<8x256xf32>
    %118 = arith.subf %114, %117 : vector<8x256xf32>
    %119 = math.exp %118 : vector<8x256xf32>
    %cst_43 = arith.constant dense<0.000000e+00> : vector<256xf32>
    %120 = vector.multi_reduction <add>, %119, %cst_43 [0] : vector<8x256xf32> to vector<256xf32>
    %121 = vector.shape_cast %120 : vector<256xf32> to vector<1x256xf32>
    %c0_44 = arith.constant 0 : index
    %c0_45 = arith.constant 0 : index
    %c0_46 = arith.constant 0 : index
    %122 = vector.load %arg4[%c0_44, %c0_45, %c0_46] : memref<1x8x1xf32, #tpu.memory_space<vmem>>, vector<1x8x1xf32>
    %123 = vector.shape_cast %122 : vector<1x8x1xf32> to vector<8x1xf32>
    %124 = vector.broadcast %123 : vector<8x1xf32> to vector<8x256xf32>
    %125 = arith.mulf %119, %124 : vector<8x256xf32>
    %cst_47 = arith.constant dense<0.000000e+00> : vector<256xf32>
    %126 = vector.multi_reduction <add>, %125, %cst_47 [0] : vector<8x256xf32> to vector<256xf32>
    %127 = vector.shape_cast %126 : vector<256xf32> to vector<1x256xf32>
    %128 = arith.divf %127, %121 : vector<1x256xf32>
    %c0_i32 = arith.constant 0 : i32
    %129 = vector.broadcast %c0_i32 : i32 to vector<1x256xi32>
    %130 = arith.cmpi eq, %4, %129 : vector<1x256xi32>
    %131 = vector.extract_strided_slice %128 {offsets = [0, 240], sizes = [1, 16], strides = [1, 1]} : vector<1x256xf32> to vector<1x16xf32>
    %132 = vector.extract_strided_slice %128 {offsets = [0, 0], sizes = [1, 240], strides = [1, 1]} : vector<1x256xf32> to vector<1x240xf32>
    %133 = tpu.concatenate %131, %132 in 1 : vector<1x16xf32>, vector<1x240xf32> -> vector<1x256xf32>
    %134 = arith.select %130, %128, %133 : vector<1x256xi1>, vector<1x256xf32>
    %c15_i32_48 = arith.constant 15 : i32
    %135 = vector.broadcast %c15_i32_48 : i32 to vector<1x256xi32>
    %136 = arith.cmpi eq, %4, %135 : vector<1x256xi32>
    %137 = vector.extract_strided_slice %128 {offsets = [0, 16], sizes = [1, 240], strides = [1, 1]} : vector<1x256xf32> to vector<1x240xf32>
    %138 = vector.extract_strided_slice %128 {offsets = [0, 0], sizes = [1, 16], strides = [1, 1]} : vector<1x256xf32> to vector<1x16xf32>
    %139 = tpu.concatenate %137, %138 in 1 : vector<1x240xf32>, vector<1x16xf32> -> vector<1x256xf32>
    %140 = arith.select %136, %128, %139 : vector<1x256xi1>, vector<1x256xf32>
    %cst_49 = arith.constant 7.500000e-01 : f32
    %141 = vector.broadcast %cst_49 : f32 to vector<1x256xf32>
    %142 = arith.mulf %141, %128 : vector<1x256xf32>
    %cst_50 = arith.constant 2.500000e-01 : f32
    %143 = vector.broadcast %cst_50 : f32 to vector<1x256xf32>
    %144 = arith.mulf %143, %134 : vector<1x256xf32>
    %145 = arith.addf %142, %144 : vector<1x256xf32>
    %cst_51 = arith.constant 7.500000e-01 : f32
    %146 = vector.broadcast %cst_51 : f32 to vector<1x256xf32>
    %147 = arith.mulf %146, %128 : vector<1x256xf32>
    %cst_52 = arith.constant 2.500000e-01 : f32
    %148 = vector.broadcast %cst_52 : f32 to vector<1x256xf32>
    %149 = arith.mulf %148, %140 : vector<1x256xf32>
    %150 = arith.addf %147, %149 : vector<1x256xf32>
    %151 = tpu.iota {dimensions = array<i32: 0>} : vector<4x256xi32>
    %c2_i32 = arith.constant 2 : i32
    %152 = vector.broadcast %c2_i32 : i32 to vector<4x256xi32>
    %153 = arith.cmpi slt, %151, %152 : vector<4x256xi32>
    %154 = vector.shape_cast %145 : vector<1x256xf32> to vector<1x256xf32>
    %155 = vector.broadcast %154 : vector<1x256xf32> to vector<4x256xf32>
    %156 = vector.shape_cast %150 : vector<1x256xf32> to vector<1x256xf32>
    %157 = vector.broadcast %156 : vector<1x256xf32> to vector<4x256xf32>
    %158 = arith.select %153, %155, %157 : vector<4x256xi1>, vector<4x256xf32>
    %c0_i32_53 = arith.constant 0 : i32
    %159 = vector.broadcast %c0_i32_53 : i32 to vector<1x256xi32>
    %160 = arith.cmpi eq, %6, %159 : vector<1x256xi32>
    %161 = vector.extract_strided_slice %158 {offsets = [0, 255], sizes = [4, 1], strides = [1, 1]} : vector<4x256xf32> to vector<4x1xf32>
    %162 = vector.extract_strided_slice %158 {offsets = [0, 0], sizes = [4, 255], strides = [1, 1]} : vector<4x256xf32> to vector<4x255xf32>
    %163 = tpu.concatenate %161, %162 in 1 : vector<4x1xf32>, vector<4x255xf32> -> vector<4x256xf32>
    %164 = vector.shape_cast %160 : vector<1x256xi1> to vector<1x256xi1>
    %165 = vector.broadcast %164 : vector<1x256xi1> to vector<4x256xi1>
    %166 = arith.select %165, %158, %163 : vector<4x256xi1>, vector<4x256xf32>
    %c15_i32_54 = arith.constant 15 : i32
    %167 = vector.broadcast %c15_i32_54 : i32 to vector<1x256xi32>
    %168 = arith.cmpi eq, %6, %167 : vector<1x256xi32>
    %169 = vector.extract_strided_slice %158 {offsets = [0, 1], sizes = [4, 255], strides = [1, 1]} : vector<4x256xf32> to vector<4x255xf32>
    %170 = vector.extract_strided_slice %158 {offsets = [0, 0], sizes = [4, 1], strides = [1, 1]} : vector<4x256xf32> to vector<4x1xf32>
    %171 = tpu.concatenate %169, %170 in 1 : vector<4x255xf32>, vector<4x1xf32> -> vector<4x256xf32>
    %172 = vector.shape_cast %168 : vector<1x256xi1> to vector<1x256xi1>
    %173 = vector.broadcast %172 : vector<1x256xi1> to vector<4x256xi1>
    %174 = arith.select %173, %158, %171 : vector<4x256xi1>, vector<4x256xf32>
    %c1_i32_55 = arith.constant 1 : i32
    %175 = vector.broadcast %c1_i32_55 : i32 to vector<4x256xi32>
    %176 = arith.andi %151, %175 : vector<4x256xi32>
    %c0_i32_56 = arith.constant 0 : i32
    %177 = vector.broadcast %c0_i32_56 : i32 to vector<4x256xi32>
    %178 = arith.cmpi eq, %176, %177 : vector<4x256xi32>
    %179 = arith.select %178, %166, %174 : vector<4x256xi1>, vector<4x256xf32>
    %cst_57 = arith.constant 7.500000e-01 : f32
    %180 = vector.broadcast %cst_57 : f32 to vector<4x256xf32>
    %181 = arith.mulf %180, %158 : vector<4x256xf32>
    %cst_58 = arith.constant 2.500000e-01 : f32
    %182 = vector.broadcast %cst_58 : f32 to vector<4x256xf32>
    %183 = arith.mulf %182, %179 : vector<4x256xf32>
    %184 = arith.addf %181, %183 : vector<4x256xf32>
    %c0_59 = arith.constant 0 : index
    %c0_60 = arith.constant 0 : index
    %c0_61 = arith.constant 0 : index
    %185 = vector.load %arg5[%c0_59, %c0_60, %c0_61] : memref<1x4x256xf32, #tpu.memory_space<vmem>>, vector<1x4x256xf32>
    %186 = vector.shape_cast %185 : vector<1x4x256xf32> to vector<4x256xf32>
    %187 = vector.shape_cast %184 : vector<4x256xf32> to vector<1x4x256xf32>
    tpu.vector_store %arg5[%c0_59, %c0_60, %c0_61], %187 {strides = array<i32>} : memref<1x4x256xf32, #tpu.memory_space<vmem>>, vector<1x4x256xf32>,
    return
  }
  func.func @transform_0(%arg0: i32) -> (i32, i32, i32) {
    %c0_i32 = arith.constant 0 : i32
    %c0_i32_0 = arith.constant 0 : i32
    %c0_i32_1 = arith.constant 0 : i32
    return %arg0, %c0_i32, %c0_i32_0 : i32, i32, i32
  }
  func.func @transform_1(%arg0: i32) -> (i32, i32, i32) {
    %c0_i32 = arith.constant 0 : i32
    %c0_i32_0 = arith.constant 0 : i32
    %c0_i32_1 = arith.constant 0 : i32
    %c0_i32_2 = arith.constant 0 : i32
    return %c0_i32, %c0_i32_0, %c0_i32_1 : i32, i32, i32
  }
  func.func @transform_2(%arg0: i32) -> (i32, i32) {
    %c0_i32 = arith.constant 0 : i32
    %c0_i32_0 = arith.constant 0 : i32
    %c0_i32_1 = arith.constant 0 : i32
    return %c0_i32, %c0_i32_0 : i32, i32
  }
  func.func @transform_3(%arg0: i32) -> (i32, i32, i32) {
    %c0_i32 = arith.constant 0 : i32
    %c0_i32_0 = arith.constant 0 : i32
    %c0_i32_1 = arith.constant 0 : i32
    return %arg0, %c0_i32, %c0_i32_0 : i32, i32, i32
  }
  func.func @transform_4(%arg0: i32) -> (i32, i32, i32) {
    %c0_i32 = arith.constant 0 : i32
    %c0_i32_0 = arith.constant 0 : i32
    %c0_i32_1 = arith.constant 0 : i32
    return %arg0, %c0_i32, %c0_i32_0 : i32, i32, i32
  }
}

</mosaic_0001>

<llo_original>
// kernel: tpu_custom_call.1
$region0: #{tpu_custom_call.1}
  #allocation0 [shape = 'u32[]', space=smem, size = 0x4, offset = 0x4, fixed_abs, tag = 'smem constant byte address 0x4 - core index']
  #allocation1 [shape = 'u32[144,128]{1,0:T(1,128)}', space=vmem, size = 0x12000, scoped, tag = 'internal scratch']
  %s0 = inlined_call_operand.vmem [shape: f32[2,4,256], index: 0, kind: input, shape index: {}]
  %s1 = inlined_call_operand.vmem [shape: f32[9,8,4], index: 1, kind: input, shape index: {}]
  %s2 = inlined_call_operand.vmem [shape: f32[8,1], index: 2, kind: input, shape index: {}]
  %s3 = inlined_call_operand.vmem [shape: f32[2,8,1], index: 3, kind: input, shape index: {}]
  %s4 = inlined_call_operand.hbm [shape: f32[2,4,256], index: 4, kind: output, shape index: {}]
  %s5 = sld [smem:[#allocation0]]
  $region49: #{tpu_custom_call.1} parent=0
    _
  %s7 = ssub.s32 1, %s5
  %s8 = scalar_select 0, %s7, %s5
  $region1: #{tpu_custom_call.1} parent=0
    #allocation2 [shape = 'u8[8192]{0}', space=vmem, size = 0x2000, scoped, tag = 'output window, operand 0']
    #allocation3 [shape = 's32[2]{0}', space=sflag, size = 0x8, scoped, tag = 'scoped memory for tpu_custom_call.1']
    %9 = vsyncpa [#allocation3], 0
    %s10 = scalar_lea.sflag [#allocation3], 1
    %11 = vsyncpa %s10, 0
    loop: start=0, step=1, limit=4
    $region2: #{tpu_custom_call.1} parent=1 // loop_pre_header
      _
    $region3: #{tpu_custom_call.1} parent=1 // loop_header
      %s13 = sphi 0, %s17
      %p14 = scmp.ge.s32.totalorder %s13, 4
      %s23 = sphi 0, %s25
      %s26 = sphi 0, %s23
      %s27 = sphi 0, %s26
      %s43 = sphi 0, %s27
      %s47 = sphi 0, %s47
      %s49 = sphi 0, %s47
      %s50 = sphi 0, %s49
      %s64 = sphi 0, %s50
      %s68 = sphi 0, %s68
      %s70 = sphi 0, %s68
      %s71 = sphi 0, %s70
      %s85 = sphi 0, %s71
      %s91 = sphi 0, %s93
      %s94 = sphi 0, %s91
      %s95 = sphi 0, %s94
      %s111 = sphi 0, %s95
      %s117 = sphi 0, %s119
      %s120 = sphi 0, %s117
      %s121 = sphi 0, %s120
      %s137 = sphi 0, %s121
    $region4: #{tpu_custom_call.1} parent=1 // loop_header_branch
      %16 = sbr.rel (%p14) target = $region8
    $region5: #{tpu_custom_call.1} parent=1 // loop_body
      %s18 = ssub.s32 %s13, 1
      %s19 = ssub.s32 %s13, 2
      %s20 = sadd.s32 %s13, 1
      %s21 = ssub.s32 %s13, %s20
      %p22 = scmp.eq.s32.totalorder %s21, 0
      %s24 = sadd.s32 %s23, 1
      %s25 = scalar_select %p22, %s23, %s24
      %p28 = pneg %p22
      %p29 = scmp.eq.s32.totalorder %s13, 1
      %p30 = por %p28, %p29
      %p31 = scmp.ne.s32.totalorder %s23, %s26
      %p32 = scmp.eq.s32.totalorder %s13, 0
      %p33 = por %p31, %p32
      %p34 = scmp.ne.s32.totalorder %s23, %s26
      %p35 = scmp.eq.s32.totalorder %s18, 1
      %p36 = por %p34, %p35
      %p37 = scmp.ne.s32.totalorder %s26, %s27
      %p38 = scmp.eq.s32.totalorder %s18, 0
      %p39 = por %p37, %p38
      %p40 = scmp.ne.s32.totalorder %s26, %s27
      %p41 = scmp.eq.s32.totalorder %s19, 1
      %p42 = por %p40, %p41
      %p44 = scmp.ne.s32.totalorder %s27, %s43
      %p45 = scmp.eq.s32.totalorder %s19, 0
      %p46 = por %p44, %p45
      %s48 = sadd.s32 %s47, 1
      %p51 = scmp.eq.s32.totalorder %s13, 1
      %p52 = scmp.ne.s32.totalorder %s47, %s49
      %p53 = scmp.eq.s32.totalorder %s13, 0
      %p54 = por %p52, %p53
      %p55 = scmp.ne.s32.totalorder %s47, %s49
      %p56 = scmp.eq.s32.totalorder %s18, 1
      %p57 = por %p55, %p56
      %p58 = scmp.ne.s32.totalorder %s49, %s50
      %p59 = scmp.eq.s32.totalorder %s18, 0
      %p60 = por %p58, %p59
      %p61 = scmp.ne.s32.totalorder %s49, %s50
      %p62 = scmp.eq.s32.totalorder %s19, 1
      %p63 = por %p61, %p62
      %p65 = scmp.ne.s32.totalorder %s50, %s64
      %p66 = scmp.eq.s32.totalorder %s19, 0
      %p67 = por %p65, %p66
      %s69 = sadd.s32 %s68, 1
      %p72 = scmp.eq.s32.totalorder %s13, 1
      %p73 = scmp.ne.s32.totalorder %s68, %s70
      %p74 = scmp.eq.s32.totalorder %s13, 0
      %p75 = por %p73, %p74
      %p76 = scmp.ne.s32.totalorder %s68, %s70
      %p77 = scmp.eq.s32.totalorder %s18, 1
      %p78 = por %p76, %p77
      %p79 = scmp.ne.s32.totalorder %s70, %s71
      %p80 = scmp.eq.s32.totalorder %s18, 0
      %p81 = por %p79, %p80
      %p82 = scmp.ne.s32.totalorder %s70, %s71
      %p83 = scmp.eq.s32.totalorder %s19, 1
      %p84 = por %p82, %p83
      %p86 = scmp.ne.s32.totalorder %s71, %s85
      %p87 = scmp.eq.s32.totalorder %s19, 0
      %p88 = por %p86, %p87
      %s89 = ssub.s32 %s13, %s20
      %p90 = scmp.eq.s32.totalorder %s89, 0
      %s92 = sadd.s32 %s91, 1
      %s93 = scalar_select %p90, %s91, %s92
      %p96 = pneg %p90
      %p97 = scmp.eq.s32.totalorder %s13, 1
      %p98 = por %p96, %p97
      %p99 = scmp.ne.s32.totalorder %s91, %s94
      %p100 = scmp.eq.s32.totalorder %s13, 0
      %p101 = por %p99, %p100
      %p102 = scmp.ne.s32.totalorder %s91, %s94
      %p103 = scmp.eq.s32.totalorder %s18, 1
      %p104 = por %p102, %p103
      %p105 = scmp.ne.s32.totalorder %s94, %s95
      %p106 = scmp.eq.s32.totalorder %s18, 0
      %p107 = por %p105, %p106
      %p108 = scmp.ne.s32.totalorder %s94, %s95
      %p109 = scmp.eq.s32.totalorder %s19, 1
      %p110 = por %p108, %p109
      %p112 = scmp.ne.s32.totalorder %s95, %s111
      %p113 = scmp.eq.s32.totalorder %s19, 0
      %p114 = por %p112, %p113
      %s115 = ssub.s32 %s13, %s20
      %p116 = scmp.eq.s32.totalorder %s115, 0
      %s118 = sadd.s32 %s117, 1
      %s119 = scalar_select %p116, %s117, %s118
      %p122 = pneg %p116
      %p123 = scmp.eq.s32.totalorder %s13, 1
      %p124 = por %p122, %p123
      %p125 = scmp.ne.s32.totalorder %s117, %s120
      %p126 = scmp.eq.s32.totalorder %s13, 0
      %p127 = por %p125, %p126
      %p128 = scmp.ne.s32.totalorder %s117, %s120
      %p129 = scmp.eq.s32.totalorder %s18, 1
      %p130 = por %p128, %p129
      %p131 = scmp.ne.s32.totalorder %s120, %s121
      %p132 = scmp.eq.s32.totalorder %s18, 0
      %p133 = por %p131, %p132
      %p134 = scmp.ne.s32.totalorder %s120, %s121
      %p135 = scmp.eq.s32.totalorder %s19, 1
      %p136 = por %p134, %p135
      %p138 = scmp.ne.s32.totalorder %s121, %s137
      %p139 = scmp.eq.s32.totalorder %s19, 0
      %p140 = por %p138, %p139
      %p141 = scmp.le.s32.totalorder 1, %s13
      %p142 = scmp.lt.s32.totalorder %s13, 3
      %p143 = pnand %p141, %p142
      %p144 = pneg %p143
      // Predicated region
      $region9: #{tpu_custom_call.1} parent=5 // pred_check
        _
      $region10: #{tpu_custom_call.1} parent=5 // pred_check_branch
        %146 = sbr.rel (%p143) target = $region12
      $region11: #{tpu_custom_call.1} parent=5 // pred_region
        %s147 = ssub.s32 %s13, 1
        // Predicated region
        $region13: #{tpu_custom_call.1} parent=11 // pred_check
          %p148 = pneg %p60
        $region14: #{tpu_custom_call.1} parent=11 // pred_check_branch
          %150 = sbr.rel (%p148) target = $region16
        $region15: #{tpu_custom_call.1} parent=11 // pred_region
          _
        $region16: #{tpu_custom_call.1} parent=11 // pred_fallthru
          _
        // Predicated region
        $region17: #{tpu_custom_call.1} parent=11 // pred_check
          %p151 = pneg %p81
        $region18: #{tpu_custom_call.1} parent=11 // pred_check_branch
          %153 = sbr.rel (%p151) target = $region20
        $region19: #{tpu_custom_call.1} parent=11 // pred_region
          _
        $region20: #{tpu_custom_call.1} parent=11 // pred_fallthru
          _
      $region12: #{tpu_custom_call.1} parent=5 // pred_fallthru
        _
      %p154 = scmp.lt.s32.totalorder %s13, 2
      // Predicated region
      $region21: #{tpu_custom_call.1} parent=5 // pred_check
        %p155 = pneg %p154
      $region22: #{tpu_custom_call.1} parent=5 // pred_check_branch
        %157 = sbr.rel (%p155) target = $region24
      $region23: #{tpu_custom_call.1} parent=5 // pred_region
        // Predicated region
        $region25: #{tpu_custom_call.1} parent=23 // pred_check
          %p158 = pneg %p33
        $region26: #{tpu_custom_call.1} parent=23 // pred_check_branch
          %160 = sbr.rel (%p158) target = $region28
        $region27: #{tpu_custom_call.1} parent=23 // pred_region
          %p161 = scmp.lt.s32.totalorder %s13, 1
          %s162 = scalar_select %p161, %s13, 1
          %s163 = smul.addr %s162, 2
          %s164 = smul.addr %s163, 4
          %s165 = scalar_lea.vmem %s0, %s164
        $region28: #{tpu_custom_call.1} parent=23 // pred_fallthru
          _
        // Predicated region
        $region29: #{tpu_custom_call.1} parent=23 // pred_check
          %p166 = pneg %p101
        $region30: #{tpu_custom_call.1} parent=23 // pred_check_branch
          %168 = sbr.rel (%p166) target = $region32
        $region31: #{tpu_custom_call.1} parent=23 // pred_region
          %p169 = scmp.lt.s32.totalorder %s13, 1
          %s170 = scalar_select %p169, %s13, 1
          %s171 = smul.addr %s170, 8
          %s172 = scalar_lea.vmem %s3, %s171
        $region32: #{tpu_custom_call.1} parent=23 // pred_fallthru
          _
      $region24: #{tpu_custom_call.1} parent=5 // pred_fallthru
        _
      %p173 = scmp.le.s32.totalorder 1, %s13
      %p174 = scmp.lt.s32.totalorder %s13, 3
      %p175 = pnand %p173, %p174
      %p176 = pneg %p175
      // Predicated region
      $region33: #{tpu_custom_call.1} parent=5 // pred_check
        _
      $region34: #{tpu_custom_call.1} parent=5 // pred_check_branch
        %178 = sbr.rel (%p175) target = $region36
      $region35: #{tpu_custom_call.1} parent=5 // pred_region
        %s179 = ssub.s32 %s13, 1
        %p180 = scmp.lt.s32.totalorder %s18, 1
        %s181 = scalar_select %p180, %s18, 1
        %s182 = smul.addr %s181, 2
        %s183 = smul.addr %s182, 4
        %s184 = scalar_lea.vmem %s0, %s183
        %p185 = pneg %p39
        %p186 = pneg %p36
        %p187 = pneg %p60
        %p188 = pneg %p57
        %p189 = pneg %p81
        %p190 = pneg %p78
        %p191 = scmp.lt.s32.totalorder %s18, 1
        %s192 = scalar_select %p191, %s18, 1
        %s193 = smul.addr %s192, 8
        %s194 = scalar_lea.vmem %s3, %s193
        %p195 = pneg %p107
        %p196 = pneg %p104
        %p197 = pneg %p133
        %p198 = pneg %p130
        %s199 = sand.u32 %s120, 1
        %s200 = scalar_lea.sflag [#allocation3], %s199
        %s201 = sand.u32 %s120, 1
        %s202 = smul.addr %s201, 8
        %s203 = scalar_lea.vmem [#allocation2], %s202
        %p204 = scmp.lt.s32.totalorder %s18, 1
        %s205 = scalar_select %p204, %s18, 1
        %s206 = smul.addr %s205, 2
        %s207 = smul.addr %s206, 4
        %s208 = scalar_lea.vmem %s0, %s207
        %p209 = scmp.lt.s32.totalorder %s18, 1
        %s210 = scalar_select %p209, %s18, 1
        %s211 = smul.addr %s210, 8
        %s212 = scalar_lea.vmem %s3, %s211
        %v213 = vld [vmem:[%s208] sm:$0xff]
        %v214 = vlaneseq
        %v215 = vand.u32 %v214, 127
        %v216 = vadd.s32 %v215, 128
        %v217 = vshra.s32 %v215, 4
        %v218 = vshra.s32 %v216, 4
        %v219 = vand.u32 %v215, 15
        %v220 = vand.u32 %v216, 15
        %vm221 = vcmp.ge.s32.totalorder %v217, 1
        %vm222 = vcmp.ge.s32.totalorder %v218, 1
        %vm223 = vcmp.le.s32.totalorder %v217, 14
        %vm224 = vcmp.le.s32.totalorder %v218, 14
        %vm225 = vcmp.ge.s32.totalorder %v219, 1
        %vm226 = vcmp.ge.s32.totalorder %v220, 1
        %vm227 = vcmp.le.s32.totalorder %v219, 14
        %vm228 = vcmp.le.s32.totalorder %v220, 14
        %v230 = vcombine.high %v213, %v213
        %231 = vrot.lane.b32.xlu0 %v230, 17
        %v232 = vpop.permute.xlu0 %231
        %234 = vrot.lane.b32.xlu0 %v213, 17
        %v235 = vpop.permute.xlu0 %234
        %vm236 = vcmask 138240
        %v237 = vsel %vm236, %v235, %v232
        %v240 = vsel %vm236, %v232, %v235
        %vm241 = vmand %vm221, %vm225
        %vm242 = vmand %vm222, %vm226
        %v243 = vsel %vm241, 1, 0
        %v244 = vsel %vm242, 1, 0
        %vm245 = vcmp.eq.s32.totalorder %v243, 1
        %vm246 = vcmp.eq.s32.totalorder %v244, 1
        %v247 = vsel %vm245, %v240, 0.0
        %v248 = vsel %vm246, %v237, 0.0
        %v249 = vld [vmem:[%s1] sm:$0xff]
        %250 = vrot.lane.b32.xlu0 %v230, 16
        %v251 = vpop.permute.xlu0 %250
        %253 = vrot.lane.b32.xlu0 %v213, 16
        %v254 = vpop.permute.xlu0 %253
        %vm255 = vcmask 130048
        %v256 = vsel %vm255, %v254, %v251
        %v259 = vsel %vm255, %v251, %v254
        %v260 = vsel %vm221, 1, 0
        %v261 = vsel %vm222, 1, 0
        %vm262 = vcmp.eq.s32.totalorder %v260, 1
        %vm263 = vcmp.eq.s32.totalorder %v261, 1
        %v264 = vsel %vm262, %v259, 0.0
        %v265 = vsel %vm263, %v256, 0.0
        %s266 = scalar_lea.vmem %s1, 8
        %v267 = vld [vmem:[%s266] sm:$0xff]
        %vm268 = vcmask 31744
        %v270 = vsel %vm268, %v267, 0
        %vm272 = vcmask 1043456
        %v274 = vsel %vm272, %v264, 0
        %v277 = vsel %vm272, %v265, 0
        %279 = vmatprep.subr.mxu0 0.0
        %280 = vmatpush1.msra.mxu0 0.0
        %281 = vmatprep.subr.mxu0 0.0
        %282 = vmatpush1.msra.mxu0 0.0
        %283 = vmatprep.subr.mxu0 0.0
        %284 = vmatpush1.msra.mxu0 0.0
        %285 = vmatprep.subr.mxu0 0.0
        %286 = vmatpush1.msra.mxu0 0.0
        %287 = vmatprep.subr.mxu0 0.0
        %288 = vmatpush1.msra.mxu0 0.0
        %289 = vmatprep.subr.mxu0 0.0
        %290 = vmatpush1.msra.mxu0 0.0
        %291 = vmatprep.subr.mxu0 0.0
        %292 = vmatpush1.msra.mxu0 0.0
        %293 = vmatprep.subr.mxu0 0.0
        %294 = vmatpush1.msra.mxu0 0.0
        %295 = vmatprep.subr.mxu0 0.0
        %296 = vmatpush1.msra.mxu0 0.0
        %297 = vmatprep.subr.mxu0 0.0
        %298 = vmatpush1.msra.mxu0 0.0
        %299 = vmatprep.subr.mxu0 0.0
        %300 = vmatpush1.msra.mxu0 0.0
        %301 = vmatprep.subr.mxu0 0.0
        %302 = vmatpush1.msra.mxu0 0.0
        %303 = vmatprep.subr.mxu0 0.0
        %304 = vmatpush1.msra.mxu0 0.0
        %305 = vmatprep.subr.mxu0 0.0
        %306 = vmatpush1.msra.mxu0 0.0
        %307 = vmatprep.subr.mxu0 0.0
        %308 = vmatpush1.msra.mxu0 0.0
        %v309 = vand.u32 %v277, 4294901760
        %310 = vmatprep.subr.mxu0 %v309
        %v311 = vand.u32 %v274, 4294901760
        %312 = vmatpush1.msra.mxu0 %v311
        %313 = vmatprep.subr.mxu0 0.0
        %314 = vmatpush2.msra.mxu0 0.0
        %315 = vmatprep.subr.mxu0 0.0
        %316 = vmatpush2.msra.mxu0 0.0
        %317 = vmatprep.subr.mxu0 0.0
        %318 = vmatpush2.msra.mxu0 0.0
        %319 = vmatprep.subr.mxu0 0.0
        %320 = vmatpush2.msra.mxu0 0.0
        %321 = vmatprep.subr.mxu0 0.0
        %322 = vmatpush2.msra.mxu0 0.0
        %323 = vmatprep.subr.mxu0 0.0
        %324 = vmatpush2.msra.mxu0 0.0
        %325 = vmatprep.subr.mxu0 0.0
        %326 = vmatpush2.msra.mxu0 0.0
        %327 = vmatprep.subr.mxu0 0.0
        %328 = vmatpush2.msra.mxu0 0.0
        %329 = vmatprep.subr.mxu0 0.0
        %330 = vmatpush2.msra.mxu0 0.0
        %331 = vmatprep.subr.mxu0 0.0
        %332 = vmatpush2.msra.mxu0 0.0
        %333 = vmatprep.subr.mxu0 0.0
        %334 = vmatpush2.msra.mxu0 0.0
        %335 = vmatprep.subr.mxu0 0.0
        %336 = vmatpush2.msra.mxu0 0.0
        %337 = vmatprep.subr.mxu0 0.0
        %338 = vmatpush2.msra.mxu0 0.0
        %339 = vmatprep.subr.mxu0 0.0
        %340 = vmatpush2.msra.mxu0 0.0
        %341 = vmatprep.subr.mxu0 0.0
        %342 = vmatpush2.msra.mxu0 0.0
        %343 = vmatprep.subr.mxu0 0.0
        %344 = vmatpush2.msra.mxu0 0.0
        %345 = vmatprep.mubr.f32.mxu0 0.0
        %v346 = vand.u32 %v270, 4294901760
        %v347 = vsub.f32 %v270, %v346
        %v348 = vand.u32 %v347, 4294901760
        %v349 = vsub.f32 %v347, %v348
        %v350 = vand.u32 %v349, 4294901760
        %351 = vmatmul.mubr.f32.gmra.mxu0 %v350
        %v352 = vpop.f32.mrf.mxu0
        %v353 = vadd.f32 0.0, %v352
        %v354 = vpop.f32.mrf.mxu0
        %v355 = vadd.f32 0.0, %v354
        %356 = vdwg.mxu0
        %357 = vmatprep.subr.mxu0 0.0
        %358 = vmatpush1.msra.mxu0 0.0
        %359 = vmatprep.subr.mxu0 0.0
        %360 = vmatpush1.msra.mxu0 0.0
        %361 = vmatprep.subr.mxu0 0.0
        %362 = vmatpush1.msra.mxu0 0.0
        %363 = vmatprep.subr.mxu0 0.0
        %364 = vmatpush1.msra.mxu0 0.0
        %365 = vmatprep.subr.mxu0 0.0
        %366 = vmatpush1.msra.mxu0 0.0
        %367 = vmatprep.subr.mxu0 0.0
        %368 = vmatpush1.msra.mxu0 0.0
        %369 = vmatprep.subr.mxu0 0.0
        %370 = vmatpush1.msra.mxu0 0.0
        %371 = vmatprep.subr.mxu0 0.0
        %372 = vmatpush1.msra.mxu0 0.0
        %373 = vmatprep.subr.mxu0 0.0
        %374 = vmatpush1.msra.mxu0 0.0
        %375 = vmatprep.subr.mxu0 0.0
        %376 = vmatpush1.msra.mxu0 0.0
        %377 = vmatprep.subr.mxu0 0.0
        %378 = vmatpush1.msra.mxu0 0.0
        %379 = vmatprep.subr.mxu0 0.0
        %380 = vmatpush1.msra.mxu0 0.0
        %381 = vmatprep.subr.mxu0 0.0
        %382 = vmatpush1.msra.mxu0 0.0
        %383 = vmatprep.subr.mxu0 0.0
        %384 = vmatpush1.msra.mxu0 0.0
        %385 = vmatprep.subr.mxu0 0.0
        %386 = vmatpush1.msra.mxu0 0.0
        %v387 = vand.u32 %v277, 4294901760
        %v388 = vsub.f32 %v277, %v387
        %v389 = vand.u32 %v388, 4294901760
        %v390 = vsub.f32 %v388, %v389
        %v391 = vand.u32 %v390, 4294901760
        %392 = vmatprep.subr.mxu0 %v391
        %v393 = vand.u32 %v274, 4294901760
        %v394 = vsub.f32 %v274, %v393
        %v395 = vand.u32 %v394, 4294901760
        %v396 = vsub.f32 %v394, %v395
        %v397 = vand.u32 %v396, 4294901760
        %398 = vmatpush1.msra.mxu0 %v397
        %399 = vmatprep.subr.mxu0 0.0
        %400 = vmatpush2.msra.mxu0 0.0
        %401 = vmatprep.subr.mxu0 0.0
        %402 = vmatpush2.msra.mxu0 0.0
        %403 = vmatprep.subr.mxu0 0.0
        %404 = vmatpush2.msra.mxu0 0.0
        %405 = vmatprep.subr.mxu0 0.0
        %406 = vmatpush2.msra.mxu0 0.0
        %407 = vmatprep.subr.mxu0 0.0
        %408 = vmatpush2.msra.mxu0 0.0
        %409 = vmatprep.subr.mxu0 0.0
        %410 = vmatpush2.msra.mxu0 0.0
        %411 = vmatprep.subr.mxu0 0.0
        %412 = vmatpush2.msra.mxu0 0.0
        %413 = vmatprep.subr.mxu0 0.0
        %414 = vmatpush2.msra.mxu0 0.0
        %415 = vmatprep.subr.mxu0 0.0
        %416 = vmatpush2.msra.mxu0 0.0
        %417 = vmatprep.subr.mxu0 0.0
        %418 = vmatpush2.msra.mxu0 0.0
        %419 = vmatprep.subr.mxu0 0.0
        %420 = vmatpush2.msra.mxu0 0.0
        %421 = vmatprep.subr.mxu0 0.0
        %422 = vmatpush2.msra.mxu0 0.0
        %423 = vmatprep.subr.mxu0 0.0
        %424 = vmatpush2.msra.mxu0 0.0
        %425 = vmatprep.subr.mxu0 0.0
        %426 = vmatpush2.msra.mxu0 0.0
        %427 = vmatprep.subr.mxu0 0.0
        %428 = vmatpush2.msra.mxu0 0.0
        %429 = vmatprep.subr.mxu0 0.0
        %430 = vmatpush2.msra.mxu0 0.0
        %431 = vmatprep.mubr.f32.mxu0 0.0
        %v432 = vand.u32 %v270, 4294901760
        %433 = vmatmul.mubr.f32.gmra.mxu0 %v432
        %v434 = vpop.f32.mrf.mxu0
        %v435 = vadd.f32 %v353, %v434
        %v436 = vpop.f32.mrf.mxu0
        %v437 = vadd.f32 %v355, %v436
        %438 = vdwg.mxu0
        %439 = vmatprep.subr.mxu0 0.0
        %440 = vmatpush1.msra.mxu0 0.0
        %441 = vmatprep.subr.mxu0 0.0
        %442 = vmatpush1.msra.mxu0 0.0
        %443 = vmatprep.subr.mxu0 0.0
        %444 = vmatpush1.msra.mxu0 0.0
        %445 = vmatprep.subr.mxu0 0.0
        %446 = vmatpush1.msra.mxu0 0.0
        %447 = vmatprep.subr.mxu0 0.0
        %448 = vmatpush1.msra.mxu0 0.0
        %449 = vmatprep.subr.mxu0 0.0
        %450 = vmatpush1.msra.mxu0 0.0
        %451 = vmatprep.subr.mxu0 0.0
        %452 = vmatpush1.msra.mxu0 0.0
        %453 = vmatprep.subr.mxu0 0.0
        %454 = vmatpush1.msra.mxu0 0.0
        %455 = vmatprep.subr.mxu0 0.0
        %456 = vmatpush1.msra.mxu0 0.0
        %457 = vmatprep.subr.mxu0 0.0
        %458 = vmatpush1.msra.mxu0 0.0
        %459 = vmatprep.subr.mxu0 0.0
        %460 = vmatpush1.msra.mxu0 0.0
        %461 = vmatprep.subr.mxu0 0.0
        %462 = vmatpush1.msra.mxu0 0.0
        %463 = vmatprep.subr.mxu0 0.0
        %464 = vmatpush1.msra.mxu0 0.0
        %465 = vmatprep.subr.mxu0 0.0
        %466 = vmatpush1.msra.mxu0 0.0
        %467 = vmatprep.subr.mxu0 0.0
        %468 = vmatpush1.msra.mxu0 0.0
        %v469 = vand.u32 %v277, 4294901760
        %v470 = vsub.f32 %v277, %v469
        %471 = vmatprep.subr.mxu0 %v470
        %v472 = vand.u32 %v274, 4294901760
        %v473 = vsub.f32 %v274, %v472
        %474 = vmatpush1.msra.mxu0 %v473
        %475 = vmatprep.subr.mxu0 0.0
        %476 = vmatpush2.msra.mxu0 0.0
        %477 = vmatprep.subr.mxu0 0.0
        %478 = vmatpush2.msra.mxu0 0.0
        %479 = vmatprep.subr.mxu0 0.0
        %480 = vmatpush2.msra.mxu0 0.0
        %481 = vmatprep.subr.mxu0 0.0
        %482 = vmatpush2.msra.mxu0 0.0
        %483 = vmatprep.subr.mxu0 0.0
        %484 = vmatpush2.msra.mxu0 0.0
        %485 = vmatprep.subr.mxu0 0.0
        %486 = vmatpush2.msra.mxu0 0.0
        %487 = vmatprep.subr.mxu0 0.0
        %488 = vmatpush2.msra.mxu0 0.0
        %489 = vmatprep.subr.mxu0 0.0
        %490 = vmatpush2.msra.mxu0 0.0
        %491 = vmatprep.subr.mxu0 0.0
        %492 = vmatpush2.msra.mxu0 0.0
        %493 = vmatprep.subr.mxu0 0.0
        %494 = vmatpush2.msra.mxu0 0.0
        %495 = vmatprep.subr.mxu0 0.0
        %496 = vmatpush2.msra.mxu0 0.0
        %497 = vmatprep.subr.mxu0 0.0
        %498 = vmatpush2.msra.mxu0 0.0
        %499 = vmatprep.subr.mxu0 0.0
        %500 = vmatpush2.msra.mxu0 0.0
        %501 = vmatprep.subr.mxu0 0.0
        %502 = vmatpush2.msra.mxu0 0.0
        %503 = vmatprep.subr.mxu0 0.0
        %504 = vmatpush2.msra.mxu0 0.0
        %505 = vmatprep.subr.mxu0 0.0
        %506 = vmatpush2.msra.mxu0 0.0
        %507 = vmatprep.mubr.f32.mxu0 0.0
        %v508 = vand.u32 %v270, 4294901760
        %v509 = vsub.f32 %v270, %v508
        %510 = vmatmul.mubr.f32.gmra.mxu0 %v509
        %v511 = vpop.f32.mrf.mxu0
        %v512 = vadd.f32 %v435, %v511
        %v513 = vpop.f32.mrf.mxu0
        %v514 = vadd.f32 %v437, %v513
        %515 = vdwg.mxu0
        %516 = vmatprep.subr.mxu0 0.0
        %517 = vmatpush1.msra.mxu0 0.0
        %518 = vmatprep.subr.mxu0 0.0
        %519 = vmatpush1.msra.mxu0 0.0
        %520 = vmatprep.subr.mxu0 0.0
        %521 = vmatpush1.msra.mxu0 0.0
        %522 = vmatprep.subr.mxu0 0.0
        %523 = vmatpush1.msra.mxu0 0.0
        %524 = vmatprep.subr.mxu0 0.0
        %525 = vmatpush1.msra.mxu0 0.0
        %526 = vmatprep.subr.mxu0 0.0
        %527 = vmatpush1.msra.mxu0 0.0
        %528 = vmatprep.subr.mxu0 0.0
        %529 = vmatpush1.msra.mxu0 0.0
        %530 = vmatprep.subr.mxu0 0.0
        %531 = vmatpush1.msra.mxu0 0.0
        %532 = vmatprep.subr.mxu0 0.0
        %533 = vmatpush1.msra.mxu0 0.0
        %534 = vmatprep.subr.mxu0 0.0
        %535 = vmatpush1.msra.mxu0 0.0
        %536 = vmatprep.subr.mxu0 0.0
        %537 = vmatpush1.msra.mxu0 0.0
        %538 = vmatprep.subr.mxu0 0.0
        %539 = vmatpush1.msra.mxu0 0.0
        %540 = vmatprep.subr.mxu0 0.0
        %541 = vmatpush1.msra.mxu0 0.0
        %542 = vmatprep.subr.mxu0 0.0
        %543 = vmatpush1.msra.mxu0 0.0
        %544 = vmatprep.subr.mxu0 0.0
        %545 = vmatpush1.msra.mxu0 0.0
        %v546 = vand.u32 %v277, 4294901760
        %547 = vmatprep.subr.mxu0 %v546
        %v548 = vand.u32 %v274, 4294901760
        %549 = vmatpush1.msra.mxu0 %v548
        %550 = vmatprep.subr.mxu0 0.0
        %551 = vmatpush2.msra.mxu0 0.0
        %552 = vmatprep.subr.mxu0 0.0
        %553 = vmatpush2.msra.mxu0 0.0
        %554 = vmatprep.subr.mxu0 0.0
        %555 = vmatpush2.msra.mxu0 0.0
        %556 = vmatprep.subr.mxu0 0.0
        %557 = vmatpush2.msra.mxu0 0.0
        %558 = vmatprep.subr.mxu0 0.0
        %559 = vmatpush2.msra.mxu0 0.0
        %560 = vmatprep.subr.mxu0 0.0
        %561 = vmatpush2.msra.mxu0 0.0
        %562 = vmatprep.subr.mxu0 0.0
        %563 = vmatpush2.msra.mxu0 0.0
        %564 = vmatprep.subr.mxu0 0.0
        %565 = vmatpush2.msra.mxu0 0.0
        %566 = vmatprep.subr.mxu0 0.0
        %567 = vmatpush2.msra.mxu0 0.0
        %568 = vmatprep.subr.mxu0 0.0
        %569 = vmatpush2.msra.mxu0 0.0
        %570 = vmatprep.subr.mxu0 0.0
        %571 = vmatpush2.msra.mxu0 0.0
        %572 = vmatprep.subr.mxu0 0.0
        %573 = vmatpush2.msra.mxu0 0.0
        %574 = vmatprep.subr.mxu0 0.0
        %575 = vmatpush2.msra.mxu0 0.0
        %576 = vmatprep.subr.mxu0 0.0
        %577 = vmatpush2.msra.mxu0 0.0
        %578 = vmatprep.subr.mxu0 0.0
        %579 = vmatpush2.msra.mxu0 0.0
        %580 = vmatprep.subr.mxu0 0.0
        %581 = vmatpush2.msra.mxu0 0.0
        %582 = vmatprep.mubr.f32.mxu0 0.0
        %v583 = vand.u32 %v270, 4294901760
        %v584 = vsub.f32 %v270, %v583
        %v585 = vand.u32 %v584, 4294901760
        %586 = vmatmul.mubr.f32.gmra.mxu0 %v585
        %v587 = vpop.f32.mrf.mxu0
        %v588 = vadd.f32 %v512, %v587
        %v589 = vpop.f32.mrf.mxu0
        %v590 = vadd.f32 %v514, %v589
        %591 = vdwg.mxu0
        %592 = vmatprep.subr.mxu0 0.0
        %593 = vmatpush1.msra.mxu0 0.0
        %594 = vmatprep.subr.mxu0 0.0
        %595 = vmatpush1.msra.mxu0 0.0
        %596 = vmatprep.subr.mxu0 0.0
        %597 = vmatpush1.msra.mxu0 0.0
        %598 = vmatprep.subr.mxu0 0.0
        %599 = vmatpush1.msra.mxu0 0.0
        %600 = vmatprep.subr.mxu0 0.0
        %601 = vmatpush1.msra.mxu0 0.0
        %602 = vmatprep.subr.mxu0 0.0
        %603 = vmatpush1.msra.mxu0 0.0
        %604 = vmatprep.subr.mxu0 0.0
        %605 = vmatpush1.msra.mxu0 0.0
        %606 = vmatprep.subr.mxu0 0.0
        %607 = vmatpush1.msra.mxu0 0.0
        %608 = vmatprep.subr.mxu0 0.0
        %609 = vmatpush1.msra.mxu0 0.0
        %610 = vmatprep.subr.mxu0 0.0
        %611 = vmatpush1.msra.mxu0 0.0
        %612 = vmatprep.subr.mxu0 0.0
        %613 = vmatpush1.msra.mxu0 0.0
        %614 = vmatprep.subr.mxu0 0.0
        %615 = vmatpush1.msra.mxu0 0.0
        %616 = vmatprep.subr.mxu0 0.0
        %617 = vmatpush1.msra.mxu0 0.0
        %618 = vmatprep.subr.mxu0 0.0
        %619 = vmatpush1.msra.mxu0 0.0
        %620 = vmatprep.subr.mxu0 0.0
        %621 = vmatpush1.msra.mxu0 0.0
        %v622 = vand.u32 %v277, 4294901760
        %v623 = vsub.f32 %v277, %v622
        %v624 = vand.u32 %v623, 4294901760
        %625 = vmatprep.subr.mxu0 %v624
        %v626 = vand.u32 %v274, 4294901760
        %v627 = vsub.f32 %v274, %v626
        %v628 = vand.u32 %v627, 4294901760
        %629 = vmatpush1.msra.mxu0 %v628
        %630 = vmatprep.subr.mxu0 0.0
        %631 = vmatpush2.msra.mxu0 0.0
        %632 = vmatprep.subr.mxu0 0.0
        %633 = vmatpush2.msra.mxu0 0.0
        %634 = vmatprep.subr.mxu0 0.0
        %635 = vmatpush2.msra.mxu0 0.0
        %636 = vmatprep.subr.mxu0 0.0
        %637 = vmatpush2.msra.mxu0 0.0
        %638 = vmatprep.subr.mxu0 0.0
        %639 = vmatpush2.msra.mxu0 0.0
        %640 = vmatprep.subr.mxu0 0.0
        %641 = vmatpush2.msra.mxu0 0.0
        %642 = vmatprep.subr.mxu0 0.0
        %643 = vmatpush2.msra.mxu0 0.0
        %644 = vmatprep.subr.mxu0 0.0
        %645 = vmatpush2.msra.mxu0 0.0
        %646 = vmatprep.subr.mxu0 0.0
        %647 = vmatpush2.msra.mxu0 0.0
        %648 = vmatprep.subr.mxu0 0.0
        %649 = vmatpush2.msra.mxu0 0.0
        %650 = vmatprep.subr.mxu0 0.0
        %651 = vmatpush2.msra.mxu0 0.0
        %652 = vmatprep.subr.mxu0 0.0
        %653 = vmatpush2.msra.mxu0 0.0
        %654 = vmatprep.subr.mxu0 0.0
        %655 = vmatpush2.msra.mxu0 0.0
        %656 = vmatprep.subr.mxu0 0.0
        %657 = vmatpush2.msra.mxu0 0.0
        %658 = vmatprep.subr.mxu0 0.0
        %659 = vmatpush2.msra.mxu0 0.0
        %660 = vmatprep.subr.mxu0 0.0
        %661 = vmatpush2.msra.mxu0 0.0
        %662 = vmatprep.mubr.f32.mxu0 0.0
        %v663 = vand.u32 %v270, 4294901760
        %664 = vmatmul.mubr.f32.gmra.mxu0 %v663
        %v665 = vpop.f32.mrf.mxu0
        %v666 = vadd.f32 %v588, %v665
        %v667 = vpop.f32.mrf.mxu0
        %v668 = vadd.f32 %v590, %v667
        %669 = vdwg.mxu0
        %670 = vmatprep.subr.mxu0 0.0
        %671 = vmatpush1.msra.mxu0 0.0
        %672 = vmatprep.subr.mxu0 0.0
        %673 = vmatpush1.msra.mxu0 0.0
        %674 = vmatprep.subr.mxu0 0.0
        %675 = vmatpush1.msra.mxu0 0.0
        %676 = vmatprep.subr.mxu0 0.0
        %677 = vmatpush1.msra.mxu0 0.0
        %678 = vmatprep.subr.mxu0 0.0
        %679 = vmatpush1.msra.mxu0 0.0
        %680 = vmatprep.subr.mxu0 0.0
        %681 = vmatpush1.msra.mxu0 0.0
        %682 = vmatprep.subr.mxu0 0.0
        %683 = vmatpush1.msra.mxu0 0.0
        %684 = vmatprep.subr.mxu0 0.0
        %685 = vmatpush1.msra.mxu0 0.0
        %686 = vmatprep.subr.mxu0 0.0
        %687 = vmatpush1.msra.mxu0 0.0
        %688 = vmatprep.subr.mxu0 0.0
        %689 = vmatpush1.msra.mxu0 0.0
        %690 = vmatprep.subr.mxu0 0.0
        %691 = vmatpush1.msra.mxu0 0.0
        %692 = vmatprep.subr.mxu0 0.0
        %693 = vmatpush1.msra.mxu0 0.0
        %694 = vmatprep.subr.mxu0 0.0
        %695 = vmatpush1.msra.mxu0 0.0
        %696 = vmatprep.subr.mxu0 0.0
        %697 = vmatpush1.msra.mxu0 0.0
        %698 = vmatprep.subr.mxu0 0.0
        %699 = vmatpush1.msra.mxu0 0.0
        %v700 = vand.u32 %v277, 4294901760
        %701 = vmatprep.subr.mxu0 %v700
        %v702 = vand.u32 %v274, 4294901760
        %703 = vmatpush1.msra.mxu0 %v702
        %704 = vmatprep.subr.mxu0 0.0
        %705 = vmatpush2.msra.mxu0 0.0
        %706 = vmatprep.subr.mxu0 0.0
        %707 = vmatpush2.msra.mxu0 0.0
        %708 = vmatprep.subr.mxu0 0.0
        %709 = vmatpush2.msra.mxu0 0.0
        %710 = vmatprep.subr.mxu0 0.0
        %711 = vmatpush2.msra.mxu0 0.0
        %712 = vmatprep.subr.mxu0 0.0
        %713 = vmatpush2.msra.mxu0 0.0
        %714 = vmatprep.subr.mxu0 0.0
        %715 = vmatpush2.msra.mxu0 0.0
        %716 = vmatprep.subr.mxu0 0.0
        %717 = vmatpush2.msra.mxu0 0.0
        %718 = vmatprep.subr.mxu0 0.0
        %719 = vmatpush2.msra.mxu0 0.0
        %720 = vmatprep.subr.mxu0 0.0
        %721 = vmatpush2.msra.mxu0 0.0
        %722 = vmatprep.subr.mxu0 0.0
        %723 = vmatpush2.msra.mxu0 0.0
        %724 = vmatprep.subr.mxu0 0.0
        %725 = vmatpush2.msra.mxu0 0.0
        %726 = vmatprep.subr.mxu0 0.0
        %727 = vmatpush2.msra.mxu0 0.0
        %728 = vmatprep.subr.mxu0 0.0
        %729 = vmatpush2.msra.mxu0 0.0
        %730 = vmatprep.subr.mxu0 0.0
        %731 = vmatpush2.msra.mxu0 0.0
        %732 = vmatprep.subr.mxu0 0.0
        %733 = vmatpush2.msra.mxu0 0.0
        %734 = vmatprep.subr.mxu0 0.0
        %735 = vmatpush2.msra.mxu0 0.0
        %736 = vmatprep.mubr.f32.mxu0 0.0
        %v737 = vand.u32 %v270, 4294901760
        %738 = vmatmul.mubr.f32.gmra.mxu0 %v737
        %v739 = vpop.f32.mrf.mxu0
        %v740 = vadd.f32 %v666, %v739
        %v741 = vpop.f32.mrf.mxu0
        %v742 = vadd.f32 %v668, %v741
        %743 = vdwg.mxu0
        %v745 = vsel %vm268, %v249, 0
        %v748 = vsel %vm272, %v247, 0
        %v751 = vsel %vm272, %v248, 0
        %753 = vmatprep.subr.mxu0 0.0
        %754 = vmatpush1.msra.mxu0 0.0
        %755 = vmatprep.subr.mxu0 0.0
        %756 = vmatpush1.msra.mxu0 0.0
        %757 = vmatprep.subr.mxu0 0.0
        %758 = vmatpush1.msra.mxu0 0.0
        %759 = vmatprep.subr.mxu0 0.0
        %760 = vmatpush1.msra.mxu0 0.0
        %761 = vmatprep.subr.mxu0 0.0
        %762 = vmatpush1.msra.mxu0 0.0
        %763 = vmatprep.subr.mxu0 0.0
        %764 = vmatpush1.msra.mxu0 0.0
        %765 = vmatprep.subr.mxu0 0.0
        %766 = vmatpush1.msra.mxu0 0.0
        %767 = vmatprep.subr.mxu0 0.0
        %768 = vmatpush1.msra.mxu0 0.0
        %769 = vmatprep.subr.mxu0 0.0
        %770 = vmatpush1.msra.mxu0 0.0
        %771 = vmatprep.subr.mxu0 0.0
        %772 = vmatpush1.msra.mxu0 0.0
        %773 = vmatprep.subr.mxu0 0.0
        %774 = vmatpush1.msra.mxu0 0.0
        %775 = vmatprep.subr.mxu0 0.0
        %776 = vmatpush1.msra.mxu0 0.0
        %777 = vmatprep.subr.mxu0 0.0
        %778 = vmatpush1.msra.mxu0 0.0
        %779 = vmatprep.subr.mxu0 0.0
        %780 = vmatpush1.msra.mxu0 0.0
        %781 = vmatprep.subr.mxu0 0.0
        %782 = vmatpush1.msra.mxu0 0.0
        %v783 = vand.u32 %v751, 4294901760
        %784 = vmatprep.subr.mxu0 %v783
        %v785 = vand.u32 %v748, 4294901760
        %786 = vmatpush1.msra.mxu0 %v785
        %787 = vmatprep.subr.mxu0 0.0
        %788 = vmatpush2.msra.mxu0 0.0
        %789 = vmatprep.subr.mxu0 0.0
        %790 = vmatpush2.msra.mxu0 0.0
        %791 = vmatprep.subr.mxu0 0.0
        %792 = vmatpush2.msra.mxu0 0.0
        %793 = vmatprep.subr.mxu0 0.0
        %794 = vmatpush2.msra.mxu0 0.0
        %795 = vmatprep.subr.mxu0 0.0
        %796 = vmatpush2.msra.mxu0 0.0
        %797 = vmatprep.subr.mxu0 0.0
        %798 = vmatpush2.msra.mxu0 0.0
        %799 = vmatprep.subr.mxu0 0.0
        %800 = vmatpush2.msra.mxu0 0.0
        %801 = vmatprep.subr.mxu0 0.0
        %802 = vmatpush2.msra.mxu0 0.0
        %803 = vmatprep.subr.mxu0 0.0
        %804 = vmatpush2.msra.mxu0 0.0
        %805 = vmatprep.subr.mxu0 0.0
        %806 = vmatpush2.msra.mxu0 0.0
        %807 = vmatprep.subr.mxu0 0.0
        %808 = vmatpush2.msra.mxu0 0.0
        %809 = vmatprep.subr.mxu0 0.0
        %810 = vmatpush2.msra.mxu0 0.0
        %811 = vmatprep.subr.mxu0 0.0
        %812 = vmatpush2.msra.mxu0 0.0
        %813 = vmatprep.subr.mxu0 0.0
        %814 = vmatpush2.msra.mxu0 0.0
        %815 = vmatprep.subr.mxu0 0.0
        %816 = vmatpush2.msra.mxu0 0.0
        %817 = vmatprep.subr.mxu0 0.0
        %818 = vmatpush2.msra.mxu0 0.0
        %819 = vmatprep.mubr.f32.mxu0 0.0
        %v820 = vand.u32 %v745, 4294901760
        %v821 = vsub.f32 %v745, %v820
        %v822 = vand.u32 %v821, 4294901760
        %v823 = vsub.f32 %v821, %v822
        %v824 = vand.u32 %v823, 4294901760
        %825 = vmatmul.mubr.f32.gmra.mxu0 %v824
        %v826 = vpop.f32.mrf.mxu0
        %v827 = vadd.f32 %v740, %v826
        %v828 = vpop.f32.mrf.mxu0
        %v829 = vadd.f32 %v742, %v828
        %830 = vdwg.mxu0
        %831 = vmatprep.subr.mxu0 0.0
        %832 = vmatpush1.msra.mxu0 0.0
        %833 = vmatprep.subr.mxu0 0.0
        %834 = vmatpush1.msra.mxu0 0.0
        %835 = vmatprep.subr.mxu0 0.0
        %836 = vmatpush1.msra.mxu0 0.0
        %837 = vmatprep.subr.mxu0 0.0
        %838 = vmatpush1.msra.mxu0 0.0
        %839 = vmatprep.subr.mxu0 0.0
        %840 = vmatpush1.msra.mxu0 0.0
        %841 = vmatprep.subr.mxu0 0.0
        %842 = vmatpush1.msra.mxu0 0.0
        %843 = vmatprep.subr.mxu0 0.0
        %844 = vmatpush1.msra.mxu0 0.0
        %845 = vmatprep.subr.mxu0 0.0
        %846 = vmatpush1.msra.mxu0 0.0
        %847 = vmatprep.subr.mxu0 0.0
        %848 = vmatpush1.msra.mxu0 0.0
        %849 = vmatprep.subr.mxu0 0.0
        %850 = vmatpush1.msra.mxu0 0.0
        %851 = vmatprep.subr.mxu0 0.0
        %852 = vmatpush1.msra.mxu0 0.0
        %853 = vmatprep.subr.mxu0 0.0
        %854 = vmatpush1.msra.mxu0 0.0
        %855 = vmatprep.subr.mxu0 0.0
        %856 = vmatpush1.msra.mxu0 0.0
        %857 = vmatprep.subr.mxu0 0.0
        %858 = vmatpush1.msra.mxu0 0.0
        %859 = vmatprep.subr.mxu0 0.0
        %860 = vmatpush1.msra.mxu0 0.0
        %v861 = vand.u32 %v751, 4294901760
        %v862 = vsub.f32 %v751, %v861
        %v863 = vand.u32 %v862, 4294901760
        %v864 = vsub.f32 %v862, %v863
        %v865 = vand.u32 %v864, 4294901760
        %866 = vmatprep.subr.mxu0 %v865
        %v867 = vand.u32 %v748, 4294901760
        %v868 = vsub.f32 %v748, %v867
        %v869 = vand.u32 %v868, 4294901760
        %v870 = vsub.f32 %v868, %v869
        %v871 = vand.u32 %v870, 4294901760
        %872 = vmatpush1.msra.mxu0 %v871
        %873 = vmatprep.subr.mxu0 0.0
        %874 = vmatpush2.msra.mxu0 0.0
        %875 = vmatprep.subr.mxu0 0.0
        %876 = vmatpush2.msra.mxu0 0.0
        %877 = vmatprep.subr.mxu0 0.0
        %878 = vmatpush2.msra.mxu0 0.0
        %879 = vmatprep.subr.mxu0 0.0
        %880 = vmatpush2.msra.mxu0 0.0
        %881 = vmatprep.subr.mxu0 0.0
        %882 = vmatpush2.msra.mxu0 0.0
        %883 = vmatprep.subr.mxu0 0.0
        %884 = vmatpush2.msra.mxu0 0.0
        %885 = vmatprep.subr.mxu0 0.0
        %886 = vmatpush2.msra.mxu0 0.0
        %887 = vmatprep.subr.mxu0 0.0
        %888 = vmatpush2.msra.mxu0 0.0
        %889 = vmatprep.subr.mxu0 0.0
        %890 = vmatpush2.msra.mxu0 0.0
        %891 = vmatprep.subr.mxu0 0.0
        %892 = vmatpush2.msra.mxu0 0.0
        %893 = vmatprep.subr.mxu0 0.0
        %894 = vmatpush2.msra.mxu0 0.0
        %895 = vmatprep.subr.mxu0 0.0
        %896 = vmatpush2.msra.mxu0 0.0
        %897 = vmatprep.subr.mxu0 0.0
        %898 = vmatpush2.msra.mxu0 0.0
        %899 = vmatprep.subr.mxu0 0.0
        %900 = vmatpush2.msra.mxu0 0.0
        %901 = vmatprep.subr.mxu0 0.0
        %902 = vmatpush2.msra.mxu0 0.0
        %903 = vmatprep.subr.mxu0 0.0
        %904 = vmatpush2.msra.mxu0 0.0
        %905 = vmatprep.mubr.f32.mxu0 0.0
        %v906 = vand.u32 %v745, 4294901760
        %907 = vmatmul.mubr.f32.gmra.mxu0 %v906
        %v908 = vpop.f32.mrf.mxu0
        %v909 = vadd.f32 %v827, %v908
        %v910 = vpop.f32.mrf.mxu0
        %v911 = vadd.f32 %v829, %v910
        %912 = vdwg.mxu0
        %913 = vmatprep.subr.mxu0 0.0
        %914 = vmatpush1.msra.mxu0 0.0
        %915 = vmatprep.subr.mxu0 0.0
        %916 = vmatpush1.msra.mxu0 0.0
        %917 = vmatprep.subr.mxu0 0.0
        %918 = vmatpush1.msra.mxu0 0.0
        %919 = vmatprep.subr.mxu0 0.0
        %920 = vmatpush1.msra.mxu0 0.0
        %921 = vmatprep.subr.mxu0 0.0
        %922 = vmatpush1.msra.mxu0 0.0
        %923 = vmatprep.subr.mxu0 0.0
        %924 = vmatpush1.msra.mxu0 0.0
        %925 = vmatprep.subr.mxu0 0.0
        %926 = vmatpush1.msra.mxu0 0.0
        %927 = vmatprep.subr.mxu0 0.0
        %928 = vmatpush1.msra.mxu0 0.0
        %929 = vmatprep.subr.mxu0 0.0
        %930 = vmatpush1.msra.mxu0 0.0
        %931 = vmatprep.subr.mxu0 0.0
        %932 = vmatpush1.msra.mxu0 0.0
        %933 = vmatprep.subr.mxu0 0.0
        %934 = vmatpush1.msra.mxu0 0.0
        %935 = vmatprep.subr.mxu0 0.0
        %936 = vmatpush1.msra.mxu0 0.0
        %937 = vmatprep.subr.mxu0 0.0
        %938 = vmatpush1.msra.mxu0 0.0
        %939 = vmatprep.subr.mxu0 0.0
        %940 = vmatpush1.msra.mxu0 0.0
        %941 = vmatprep.subr.mxu0 0.0
        %942 = vmatpush1.msra.mxu0 0.0
        %v943 = vand.u32 %v751, 4294901760
        %v944 = vsub.f32 %v751, %v943
        %945 = vmatprep.subr.mxu0 %v944
        %v946 = vand.u32 %v748, 4294901760
        %v947 = vsub.f32 %v748, %v946
        %948 = vmatpush1.msra.mxu0 %v947
        %949 = vmatprep.subr.mxu0 0.0
        %950 = vmatpush2.msra.mxu0 0.0
        %951 = vmatprep.subr.mxu0 0.0
        %952 = vmatpush2.msra.mxu0 0.0
        %953 = vmatprep.subr.mxu0 0.0
        %954 = vmatpush2.msra.mxu0 0.0
        %955 = vmatprep.subr.mxu0 0.0
        %956 = vmatpush2.msra.mxu0 0.0
        %957 = vmatprep.subr.mxu0 0.0
        %958 = vmatpush2.msra.mxu0 0.0
        %959 = vmatprep.subr.mxu0 0.0
        %960 = vmatpush2.msra.mxu0 0.0
        %961 = vmatprep.subr.mxu0 0.0
        %962 = vmatpush2.msra.mxu0 0.0
        %963 = vmatprep.subr.mxu0 0.0
        %964 = vmatpush2.msra.mxu0 0.0
        %965 = vmatprep.subr.mxu0 0.0
        %966 = vmatpush2.msra.mxu0 0.0
        %967 = vmatprep.subr.mxu0 0.0
        %968 = vmatpush2.msra.mxu0 0.0
        %969 = vmatprep.subr.mxu0 0.0
        %970 = vmatpush2.msra.mxu0 0.0
        %971 = vmatprep.subr.mxu0 0.0
        %972 = vmatpush2.msra.mxu0 0.0
        %973 = vmatprep.subr.mxu0 0.0
        %974 = vmatpush2.msra.mxu0 0.0
        %975 = vmatprep.subr.mxu0 0.0
        %976 = vmatpush2.msra.mxu0 0.0
        %977 = vmatprep.subr.mxu0 0.0
        %978 = vmatpush2.msra.mxu0 0.0
        %979 = vmatprep.subr.mxu0 0.0
        %980 = vmatpush2.msra.mxu0 0.0
        %981 = vmatprep.mubr.f32.mxu0 0.0
        %v982 = vand.u32 %v745, 4294901760
        %v983 = vsub.f32 %v745, %v982
        %984 = vmatmul.mubr.f32.gmra.mxu0 %v983
        %v985 = vpop.f32.mrf.mxu0
        %v986 = vadd.f32 %v909, %v985
        %v987 = vpop.f32.mrf.mxu0
        %v988 = vadd.f32 %v911, %v987
        %989 = vdwg.mxu0
        %990 = vmatprep.subr.mxu0 0.0
        %991 = vmatpush1.msra.mxu0 0.0
        %992 = vmatprep.subr.mxu0 0.0
        %993 = vmatpush1.msra.mxu0 0.0
        %994 = vmatprep.subr.mxu0 0.0
        %995 = vmatpush1.msra.mxu0 0.0
        %996 = vmatprep.subr.mxu0 0.0
        %997 = vmatpush1.msra.mxu0 0.0
        %998 = vmatprep.subr.mxu0 0.0
        %999 = vmatpush1.msra.mxu0 0.0
        %1000 = vmatprep.subr.mxu0 0.0
        %1001 = vmatpush1.msra.mxu0 0.0
        %1002 = vmatprep.subr.mxu0 0.0
        %1003 = vmatpush1.msra.mxu0 0.0
        %1004 = vmatprep.subr.mxu0 0.0
        %1005 = vmatpush1.msra.mxu0 0.0
        %1006 = vmatprep.subr.mxu0 0.0
        %1007 = vmatpush1.msra.mxu0 0.0
        %1008 = vmatprep.subr.mxu0 0.0
        %1009 = vmatpush1.msra.mxu0 0.0
        %1010 = vmatprep.subr.mxu0 0.0
        %1011 = vmatpush1.msra.mxu0 0.0
        %1012 = vmatprep.subr.mxu0 0.0
        %1013 = vmatpush1.msra.mxu0 0.0
        %1014 = vmatprep.subr.mxu0 0.0
        %1015 = vmatpush1.msra.mxu0 0.0
        %1016 = vmatprep.subr.mxu0 0.0
        %1017 = vmatpush1.msra.mxu0 0.0
        %1018 = vmatprep.subr.mxu0 0.0
        %1019 = vmatpush1.msra.mxu0 0.0
        %v1020 = vand.u32 %v751, 4294901760
        %1021 = vmatprep.subr.mxu0 %v1020
        %v1022 = vand.u32 %v748, 4294901760
        %1023 = vmatpush1.msra.mxu0 %v1022
        %1024 = vmatprep.subr.mxu0 0.0
        %1025 = vmatpush2.msra.mxu0 0.0
        %1026 = vmatprep.subr.mxu0 0.0
        %1027 = vmatpush2.msra.mxu0 0.0
        %1028 = vmatprep.subr.mxu0 0.0
        %1029 = vmatpush2.msra.mxu0 0.0
        %1030 = vmatprep.subr.mxu0 0.0
        %1031 = vmatpush2.msra.mxu0 0.0
        %1032 = vmatprep.subr.mxu0 0.0
        %1033 = vmatpush2.msra.mxu0 0.0
        %1034 = vmatprep.subr.mxu0 0.0
        %1035 = vmatpush2.msra.mxu0 0.0
        %1036 = vmatprep.subr.mxu0 0.0
        %1037 = vmatpush2.msra.mxu0 0.0
        %1038 = vmatprep.subr.mxu0 0.0
        %1039 = vmatpush2.msra.mxu0 0.0
        %1040 = vmatprep.subr.mxu0 0.0
        %1041 = vmatpush2.msra.mxu0 0.0
        %1042 = vmatprep.subr.mxu0 0.0
        %1043 = vmatpush2.msra.mxu0 0.0
        %1044 = vmatprep.subr.mxu0 0.0
        %1045 = vmatpush2.msra.mxu0 0.0
        %1046 = vmatprep.subr.mxu0 0.0
        %1047 = vmatpush2.msra.mxu0 0.0
        %1048 = vmatprep.subr.mxu0 0.0
        %1049 = vmatpush2.msra.mxu0 0.0
        %1050 = vmatprep.subr.mxu0 0.0
        %1051 = vmatpush2.msra.mxu0 0.0
        %1052 = vmatprep.subr.mxu0 0.0
        %1053 = vmatpush2.msra.mxu0 0.0
        %1054 = vmatprep.subr.mxu0 0.0
        %1055 = vmatpush2.msra.mxu0 0.0
        %1056 = vmatprep.mubr.f32.mxu0 0.0
        %v1057 = vand.u32 %v745, 4294901760
        %v1058 = vsub.f32 %v745, %v1057
        %v1059 = vand.u32 %v1058, 4294901760
        %1060 = vmatmul.mubr.f32.gmra.mxu0 %v1059
        %v1061 = vpop.f32.mrf.mxu0
        %v1062 = vadd.f32 %v986, %v1061
        %v1063 = vpop.f32.mrf.mxu0
        %v1064 = vadd.f32 %v988, %v1063
        %1065 = vdwg.mxu0
        %1066 = vmatprep.subr.mxu0 0.0
        %1067 = vmatpush1.msra.mxu0 0.0
        %1068 = vmatprep.subr.mxu0 0.0
        %1069 = vmatpush1.msra.mxu0 0.0
        %1070 = vmatprep.subr.mxu0 0.0
        %1071 = vmatpush1.msra.mxu0 0.0
        %1072 = vmatprep.subr.mxu0 0.0
        %1073 = vmatpush1.msra.mxu0 0.0
        %1074 = vmatprep.subr.mxu0 0.0
        %1075 = vmatpush1.msra.mxu0 0.0
        %1076 = vmatprep.subr.mxu0 0.0
        %1077 = vmatpush1.msra.mxu0 0.0
        %1078 = vmatprep.subr.mxu0 0.0
        %1079 = vmatpush1.msra.mxu0 0.0
        %1080 = vmatprep.subr.mxu0 0.0
        %1081 = vmatpush1.msra.mxu0 0.0
        %1082 = vmatprep.subr.mxu0 0.0
        %1083 = vmatpush1.msra.mxu0 0.0
        %1084 = vmatprep.subr.mxu0 0.0
        %1085 = vmatpush1.msra.mxu0 0.0
        %1086 = vmatprep.subr.mxu0 0.0
        %1087 = vmatpush1.msra.mxu0 0.0
        %1088 = vmatprep.subr.mxu0 0.0
        %1089 = vmatpush1.msra.mxu0 0.0
        %1090 = vmatprep.subr.mxu0 0.0
        %1091 = vmatpush1.msra.mxu0 0.0
        %1092 = vmatprep.subr.mxu0 0.0
        %1093 = vmatpush1.msra.mxu0 0.0
        %1094 = vmatprep.subr.mxu0 0.0
        %1095 = vmatpush1.msra.mxu0 0.0
        %v1096 = vand.u32 %v751, 4294901760
        %v1097 = vsub.f32 %v751, %v1096
        %v1098 = vand.u32 %v1097, 4294901760
        %1099 = vmatprep.subr.mxu0 %v1098
        %v1100 = vand.u32 %v748, 4294901760
        %v1101 = vsub.f32 %v748, %v1100
        %v1102 = vand.u32 %v1101, 4294901760
        %1103 = vmatpush1.msra.mxu0 %v1102
        %1104 = vmatprep.subr.mxu0 0.0
        %1105 = vmatpush2.msra.mxu0 0.0
        %1106 = vmatprep.subr.mxu0 0.0
        %1107 = vmatpush2.msra.mxu0 0.0
        %1108 = vmatprep.subr.mxu0 0.0
        %1109 = vmatpush2.msra.mxu0 0.0
        %1110 = vmatprep.subr.mxu0 0.0
        %1111 = vmatpush2.msra.mxu0 0.0
        %1112 = vmatprep.subr.mxu0 0.0
        %1113 = vmatpush2.msra.mxu0 0.0
        %1114 = vmatprep.subr.mxu0 0.0
        %1115 = vmatpush2.msra.mxu0 0.0
        %1116 = vmatprep.subr.mxu0 0.0
        %1117 = vmatpush2.msra.mxu0 0.0
        %1118 = vmatprep.subr.mxu0 0.0
        %1119 = vmatpush2.msra.mxu0 0.0
        %1120 = vmatprep.subr.mxu0 0.0
        %1121 = vmatpush2.msra.mxu0 0.0
        %1122 = vmatprep.subr.mxu0 0.0
        %1123 = vmatpush2.msra.mxu0 0.0
        %1124 = vmatprep.subr.mxu0 0.0
        %1125 = vmatpush2.msra.mxu0 0.0
        %1126 = vmatprep.subr.mxu0 0.0
        %1127 = vmatpush2.msra.mxu0 0.0
        %1128 = vmatprep.subr.mxu0 0.0
        %1129 = vmatpush2.msra.mxu0 0.0
        %1130 = vmatprep.subr.mxu0 0.0
        %1131 = vmatpush2.msra.mxu0 0.0
        %1132 = vmatprep.subr.mxu0 0.0
        %1133 = vmatpush2.msra.mxu0 0.0
        %1134 = vmatprep.subr.mxu0 0.0
        %1135 = vmatpush2.msra.mxu0 0.0
        %1136 = vmatprep.mubr.f32.mxu0 0.0
        %v1137 = vand.u32 %v745, 4294901760
        %1138 = vmatmul.mubr.f32.gmra.mxu0 %v1137
        %v1139 = vpop.f32.mrf.mxu0
        %v1140 = vadd.f32 %v1062, %v1139
        %v1141 = vpop.f32.mrf.mxu0
        %v1142 = vadd.f32 %v1064, %v1141
        %1143 = vdwg.mxu0
        %1144 = vmatprep.subr.mxu0 0.0
        %1145 = vmatpush1.msra.mxu0 0.0
        %1146 = vmatprep.subr.mxu0 0.0
        %1147 = vmatpush1.msra.mxu0 0.0
        %1148 = vmatprep.subr.mxu0 0.0
        %1149 = vmatpush1.msra.mxu0 0.0
        %1150 = vmatprep.subr.mxu0 0.0
        %1151 = vmatpush1.msra.mxu0 0.0
        %1152 = vmatprep.subr.mxu0 0.0
        %1153 = vmatpush1.msra.mxu0 0.0
        %1154 = vmatprep.subr.mxu0 0.0
        %1155 = vmatpush1.msra.mxu0 0.0
        %1156 = vmatprep.subr.mxu0 0.0
        %1157 = vmatpush1.msra.mxu0 0.0
        %1158 = vmatprep.subr.mxu0 0.0
        %1159 = vmatpush1.msra.mxu0 0.0
        %1160 = vmatprep.subr.mxu0 0.0
        %1161 = vmatpush1.msra.mxu0 0.0
        %1162 = vmatprep.subr.mxu0 0.0
        %1163 = vmatpush1.msra.mxu0 0.0
        %1164 = vmatprep.subr.mxu0 0.0
        %1165 = vmatpush1.msra.mxu0 0.0
        %1166 = vmatprep.subr.mxu0 0.0
        %1167 = vmatpush1.msra.mxu0 0.0
        %1168 = vmatprep.subr.mxu0 0.0
        %1169 = vmatpush1.msra.mxu0 0.0
        %1170 = vmatprep.subr.mxu0 0.0
        %1171 = vmatpush1.msra.mxu0 0.0
        %1172 = vmatprep.subr.mxu0 0.0
        %1173 = vmatpush1.msra.mxu0 0.0
        %v1174 = vand.u32 %v751, 4294901760
        %1175 = vmatprep.subr.mxu0 %v1174
        %v1176 = vand.u32 %v748, 4294901760
        %1177 = vmatpush1.msra.mxu0 %v1176
        %1178 = vmatprep.subr.mxu0 0.0
        %1179 = vmatpush2.msra.mxu0 0.0
        %1180 = vmatprep.subr.mxu0 0.0
        %1181 = vmatpush2.msra.mxu0 0.0
        %1182 = vmatprep.subr.mxu0 0.0
        %1183 = vmatpush2.msra.mxu0 0.0
        %1184 = vmatprep.subr.mxu0 0.0
        %1185 = vmatpush2.msra.mxu0 0.0
        %1186 = vmatprep.subr.mxu0 0.0
        %1187 = vmatpush2.msra.mxu0 0.0
        %1188 = vmatprep.subr.mxu0 0.0
        %1189 = vmatpush2.msra.mxu0 0.0
        %1190 = vmatprep.subr.mxu0 0.0
        %1191 = vmatpush2.msra.mxu0 0.0
        %1192 = vmatprep.subr.mxu0 0.0
        %1193 = vmatpush2.msra.mxu0 0.0
        %1194 = vmatprep.subr.mxu0 0.0
        %1195 = vmatpush2.msra.mxu0 0.0
        %1196 = vmatprep.subr.mxu0 0.0
        %1197 = vmatpush2.msra.mxu0 0.0
        %1198 = vmatprep.subr.mxu0 0.0
        %1199 = vmatpush2.msra.mxu0 0.0
        %1200 = vmatprep.subr.mxu0 0.0
        %1201 = vmatpush2.msra.mxu0 0.0
        %1202 = vmatprep.subr.mxu0 0.0
        %1203 = vmatpush2.msra.mxu0 0.0
        %1204 = vmatprep.subr.mxu0 0.0
        %1205 = vmatpush2.msra.mxu0 0.0
        %1206 = vmatprep.subr.mxu0 0.0
        %1207 = vmatpush2.msra.mxu0 0.0
        %1208 = vmatprep.subr.mxu0 0.0
        %1209 = vmatpush2.msra.mxu0 0.0
        %1210 = vmatprep.mubr.f32.mxu0 0.0
        %v1211 = vand.u32 %v745, 4294901760
        %1212 = vmatmul.mubr.f32.gmra.mxu0 %v1211
        %v1213 = vpop.f32.mrf.mxu0
        %v1214 = vadd.f32 %v1140, %v1213
        %v1215 = vpop.f32.mrf.mxu0
        %v1216 = vadd.f32 %v1142, %v1215
        %1217 = vdwg.mxu0
        %1218 = vrot.lane.b32.xlu0 %v230, 15
        %v1219 = vpop.permute.xlu0 %1218
        %1221 = vrot.lane.b32.xlu0 %v213, 15
        %v1222 = vpop.permute.xlu0 %1221
        %vm1223 = vcmask 121856
        %v1224 = vsel %vm1223, %v1222, %v1219
        %v1227 = vsel %vm1223, %v1219, %v1222
        %vm1228 = vmand %vm221, %vm227
        %vm1229 = vmand %vm222, %vm228
        %v1230 = vsel %vm1228, 1, 0
        %v1231 = vsel %vm1229, 1, 0
        %vm1232 = vcmp.eq.s32.totalorder %v1230, 1
        %vm1233 = vcmp.eq.s32.totalorder %v1231, 1
        %v1234 = vsel %vm1232, %v1227, 0.0
        %v1235 = vsel %vm1233, %v1224, 0.0
        %s1236 = scalar_lea.vmem %s1, 16
        %v1237 = vld [vmem:[%s1236] sm:$0xff]
        %v1239 = vsel %vm268, %v1237, 0
        %v1242 = vsel %vm272, %v1234, 0
        %v1245 = vsel %vm272, %v1235, 0
        %1247 = vmatprep.subr.mxu0 0.0
        %1248 = vmatpush1.msra.mxu0 0.0
        %1249 = vmatprep.subr.mxu0 0.0
        %1250 = vmatpush1.msra.mxu0 0.0
        %1251 = vmatprep.subr.mxu0 0.0
        %1252 = vmatpush1.msra.mxu0 0.0
        %1253 = vmatprep.subr.mxu0 0.0
        %1254 = vmatpush1.msra.mxu0 0.0
        %1255 = vmatprep.subr.mxu0 0.0
        %1256 = vmatpush1.msra.mxu0 0.0
        %1257 = vmatprep.subr.mxu0 0.0
        %1258 = vmatpush1.msra.mxu0 0.0
        %1259 = vmatprep.subr.mxu0 0.0
        %1260 = vmatpush1.msra.mxu0 0.0
        %1261 = vmatprep.subr.mxu0 0.0
        %1262 = vmatpush1.msra.mxu0 0.0
        %1263 = vmatprep.subr.mxu0 0.0
        %1264 = vmatpush1.msra.mxu0 0.0
        %1265 = vmatprep.subr.mxu0 0.0
        %1266 = vmatpush1.msra.mxu0 0.0
        %1267 = vmatprep.subr.mxu0 0.0
        %1268 = vmatpush1.msra.mxu0 0.0
        %1269 = vmatprep.subr.mxu0 0.0
        %1270 = vmatpush1.msra.mxu0 0.0
        %1271 = vmatprep.subr.mxu0 0.0
        %1272 = vmatpush1.msra.mxu0 0.0
        %1273 = vmatprep.subr.mxu0 0.0
        %1274 = vmatpush1.msra.mxu0 0.0
        %1275 = vmatprep.subr.mxu0 0.0
        %1276 = vmatpush1.msra.mxu0 0.0
        %v1277 = vand.u32 %v1245, 4294901760
        %1278 = vmatprep.subr.mxu0 %v1277
        %v1279 = vand.u32 %v1242, 4294901760
        %1280 = vmatpush1.msra.mxu0 %v1279
        %1281 = vmatprep.subr.mxu0 0.0
        %1282 = vmatpush2.msra.mxu0 0.0
        %1283 = vmatprep.subr.mxu0 0.0
        %1284 = vmatpush2.msra.mxu0 0.0
        %1285 = vmatprep.subr.mxu0 0.0
        %1286 = vmatpush2.msra.mxu0 0.0
        %1287 = vmatprep.subr.mxu0 0.0
        %1288 = vmatpush2.msra.mxu0 0.0
        %1289 = vmatprep.subr.mxu0 0.0
        %1290 = vmatpush2.msra.mxu0 0.0
        %1291 = vmatprep.subr.mxu0 0.0
        %1292 = vmatpush2.msra.mxu0 0.0
        %1293 = vmatprep.subr.mxu0 0.0
        %1294 = vmatpush2.msra.mxu0 0.0
        %1295 = vmatprep.subr.mxu0 0.0
        %1296 = vmatpush2.msra.mxu0 0.0
        %1297 = vmatprep.subr.mxu0 0.0
        %1298 = vmatpush2.msra.mxu0 0.0
        %1299 = vmatprep.subr.mxu0 0.0
        %1300 = vmatpush2.msra.mxu0 0.0
        %1301 = vmatprep.subr.mxu0 0.0
        %1302 = vmatpush2.msra.mxu0 0.0
        %1303 = vmatprep.subr.mxu0 0.0
        %1304 = vmatpush2.msra.mxu0 0.0
        %1305 = vmatprep.subr.mxu0 0.0
        %1306 = vmatpush2.msra.mxu0 0.0
        %1307 = vmatprep.subr.mxu0 0.0
        %1308 = vmatpush2.msra.mxu0 0.0
        %1309 = vmatprep.subr.mxu0 0.0
        %1310 = vmatpush2.msra.mxu0 0.0
        %1311 = vmatprep.subr.mxu0 0.0
        %1312 = vmatpush2.msra.mxu0 0.0
        %1313 = vmatprep.mubr.f32.mxu0 0.0
        %v1314 = vand.u32 %v1239, 4294901760
        %v1315 = vsub.f32 %v1239, %v1314
        %v1316 = vand.u32 %v1315, 4294901760
        %v1317 = vsub.f32 %v1315, %v1316
        %v1318 = vand.u32 %v1317, 4294901760
        %1319 = vmatmul.mubr.f32.gmra.mxu0 %v1318
        %v1320 = vpop.f32.mrf.mxu0
        %v1321 = vadd.f32 0.0, %v1320
        %v1322 = vpop.f32.mrf.mxu0
        %v1323 = vadd.f32 0.0, %v1322
        %1324 = vdwg.mxu0
        %1325 = vmatprep.subr.mxu0 0.0
        %1326 = vmatpush1.msra.mxu0 0.0
        %1327 = vmatprep.subr.mxu0 0.0
        %1328 = vmatpush1.msra.mxu0 0.0
        %1329 = vmatprep.subr.mxu0 0.0
        %1330 = vmatpush1.msra.mxu0 0.0
        %1331 = vmatprep.subr.mxu0 0.0
        %1332 = vmatpush1.msra.mxu0 0.0
        %1333 = vmatprep.subr.mxu0 0.0
        %1334 = vmatpush1.msra.mxu0 0.0
        %1335 = vmatprep.subr.mxu0 0.0
        %1336 = vmatpush1.msra.mxu0 0.0
        %1337 = vmatprep.subr.mxu0 0.0
        %1338 = vmatpush1.msra.mxu0 0.0
        %1339 = vmatprep.subr.mxu0 0.0
        %1340 = vmatpush1.msra.mxu0 0.0
        %1341 = vmatprep.subr.mxu0 0.0
        %1342 = vmatpush1.msra.mxu0 0.0
        %1343 = vmatprep.subr.mxu0 0.0
        %1344 = vmatpush1.msra.mxu0 0.0
        %1345 = vmatprep.subr.mxu0 0.0
        %1346 = vmatpush1.msra.mxu0 0.0
        %1347 = vmatprep.subr.mxu0 0.0
        %1348 = vmatpush1.msra.mxu0 0.0
        %1349 = vmatprep.subr.mxu0 0.0
        %1350 = vmatpush1.msra.mxu0 0.0
        %1351 = vmatprep.subr.mxu0 0.0
        %1352 = vmatpush1.msra.mxu0 0.0
        %1353 = vmatprep.subr.mxu0 0.0
        %1354 = vmatpush1.msra.mxu0 0.0
        %v1355 = vand.u32 %v1245, 4294901760
        %v1356 = vsub.f32 %v1245, %v1355
        %v1357 = vand.u32 %v1356, 4294901760
        %v1358 = vsub.f32 %v1356, %v1357
        %v1359 = vand.u32 %v1358, 4294901760
        %1360 = vmatprep.subr.mxu0 %v1359
        %v1361 = vand.u32 %v1242, 4294901760
        %v1362 = vsub.f32 %v1242, %v1361
        %v1363 = vand.u32 %v1362, 4294901760
        %v1364 = vsub.f32 %v1362, %v1363
        %v1365 = vand.u32 %v1364, 4294901760
        %1366 = vmatpush1.msra.mxu0 %v1365
        %1367 = vmatprep.subr.mxu0 0.0
        %1368 = vmatpush2.msra.mxu0 0.0
        %1369 = vmatprep.subr.mxu0 0.0
        %1370 = vmatpush2.msra.mxu0 0.0
        %1371 = vmatprep.subr.mxu0 0.0
        %1372 = vmatpush2.msra.mxu0 0.0
        %1373 = vmatprep.subr.mxu0 0.0
        %1374 = vmatpush2.msra.mxu0 0.0
        %1375 = vmatprep.subr.mxu0 0.0
        %1376 = vmatpush2.msra.mxu0 0.0
        %1377 = vmatprep.subr.mxu0 0.0
        %1378 = vmatpush2.msra.mxu0 0.0
        %1379 = vmatprep.subr.mxu0 0.0
        %1380 = vmatpush2.msra.mxu0 0.0
        %1381 = vmatprep.subr.mxu0 0.0
        %1382 = vmatpush2.msra.mxu0 0.0
        %1383 = vmatprep.subr.mxu0 0.0
        %1384 = vmatpush2.msra.mxu0 0.0
        %1385 = vmatprep.subr.mxu0 0.0
        %1386 = vmatpush2.msra.mxu0 0.0
        %1387 = vmatprep.subr.mxu0 0.0
        %1388 = vmatpush2.msra.mxu0 0.0
        %1389 = vmatprep.subr.mxu0 0.0
        %1390 = vmatpush2.msra.mxu0 0.0
        %1391 = vmatprep.subr.mxu0 0.0
        %1392 = vmatpush2.msra.mxu0 0.0
        %1393 = vmatprep.subr.mxu0 0.0
        %1394 = vmatpush2.msra.mxu0 0.0
        %1395 = vmatprep.subr.mxu0 0.0
        %1396 = vmatpush2.msra.mxu0 0.0
        %1397 = vmatprep.subr.mxu0 0.0
        %1398 = vmatpush2.msra.mxu0 0.0
        %1399 = vmatprep.mubr.f32.mxu0 0.0
        %v1400 = vand.u32 %v1239, 4294901760
        %1401 = vmatmul.mubr.f32.gmra.mxu0 %v1400
        %v1402 = vpop.f32.mrf.mxu0
        %v1403 = vadd.f32 %v1321, %v1402
        %v1404 = vpop.f32.mrf.mxu0
        %v1405 = vadd.f32 %v1323, %v1404
        %1406 = vdwg.mxu0
        %1407 = vmatprep.subr.mxu0 0.0
        %1408 = vmatpush1.msra.mxu0 0.0
        %1409 = vmatprep.subr.mxu0 0.0
        %1410 = vmatpush1.msra.mxu0 0.0
        %1411 = vmatprep.subr.mxu0 0.0
        %1412 = vmatpush1.msra.mxu0 0.0
        %1413 = vmatprep.subr.mxu0 0.0
        %1414 = vmatpush1.msra.mxu0 0.0
        %1415 = vmatprep.subr.mxu0 0.0
        %1416 = vmatpush1.msra.mxu0 0.0
        %1417 = vmatprep.subr.mxu0 0.0
        %1418 = vmatpush1.msra.mxu0 0.0
        %1419 = vmatprep.subr.mxu0 0.0
        %1420 = vmatpush1.msra.mxu0 0.0
        %1421 = vmatprep.subr.mxu0 0.0
        %1422 = vmatpush1.msra.mxu0 0.0
        %1423 = vmatprep.subr.mxu0 0.0
        %1424 = vmatpush1.msra.mxu0 0.0
        %1425 = vmatprep.subr.mxu0 0.0
        %1426 = vmatpush1.msra.mxu0 0.0
        %1427 = vmatprep.subr.mxu0 0.0
        %1428 = vmatpush1.msra.mxu0 0.0
        %1429 = vmatprep.subr.mxu0 0.0
        %1430 = vmatpush1.msra.mxu0 0.0
        %1431 = vmatprep.subr.mxu0 0.0
        %1432 = vmatpush1.msra.mxu0 0.0
        %1433 = vmatprep.subr.mxu0 0.0
        %1434 = vmatpush1.msra.mxu0 0.0
        %1435 = vmatprep.subr.mxu0 0.0
        %1436 = vmatpush1.msra.mxu0 0.0
        %v1437 = vand.u32 %v1245, 4294901760
        %v1438 = vsub.f32 %v1245, %v1437
        %1439 = vmatprep.subr.mxu0 %v1438
        %v1440 = vand.u32 %v1242, 4294901760
        %v1441 = vsub.f32 %v1242, %v1440
        %1442 = vmatpush1.msra.mxu0 %v1441
        %1443 = vmatprep.subr.mxu0 0.0
        %1444 = vmatpush2.msra.mxu0 0.0
        %1445 = vmatprep.subr.mxu0 0.0
        %1446 = vmatpush2.msra.mxu0 0.0
        %1447 = vmatprep.subr.mxu0 0.0
        %1448 = vmatpush2.msra.mxu0 0.0
        %1449 = vmatprep.subr.mxu0 0.0
        %1450 = vmatpush2.msra.mxu0 0.0
        %1451 = vmatprep.subr.mxu0 0.0
        %1452 = vmatpush2.msra.mxu0 0.0
        %1453 = vmatprep.subr.mxu0 0.0
        %1454 = vmatpush2.msra.mxu0 0.0
        %1455 = vmatprep.subr.mxu0 0.0
        %1456 = vmatpush2.msra.mxu0 0.0
        %1457 = vmatprep.subr.mxu0 0.0
        %1458 = vmatpush2.msra.mxu0 0.0
        %1459 = vmatprep.subr.mxu0 0.0
        %1460 = vmatpush2.msra.mxu0 0.0
        %1461 = vmatprep.subr.mxu0 0.0
        %1462 = vmatpush2.msra.mxu0 0.0
        %1463 = vmatprep.subr.mxu0 0.0
        %1464 = vmatpush2.msra.mxu0 0.0
        %1465 = vmatprep.subr.mxu0 0.0
        %1466 = vmatpush2.msra.mxu0 0.0
        %1467 = vmatprep.subr.mxu0 0.0
        %1468 = vmatpush2.msra.mxu0 0.0
        %1469 = vmatprep.subr.mxu0 0.0
        %1470 = vmatpush2.msra.mxu0 0.0
        %1471 = vmatprep.subr.mxu0 0.0
        %1472 = vmatpush2.msra.mxu0 0.0
        %1473 = vmatprep.subr.mxu0 0.0
        %1474 = vmatpush2.msra.mxu0 0.0
        %1475 = vmatprep.mubr.f32.mxu0 0.0
        %v1476 = vand.u32 %v1239, 4294901760
        %v1477 = vsub.f32 %v1239, %v1476
        %1478 = vmatmul.mubr.f32.gmra.mxu0 %v1477
        %v1479 = vpop.f32.mrf.mxu0
        %v1480 = vadd.f32 %v1403, %v1479
        %v1481 = vpop.f32.mrf.mxu0
        %v1482 = vadd.f32 %v1405, %v1481
        %1483 = vdwg.mxu0
        %1484 = vmatprep.subr.mxu0 0.0
        %1485 = vmatpush1.msra.mxu0 0.0
        %1486 = vmatprep.subr.mxu0 0.0
        %1487 = vmatpush1.msra.mxu0 0.0
        %1488 = vmatprep.subr.mxu0 0.0
        %1489 = vmatpush1.msra.mxu0 0.0
        %1490 = vmatprep.subr.mxu0 0.0
        %1491 = vmatpush1.msra.mxu0 0.0
        %1492 = vmatprep.subr.mxu0 0.0
        %1493 = vmatpush1.msra.mxu0 0.0
        %1494 = vmatprep.subr.mxu0 0.0
        %1495 = vmatpush1.msra.mxu0 0.0
        %1496 = vmatprep.subr.mxu0 0.0
        %1497 = vmatpush1.msra.mxu0 0.0
        %1498 = vmatprep.subr.mxu0 0.0
        %1499 = vmatpush1.msra.mxu0 0.0
        %1500 = vmatprep.subr.mxu0 0.0
        %1501 = vmatpush1.msra.mxu0 0.0
        %1502 = vmatprep.subr.mxu0 0.0
        %1503 = vmatpush1.msra.mxu0 0.0
        %1504 = vmatprep.subr.mxu0 0.0
        %1505 = vmatpush1.msra.mxu0 0.0
        %1506 = vmatprep.subr.mxu0 0.0
        %1507 = vmatpush1.msra.mxu0 0.0
        %1508 = vmatprep.subr.mxu0 0.0
        %1509 = vmatpush1.msra.mxu0 0.0
        %1510 = vmatprep.subr.mxu0 0.0
        %1511 = vmatpush1.msra.mxu0 0.0
        %1512 = vmatprep.subr.mxu0 0.0
        %1513 = vmatpush1.msra.mxu0 0.0
        %v1514 = vand.u32 %v1245, 4294901760
        %1515 = vmatprep.subr.mxu0 %v1514
        %v1516 = vand.u32 %v1242, 4294901760
        %1517 = vmatpush1.msra.mxu0 %v1516
        %1518 = vmatprep.subr.mxu0 0.0
        %1519 = vmatpush2.msra.mxu0 0.0
        %1520 = vmatprep.subr.mxu0 0.0
        %1521 = vmatpush2.msra.mxu0 0.0
        %1522 = vmatprep.subr.mxu0 0.0
        %1523 = vmatpush2.msra.mxu0 0.0
        %1524 = vmatprep.subr.mxu0 0.0
        %1525 = vmatpush2.msra.mxu0 0.0
        %1526 = vmatprep.subr.mxu0 0.0
        %1527 = vmatpush2.msra.mxu0 0.0
        %1528 = vmatprep.subr.mxu0 0.0
        %1529 = vmatpush2.msra.mxu0 0.0
        %1530 = vmatprep.subr.mxu0 0.0
        %1531 = vmatpush2.msra.mxu0 0.0
        %1532 = vmatprep.subr.mxu0 0.0
        %1533 = vmatpush2.msra.mxu0 0.0
        %1534 = vmatprep.subr.mxu0 0.0
        %1535 = vmatpush2.msra.mxu0 0.0
        %1536 = vmatprep.subr.mxu0 0.0
        %1537 = vmatpush2.msra.mxu0 0.0
        %1538 = vmatprep.subr.mxu0 0.0
        %1539 = vmatpush2.msra.mxu0 0.0
        %1540 = vmatprep.subr.mxu0 0.0
        %1541 = vmatpush2.msra.mxu0 0.0
        %1542 = vmatprep.subr.mxu0 0.0
        %1543 = vmatpush2.msra.mxu0 0.0
        %1544 = vmatprep.subr.mxu0 0.0
        %1545 = vmatpush2.msra.mxu0 0.0
        %1546 = vmatprep.subr.mxu0 0.0
        %1547 = vmatpush2.msra.mxu0 0.0
        %1548 = vmatprep.subr.mxu0 0.0
        %1549 = vmatpush2.msra.mxu0 0.0
        %1550 = vmatprep.mubr.f32.mxu0 0.0
        %v1551 = vand.u32 %v1239, 4294901760
        %v1552 = vsub.f32 %v1239, %v1551
        %v1553 = vand.u32 %v1552, 4294901760
        %1554 = vmatmul.mubr.f32.gmra.mxu0 %v1553
        %v1555 = vpop.f32.mrf.mxu0
        %v1556 = vadd.f32 %v1480, %v1555
        %v1557 = vpop.f32.mrf.mxu0
        %v1558 = vadd.f32 %v1482, %v1557
        %1559 = vdwg.mxu0
        %1560 = vmatprep.subr.mxu0 0.0
        %1561 = vmatpush1.msra.mxu0 0.0
        %1562 = vmatprep.subr.mxu0 0.0
        %1563 = vmatpush1.msra.mxu0 0.0
        %1564 = vmatprep.subr.mxu0 0.0
        %1565 = vmatpush1.msra.mxu0 0.0
        %1566 = vmatprep.subr.mxu0 0.0
        %1567 = vmatpush1.msra.mxu0 0.0
        %1568 = vmatprep.subr.mxu0 0.0
        %1569 = vmatpush1.msra.mxu0 0.0
        %1570 = vmatprep.subr.mxu0 0.0
        %1571 = vmatpush1.msra.mxu0 0.0
        %1572 = vmatprep.subr.mxu0 0.0
        %1573 = vmatpush1.msra.mxu0 0.0
        %1574 = vmatprep.subr.mxu0 0.0
        %1575 = vmatpush1.msra.mxu0 0.0
        %1576 = vmatprep.subr.mxu0 0.0
        %1577 = vmatpush1.msra.mxu0 0.0
        %1578 = vmatprep.subr.mxu0 0.0
        %1579 = vmatpush1.msra.mxu0 0.0
        %1580 = vmatprep.subr.mxu0 0.0
        %1581 = vmatpush1.msra.mxu0 0.0
        %1582 = vmatprep.subr.mxu0 0.0
        %1583 = vmatpush1.msra.mxu0 0.0
        %1584 = vmatprep.subr.mxu0 0.0
        %1585 = vmatpush1.msra.mxu0 0.0
        %1586 = vmatprep.subr.mxu0 0.0
        %1587 = vmatpush1.msra.mxu0 0.0
        %1588 = vmatprep.subr.mxu0 0.0
        %1589 = vmatpush1.msra.mxu0 0.0
        %v1590 = vand.u32 %v1245, 4294901760
        %v1591 = vsub.f32 %v1245, %v1590
        %v1592 = vand.u32 %v1591, 4294901760
        %1593 = vmatprep.subr.mxu0 %v1592
        %v1594 = vand.u32 %v1242, 4294901760
        %v1595 = vsub.f32 %v1242, %v1594
        %v1596 = vand.u32 %v1595, 4294901760
        %1597 = vmatpush1.msra.mxu0 %v1596
        %1598 = vmatprep.subr.mxu0 0.0
        %1599 = vmatpush2.msra.mxu0 0.0
        %1600 = vmatprep.subr.mxu0 0.0
        %1601 = vmatpush2.msra.mxu0 0.0
        %1602 = vmatprep.subr.mxu0 0.0
        %1603 = vmatpush2.msra.mxu0 0.0
        %1604 = vmatprep.subr.mxu0 0.0
        %1605 = vmatpush2.msra.mxu0 0.0
        %1606 = vmatprep.subr.mxu0 0.0
        %1607 = vmatpush2.msra.mxu0 0.0
        %1608 = vmatprep.subr.mxu0 0.0
        %1609 = vmatpush2.msra.mxu0 0.0
        %1610 = vmatprep.subr.mxu0 0.0
        %1611 = vmatpush2.msra.mxu0 0.0
        %1612 = vmatprep.subr.mxu0 0.0
        %1613 = vmatpush2.msra.mxu0 0.0
        %1614 = vmatprep.subr.mxu0 0.0
        %1615 = vmatpush2.msra.mxu0 0.0
        %1616 = vmatprep.subr.mxu0 0.0
        %1617 = vmatpush2.msra.mxu0 0.0
        %1618 = vmatprep.subr.mxu0 0.0
        %1619 = vmatpush2.msra.mxu0 0.0
        %1620 = vmatprep.subr.mxu0 0.0
        %1621 = vmatpush2.msra.mxu0 0.0
        %1622 = vmatprep.subr.mxu0 0.0
        %1623 = vmatpush2.msra.mxu0 0.0
        %1624 = vmatprep.subr.mxu0 0.0
        %1625 = vmatpush2.msra.mxu0 0.0
        %1626 = vmatprep.subr.mxu0 0.0
        %1627 = vmatpush2.msra.mxu0 0.0
        %1628 = vmatprep.subr.mxu0 0.0
        %1629 = vmatpush2.msra.mxu0 0.0
        %1630 = vmatprep.mubr.f32.mxu0 0.0
        %v1631 = vand.u32 %v1239, 4294901760
        %1632 = vmatmul.mubr.f32.gmra.mxu0 %v1631
        %v1633 = vpop.f32.mrf.mxu0
        %v1634 = vadd.f32 %v1556, %v1633
        %v1635 = vpop.f32.mrf.mxu0
        %v1636 = vadd.f32 %v1558, %v1635
        %1637 = vdwg.mxu0
        %1638 = vmatprep.subr.mxu0 0.0
        %1639 = vmatpush1.msra.mxu0 0.0
        %1640 = vmatprep.subr.mxu0 0.0
        %1641 = vmatpush1.msra.mxu0 0.0
        %1642 = vmatprep.subr.mxu0 0.0
        %1643 = vmatpush1.msra.mxu0 0.0
        %1644 = vmatprep.subr.mxu0 0.0
        %1645 = vmatpush1.msra.mxu0 0.0
        %1646 = vmatprep.subr.mxu0 0.0
        %1647 = vmatpush1.msra.mxu0 0.0
        %1648 = vmatprep.subr.mxu0 0.0
        %1649 = vmatpush1.msra.mxu0 0.0
        %1650 = vmatprep.subr.mxu0 0.0
        %1651 = vmatpush1.msra.mxu0 0.0
        %1652 = vmatprep.subr.mxu0 0.0
        %1653 = vmatpush1.msra.mxu0 0.0
        %1654 = vmatprep.subr.mxu0 0.0
        %1655 = vmatpush1.msra.mxu0 0.0
        %1656 = vmatprep.subr.mxu0 0.0
        %1657 = vmatpush1.msra.mxu0 0.0
        %1658 = vmatprep.subr.mxu0 0.0
        %1659 = vmatpush1.msra.mxu0 0.0
        %1660 = vmatprep.subr.mxu0 0.0
        %1661 = vmatpush1.msra.mxu0 0.0
        %1662 = vmatprep.subr.mxu0 0.0
        %1663 = vmatpush1.msra.mxu0 0.0
        %1664 = vmatprep.subr.mxu0 0.0
        %1665 = vmatpush1.msra.mxu0 0.0
        %1666 = vmatprep.subr.mxu0 0.0
        %1667 = vmatpush1.msra.mxu0 0.0
        %v1668 = vand.u32 %v1245, 4294901760
        %1669 = vmatprep.subr.mxu0 %v1668
        %v1670 = vand.u32 %v1242, 4294901760
        %1671 = vmatpush1.msra.mxu0 %v1670
        %1672 = vmatprep.subr.mxu0 0.0
        %1673 = vmatpush2.msra.mxu0 0.0
        %1674 = vmatprep.subr.mxu0 0.0
        %1675 = vmatpush2.msra.mxu0 0.0
        %1676 = vmatprep.subr.mxu0 0.0
        %1677 = vmatpush2.msra.mxu0 0.0
        %1678 = vmatprep.subr.mxu0 0.0
        %1679 = vmatpush2.msra.mxu0 0.0
        %1680 = vmatprep.subr.mxu0 0.0
        %1681 = vmatpush2.msra.mxu0 0.0
        %1682 = vmatprep.subr.mxu0 0.0
        %1683 = vmatpush2.msra.mxu0 0.0
        %1684 = vmatprep.subr.mxu0 0.0
        %1685 = vmatpush2.msra.mxu0 0.0
        %1686 = vmatprep.subr.mxu0 0.0
        %1687 = vmatpush2.msra.mxu0 0.0
        %1688 = vmatprep.subr.mxu0 0.0
        %1689 = vmatpush2.msra.mxu0 0.0
        %1690 = vmatprep.subr.mxu0 0.0
        %1691 = vmatpush2.msra.mxu0 0.0
        %1692 = vmatprep.subr.mxu0 0.0
        %1693 = vmatpush2.msra.mxu0 0.0
        %1694 = vmatprep.subr.mxu0 0.0
        %1695 = vmatpush2.msra.mxu0 0.0
        %1696 = vmatprep.subr.mxu0 0.0
        %1697 = vmatpush2.msra.mxu0 0.0
        %1698 = vmatprep.subr.mxu0 0.0
        %1699 = vmatpush2.msra.mxu0 0.0
        %1700 = vmatprep.subr.mxu0 0.0
        %1701 = vmatpush2.msra.mxu0 0.0
        %1702 = vmatprep.subr.mxu0 0.0
        %1703 = vmatpush2.msra.mxu0 0.0
        %1704 = vmatprep.mubr.f32.mxu0 0.0
        %v1705 = vand.u32 %v1239, 4294901760
        %1706 = vmatmul.mubr.f32.gmra.mxu0 %v1705
        %v1707 = vpop.f32.mrf.mxu0
        %v1708 = vadd.f32 %v1634, %v1707
        %v1709 = vpop.f32.mrf.mxu0
        %v1710 = vadd.f32 %v1636, %v1709
        %1711 = vdwg.mxu0
        %v1712 = vadd.f32 %v1214, %v1708
        %v1713 = vadd.f32 %v1216, %v1710
        %1714 = vrot.lane.b32.xlu0 %v230, 1
        %v1715 = vpop.permute.xlu0 %1714
        %1717 = vrot.lane.b32.xlu0 %v213, 1
        %v1718 = vpop.permute.xlu0 %1717
        %vm1719 = vcmask 7168
        %v1720 = vsel %vm1719, %v1718, %v1715
        %v1723 = vsel %vm1719, %v1715, %v1718
        %v1724 = vsel %vm225, 1, 0
        %v1725 = vsel %vm226, 1, 0
        %vm1726 = vcmp.eq.s32.totalorder %v1724, 1
        %vm1727 = vcmp.eq.s32.totalorder %v1725, 1
        %v1728 = vsel %vm1726, %v1723, 0.0
        %v1729 = vsel %vm1727, %v1720, 0.0
        %s1730 = scalar_lea.vmem %s1, 24
        %v1731 = vld [vmem:[%s1730] sm:$0xff]
        %v1733 = vsel %vm268, %v1731, 0
        %v1736 = vsel %vm272, %v1728, 0
        %v1739 = vsel %vm272, %v1729, 0
        %1741 = vmatprep.subr.mxu0 0.0
        %1742 = vmatpush1.msra.mxu0 0.0
        %1743 = vmatprep.subr.mxu0 0.0
        %1744 = vmatpush1.msra.mxu0 0.0
        %1745 = vmatprep.subr.mxu0 0.0
        %1746 = vmatpush1.msra.mxu0 0.0
        %1747 = vmatprep.subr.mxu0 0.0
        %1748 = vmatpush1.msra.mxu0 0.0
        %1749 = vmatprep.subr.mxu0 0.0
        %1750 = vmatpush1.msra.mxu0 0.0
        %1751 = vmatprep.subr.mxu0 0.0
        %1752 = vmatpush1.msra.mxu0 0.0
        %1753 = vmatprep.subr.mxu0 0.0
        %1754 = vmatpush1.msra.mxu0 0.0
        %1755 = vmatprep.subr.mxu0 0.0
        %1756 = vmatpush1.msra.mxu0 0.0
        %1757 = vmatprep.subr.mxu0 0.0
        %1758 = vmatpush1.msra.mxu0 0.0
        %1759 = vmatprep.subr.mxu0 0.0
        %1760 = vmatpush1.msra.mxu0 0.0
        %1761 = vmatprep.subr.mxu0 0.0
        %1762 = vmatpush1.msra.mxu0 0.0
        %1763 = vmatprep.subr.mxu0 0.0
        %1764 = vmatpush1.msra.mxu0 0.0
        %1765 = vmatprep.subr.mxu0 0.0
        %1766 = vmatpush1.msra.mxu0 0.0
        %1767 = vmatprep.subr.mxu0 0.0
        %1768 = vmatpush1.msra.mxu0 0.0
        %1769 = vmatprep.subr.mxu0 0.0
        %1770 = vmatpush1.msra.mxu0 0.0
        %v1771 = vand.u32 %v1739, 4294901760
        %1772 = vmatprep.subr.mxu0 %v1771
        %v1773 = vand.u32 %v1736, 4294901760
        %1774 = vmatpush1.msra.mxu0 %v1773
        %1775 = vmatprep.subr.mxu0 0.0
        %1776 = vmatpush2.msra.mxu0 0.0
        %1777 = vmatprep.subr.mxu0 0.0
        %1778 = vmatpush2.msra.mxu0 0.0
        %1779 = vmatprep.subr.mxu0 0.0
        %1780 = vmatpush2.msra.mxu0 0.0
        %1781 = vmatprep.subr.mxu0 0.0
        %1782 = vmatpush2.msra.mxu0 0.0
        %1783 = vmatprep.subr.mxu0 0.0
        %1784 = vmatpush2.msra.mxu0 0.0
        %1785 = vmatprep.subr.mxu0 0.0
        %1786 = vmatpush2.msra.mxu0 0.0
        %1787 = vmatprep.subr.mxu0 0.0
        %1788 = vmatpush2.msra.mxu0 0.0
        %1789 = vmatprep.subr.mxu0 0.0
        %1790 = vmatpush2.msra.mxu0 0.0
        %1791 = vmatprep.subr.mxu0 0.0
        %1792 = vmatpush2.msra.mxu0 0.0
        %1793 = vmatprep.subr.mxu0 0.0
        %1794 = vmatpush2.msra.mxu0 0.0
        %1795 = vmatprep.subr.mxu0 0.0
        %1796 = vmatpush2.msra.mxu0 0.0
        %1797 = vmatprep.subr.mxu0 0.0
        %1798 = vmatpush2.msra.mxu0 0.0
        %1799 = vmatprep.subr.mxu0 0.0
        %1800 = vmatpush2.msra.mxu0 0.0
        %1801 = vmatprep.subr.mxu0 0.0
        %1802 = vmatpush2.msra.mxu0 0.0
        %1803 = vmatprep.subr.mxu0 0.0
        %1804 = vmatpush2.msra.mxu0 0.0
        %1805 = vmatprep.subr.mxu0 0.0
        %1806 = vmatpush2.msra.mxu0 0.0
        %1807 = vmatprep.mubr.f32.mxu0 0.0
        %v1808 = vand.u32 %v1733, 4294901760
        %v1809 = vsub.f32 %v1733, %v1808
        %v1810 = vand.u32 %v1809, 4294901760
        %v1811 = vsub.f32 %v1809, %v1810
        %v1812 = vand.u32 %v1811, 4294901760
        %1813 = vmatmul.mubr.f32.gmra.mxu0 %v1812
        %v1814 = vpop.f32.mrf.mxu0
        %v1815 = vadd.f32 0.0, %v1814
        %v1816 = vpop.f32.mrf.mxu0
        %v1817 = vadd.f32 0.0, %v1816
        %1818 = vdwg.mxu0
        %1819 = vmatprep.subr.mxu0 0.0
        %1820 = vmatpush1.msra.mxu0 0.0
        %1821 = vmatprep.subr.mxu0 0.0
        %1822 = vmatpush1.msra.mxu0 0.0
        %1823 = vmatprep.subr.mxu0 0.0
        %1824 = vmatpush1.msra.mxu0 0.0
        %1825 = vmatprep.subr.mxu0 0.0
        %1826 = vmatpush1.msra.mxu0 0.0
        %1827 = vmatprep.subr.mxu0 0.0
        %1828 = vmatpush1.msra.mxu0 0.0
        %1829 = vmatprep.subr.mxu0 0.0
        %1830 = vmatpush1.msra.mxu0 0.0
        %1831 = vmatprep.subr.mxu0 0.0
        %1832 = vmatpush1.msra.mxu0 0.0
        %1833 = vmatprep.subr.mxu0 0.0
        %1834 = vmatpush1.msra.mxu0 0.0
        %1835 = vmatprep.subr.mxu0 0.0
        %1836 = vmatpush1.msra.mxu0 0.0
        %1837 = vmatprep.subr.mxu0 0.0
        %1838 = vmatpush1.msra.mxu0 0.0
        %1839 = vmatprep.subr.mxu0 0.0
        %1840 = vmatpush1.msra.mxu0 0.0
        %1841 = vmatprep.subr.mxu0 0.0
        %1842 = vmatpush1.msra.mxu0 0.0
        %1843 = vmatprep.subr.mxu0 0.0
        %1844 = vmatpush1.msra.mxu0 0.0
        %1845 = vmatprep.subr.mxu0 0.0
        %1846 = vmatpush1.msra.mxu0 0.0
        %1847 = vmatprep.subr.mxu0 0.0
        %1848 = vmatpush1.msra.mxu0 0.0
        %v1849 = vand.u32 %v1739, 4294901760
        %v1850 = vsub.f32 %v1739, %v1849
        %v1851 = vand.u32 %v1850, 4294901760
        %v1852 = vsub.f32 %v1850, %v1851
        %v1853 = vand.u32 %v1852, 4294901760
        %1854 = vmatprep.subr.mxu0 %v1853
        %v1855 = vand.u32 %v1736, 4294901760
        %v1856 = vsub.f32 %v1736, %v1855
        %v1857 = vand.u32 %v1856, 4294901760
        %v1858 = vsub.f32 %v1856, %v1857
        %v1859 = vand.u32 %v1858, 4294901760
        %1860 = vmatpush1.msra.mxu0 %v1859
        %1861 = vmatprep.subr.mxu0 0.0
        %1862 = vmatpush2.msra.mxu0 0.0
        %1863 = vmatprep.subr.mxu0 0.0
        %1864 = vmatpush2.msra.mxu0 0.0
        %1865 = vmatprep.subr.mxu0 0.0
        %1866 = vmatpush2.msra.mxu0 0.0
        %1867 = vmatprep.subr.mxu0 0.0
        %1868 = vmatpush2.msra.mxu0 0.0
        %1869 = vmatprep.subr.mxu0 0.0
        %1870 = vmatpush2.msra.mxu0 0.0
        %1871 = vmatprep.subr.mxu0 0.0
        %1872 = vmatpush2.msra.mxu0 0.0
        %1873 = vmatprep.subr.mxu0 0.0
        %1874 = vmatpush2.msra.mxu0 0.0
        %1875 = vmatprep.subr.mxu0 0.0
        %1876 = vmatpush2.msra.mxu0 0.0
        %1877 = vmatprep.subr.mxu0 0.0
        %1878 = vmatpush2.msra.mxu0 0.0
        %1879 = vmatprep.subr.mxu0 0.0
        %1880 = vmatpush2.msra.mxu0 0.0
        %1881 = vmatprep.subr.mxu0 0.0
        %1882 = vmatpush2.msra.mxu0 0.0
        %1883 = vmatprep.subr.mxu0 0.0
        %1884 = vmatpush2.msra.mxu0 0.0
        %1885 = vmatprep.subr.mxu0 0.0
        %1886 = vmatpush2.msra.mxu0 0.0
        %1887 = vmatprep.subr.mxu0 0.0
        %1888 = vmatpush2.msra.mxu0 0.0
        %1889 = vmatprep.subr.mxu0 0.0
        %1890 = vmatpush2.msra.mxu0 0.0
        %1891 = vmatprep.subr.mxu0 0.0
        %1892 = vmatpush2.msra.mxu0 0.0
        %1893 = vmatprep.mubr.f32.mxu0 0.0
        %v1894 = vand.u32 %v1733, 4294901760
        %1895 = vmatmul.mubr.f32.gmra.mxu0 %v1894
        %v1896 = vpop.f32.mrf.mxu0
        %v1897 = vadd.f32 %v1815, %v1896
        %v1898 = vpop.f32.mrf.mxu0
        %v1899 = vadd.f32 %v1817, %v1898
        %1900 = vdwg.mxu0
        %1901 = vmatprep.subr.mxu0 0.0
        %1902 = vmatpush1.msra.mxu0 0.0
        %1903 = vmatprep.subr.mxu0 0.0
        %1904 = vmatpush1.msra.mxu0 0.0
        %1905 = vmatprep.subr.mxu0 0.0
        %1906 = vmatpush1.msra.mxu0 0.0
        %1907 = vmatprep.subr.mxu0 0.0
        %1908 = vmatpush1.msra.mxu0 0.0
        %1909 = vmatprep.subr.mxu0 0.0
        %1910 = vmatpush1.msra.mxu0 0.0
        %1911 = vmatprep.subr.mxu0 0.0
        %1912 = vmatpush1.msra.mxu0 0.0
        %1913 = vmatprep.subr.mxu0 0.0
        %1914 = vmatpush1.msra.mxu0 0.0
        %1915 = vmatprep.subr.mxu0 0.0
        %1916 = vmatpush1.msra.mxu0 0.0
        %1917 = vmatprep.subr.mxu0 0.0
        %1918 = vmatpush1.msra.mxu0 0.0
        %1919 = vmatprep.subr.mxu0 0.0
        %1920 = vmatpush1.msra.mxu0 0.0
        %1921 = vmatprep.subr.mxu0 0.0
        %1922 = vmatpush1.msra.mxu0 0.0
        %1923 = vmatprep.subr.mxu0 0.0
        %1924 = vmatpush1.msra.mxu0 0.0
        %1925 = vmatprep.subr.mxu0 0.0
        %1926 = vmatpush1.msra.mxu0 0.0
        %1927 = vmatprep.subr.mxu0 0.0
        %1928 = vmatpush1.msra.mxu0 0.0
        %1929 = vmatprep.subr.mxu0 0.0
        %1930 = vmatpush1.msra.mxu0 0.0
        %v1931 = vand.u32 %v1739, 4294901760
        %v1932 = vsub.f32 %v1739, %v1931
        %1933 = vmatprep.subr.mxu0 %v1932
        %v1934 = vand.u32 %v1736, 4294901760
        %v1935 = vsub.f32 %v1736, %v1934
        %1936 = vmatpush1.msra.mxu0 %v1935
        %1937 = vmatprep.subr.mxu0 0.0
        %1938 = vmatpush2.msra.mxu0 0.0
        %1939 = vmatprep.subr.mxu0 0.0
        %1940 = vmatpush2.msra.mxu0 0.0
        %1941 = vmatprep.subr.mxu0 0.0
        %1942 = vmatpush2.msra.mxu0 0.0
        %1943 = vmatprep.subr.mxu0 0.0
        %1944 = vmatpush2.msra.mxu0 0.0
        %1945 = vmatprep.subr.mxu0 0.0
        %1946 = vmatpush2.msra.mxu0 0.0
        %1947 = vmatprep.subr.mxu0 0.0
        %1948 = vmatpush2.msra.mxu0 0.0
        %1949 = vmatprep.subr.mxu0 0.0
        %1950 = vmatpush2.msra.mxu0 0.0
        %1951 = vmatprep.subr.mxu0 0.0
        %1952 = vmatpush2.msra.mxu0 0.0
        %1953 = vmatprep.subr.mxu0 0.0
        %1954 = vmatpush2.msra.mxu0 0.0
        %1955 = vmatprep.subr.mxu0 0.0
        %1956 = vmatpush2.msra.mxu0 0.0
        %1957 = vmatprep.subr.mxu0 0.0
        %1958 = vmatpush2.msra.mxu0 0.0
        %1959 = vmatprep.subr.mxu0 0.0
        %1960 = vmatpush2.msra.mxu0 0.0
        %1961 = vmatprep.subr.mxu0 0.0
        %1962 = vmatpush2.msra.mxu0 0.0
        %1963 = vmatprep.subr.mxu0 0.0
        %1964 = vmatpush2.msra.mxu0 0.0
        %1965 = vmatprep.subr.mxu0 0.0
        %1966 = vmatpush2.msra.mxu0 0.0
        %1967 = vmatprep.subr.mxu0 0.0
        %1968 = vmatpush2.msra.mxu0 0.0
        %1969 = vmatprep.mubr.f32.mxu0 0.0
        %v1970 = vand.u32 %v1733, 4294901760
        %v1971 = vsub.f32 %v1733, %v1970
        %1972 = vmatmul.mubr.f32.gmra.mxu0 %v1971
        %v1973 = vpop.f32.mrf.mxu0
        %v1974 = vadd.f32 %v1897, %v1973
        %v1975 = vpop.f32.mrf.mxu0
        %v1976 = vadd.f32 %v1899, %v1975
        %1977 = vdwg.mxu0
        %1978 = vmatprep.subr.mxu0 0.0
        %1979 = vmatpush1.msra.mxu0 0.0
        %1980 = vmatprep.subr.mxu0 0.0
        %1981 = vmatpush1.msra.mxu0 0.0
        %1982 = vmatprep.subr.mxu0 0.0
        %1983 = vmatpush1.msra.mxu0 0.0
        %1984 = vmatprep.subr.mxu0 0.0
        %1985 = vmatpush1.msra.mxu0 0.0
        %1986 = vmatprep.subr.mxu0 0.0
        %1987 = vmatpush1.msra.mxu0 0.0
        %1988 = vmatprep.subr.mxu0 0.0
        %1989 = vmatpush1.msra.mxu0 0.0
        %1990 = vmatprep.subr.mxu0 0.0
        %1991 = vmatpush1.msra.mxu0 0.0
        %1992 = vmatprep.subr.mxu0 0.0
        %1993 = vmatpush1.msra.mxu0 0.0
        %1994 = vmatprep.subr.mxu0 0.0
        %1995 = vmatpush1.msra.mxu0 0.0
        %1996 = vmatprep.subr.mxu0 0.0
        %1997 = vmatpush1.msra.mxu0 0.0
        %1998 = vmatprep.subr.mxu0 0.0
        %1999 = vmatpush1.msra.mxu0 0.0
        %2000 = vmatprep.subr.mxu0 0.0
        %2001 = vmatpush1.msra.mxu0 0.0
        %2002 = vmatprep.subr.mxu0 0.0
        %2003 = vmatpush1.msra.mxu0 0.0
        %2004 = vmatprep.subr.mxu0 0.0
        %2005 = vmatpush1.msra.mxu0 0.0
        %2006 = vmatprep.subr.mxu0 0.0
        %2007 = vmatpush1.msra.mxu0 0.0
        %v2008 = vand.u32 %v1739, 4294901760
        %2009 = vmatprep.subr.mxu0 %v2008
        %v2010 = vand.u32 %v1736, 4294901760
        %2011 = vmatpush1.msra.mxu0 %v2010
        %2012 = vmatprep.subr.mxu0 0.0
        %2013 = vmatpush2.msra.mxu0 0.0
        %2014 = vmatprep.subr.mxu0 0.0
        %2015 = vmatpush2.msra.mxu0 0.0
        %2016 = vmatprep.subr.mxu0 0.0
        %2017 = vmatpush2.msra.mxu0 0.0
        %2018 = vmatprep.subr.mxu0 0.0
        %2019 = vmatpush2.msra.mxu0 0.0
        %2020 = vmatprep.subr.mxu0 0.0
        %2021 = vmatpush2.msra.mxu0 0.0
        %2022 = vmatprep.subr.mxu0 0.0
        %2023 = vmatpush2.msra.mxu0 0.0
        %2024 = vmatprep.subr.mxu0 0.0
        %2025 = vmatpush2.msra.mxu0 0.0
        %2026 = vmatprep.subr.mxu0 0.0
        %2027 = vmatpush2.msra.mxu0 0.0
        %2028 = vmatprep.subr.mxu0 0.0
        %2029 = vmatpush2.msra.mxu0 0.0
        %2030 = vmatprep.subr.mxu0 0.0
        %2031 = vmatpush2.msra.mxu0 0.0
        %2032 = vmatprep.subr.mxu0 0.0
        %2033 = vmatpush2.msra.mxu0 0.0
        %2034 = vmatprep.subr.mxu0 0.0
        %2035 = vmatpush2.msra.mxu0 0.0
        %2036 = vmatprep.subr.mxu0 0.0
        %2037 = vmatpush2.msra.mxu0 0.0
        %2038 = vmatprep.subr.mxu0 0.0
        %2039 = vmatpush2.msra.mxu0 0.0
        %2040 = vmatprep.subr.mxu0 0.0
        %2041 = vmatpush2.msra.mxu0 0.0
        %2042 = vmatprep.subr.mxu0 0.0
        %2043 = vmatpush2.msra.mxu0 0.0
        %2044 = vmatprep.mubr.f32.mxu0 0.0
        %v2045 = vand.u32 %v1733, 4294901760
        %v2046 = vsub.f32 %v1733, %v2045
        %v2047 = vand.u32 %v2046, 4294901760
        %2048 = vmatmul.mubr.f32.gmra.mxu0 %v2047
        %v2049 = vpop.f32.mrf.mxu0
        %v2050 = vadd.f32 %v1974, %v2049
        %v2051 = vpop.f32.mrf.mxu0
        %v2052 = vadd.f32 %v1976, %v2051
        %2053 = vdwg.mxu0
        %2054 = vmatprep.subr.mxu0 0.0
        %2055 = vmatpush1.msra.mxu0 0.0
        %2056 = vmatprep.subr.mxu0 0.0
        %2057 = vmatpush1.msra.mxu0 0.0
        %2058 = vmatprep.subr.mxu0 0.0
        %2059 = vmatpush1.msra.mxu0 0.0
        %2060 = vmatprep.subr.mxu0 0.0
        %2061 = vmatpush1.msra.mxu0 0.0
        %2062 = vmatprep.subr.mxu0 0.0
        %2063 = vmatpush1.msra.mxu0 0.0
        %2064 = vmatprep.subr.mxu0 0.0
        %2065 = vmatpush1.msra.mxu0 0.0
        %2066 = vmatprep.subr.mxu0 0.0
        %2067 = vmatpush1.msra.mxu0 0.0
        %2068 = vmatprep.subr.mxu0 0.0
        %2069 = vmatpush1.msra.mxu0 0.0
        %2070 = vmatprep.subr.mxu0 0.0
        %2071 = vmatpush1.msra.mxu0 0.0
        %2072 = vmatprep.subr.mxu0 0.0
        %2073 = vmatpush1.msra.mxu0 0.0
        %2074 = vmatprep.subr.mxu0 0.0
        %2075 = vmatpush1.msra.mxu0 0.0
        %2076 = vmatprep.subr.mxu0 0.0
        %2077 = vmatpush1.msra.mxu0 0.0
        %2078 = vmatprep.subr.mxu0 0.0
        %2079 = vmatpush1.msra.mxu0 0.0
        %2080 = vmatprep.subr.mxu0 0.0
        %2081 = vmatpush1.msra.mxu0 0.0
        %2082 = vmatprep.subr.mxu0 0.0
        %2083 = vmatpush1.msra.mxu0 0.0
        %v2084 = vand.u32 %v1739, 4294901760
        %v2085 = vsub.f32 %v1739, %v2084
        %v2086 = vand.u32 %v2085, 4294901760
        %2087 = vmatprep.subr.mxu0 %v2086
        %v2088 = vand.u32 %v1736, 4294901760
        %v2089 = vsub.f32 %v1736, %v2088
        %v2090 = vand.u32 %v2089, 4294901760
        %2091 = vmatpush1.msra.mxu0 %v2090
        %2092 = vmatprep.subr.mxu0 0.0
        %2093 = vmatpush2.msra.mxu0 0.0
        %2094 = vmatprep.subr.mxu0 0.0
        %2095 = vmatpush2.msra.mxu0 0.0
        %2096 = vmatprep.subr.mxu0 0.0
        %2097 = vmatpush2.msra.mxu0 0.0
        %2098 = vmatprep.subr.mxu0 0.0
        %2099 = vmatpush2.msra.mxu0 0.0
        %2100 = vmatprep.subr.mxu0 0.0
        %2101 = vmatpush2.msra.mxu0 0.0
        %2102 = vmatprep.subr.mxu0 0.0
        %2103 = vmatpush2.msra.mxu0 0.0
        %2104 = vmatprep.subr.mxu0 0.0
        %2105 = vmatpush2.msra.mxu0 0.0
        %2106 = vmatprep.subr.mxu0 0.0
        %2107 = vmatpush2.msra.mxu0 0.0
        %2108 = vmatprep.subr.mxu0 0.0
        %2109 = vmatpush2.msra.mxu0 0.0
        %2110 = vmatprep.subr.mxu0 0.0
        %2111 = vmatpush2.msra.mxu0 0.0
        %2112 = vmatprep.subr.mxu0 0.0
        %2113 = vmatpush2.msra.mxu0 0.0
        %2114 = vmatprep.subr.mxu0 0.0
        %2115 = vmatpush2.msra.mxu0 0.0
        %2116 = vmatprep.subr.mxu0 0.0
        %2117 = vmatpush2.msra.mxu0 0.0
        %2118 = vmatprep.subr.mxu0 0.0
        %2119 = vmatpush2.msra.mxu0 0.0
        %2120 = vmatprep.subr.mxu0 0.0
        %2121 = vmatpush2.msra.mxu0 0.0
        %2122 = vmatprep.subr.mxu0 0.0
        %2123 = vmatpush2.msra.mxu0 0.0
        %2124 = vmatprep.mubr.f32.mxu0 0.0
        %v2125 = vand.u32 %v1733, 4294901760
        %2126 = vmatmul.mubr.f32.gmra.mxu0 %v2125
        %v2127 = vpop.f32.mrf.mxu0
        %v2128 = vadd.f32 %v2050, %v2127
        %v2129 = vpop.f32.mrf.mxu0
        %v2130 = vadd.f32 %v2052, %v2129
        %2131 = vdwg.mxu0
        %2132 = vmatprep.subr.mxu0 0.0
        %2133 = vmatpush1.msra.mxu0 0.0
        %2134 = vmatprep.subr.mxu0 0.0
        %2135 = vmatpush1.msra.mxu0 0.0
        %2136 = vmatprep.subr.mxu0 0.0
        %2137 = vmatpush1.msra.mxu0 0.0
        %2138 = vmatprep.subr.mxu0 0.0
        %2139 = vmatpush1.msra.mxu0 0.0
        %2140 = vmatprep.subr.mxu0 0.0
        %2141 = vmatpush1.msra.mxu0 0.0
        %2142 = vmatprep.subr.mxu0 0.0
        %2143 = vmatpush1.msra.mxu0 0.0
        %2144 = vmatprep.subr.mxu0 0.0
        %2145 = vmatpush1.msra.mxu0 0.0
        %2146 = vmatprep.subr.mxu0 0.0
        %2147 = vmatpush1.msra.mxu0 0.0
        %2148 = vmatprep.subr.mxu0 0.0
        %2149 = vmatpush1.msra.mxu0 0.0
        %2150 = vmatprep.subr.mxu0 0.0
        %2151 = vmatpush1.msra.mxu0 0.0
        %2152 = vmatprep.subr.mxu0 0.0
        %2153 = vmatpush1.msra.mxu0 0.0
        %2154 = vmatprep.subr.mxu0 0.0
        %2155 = vmatpush1.msra.mxu0 0.0
        %2156 = vmatprep.subr.mxu0 0.0
        %2157 = vmatpush1.msra.mxu0 0.0
        %2158 = vmatprep.subr.mxu0 0.0
        %2159 = vmatpush1.msra.mxu0 0.0
        %2160 = vmatprep.subr.mxu0 0.0
        %2161 = vmatpush1.msra.mxu0 0.0
        %v2162 = vand.u32 %v1739, 4294901760
        %2163 = vmatprep.subr.mxu0 %v2162
        %v2164 = vand.u32 %v1736, 4294901760
        %2165 = vmatpush1.msra.mxu0 %v2164
        %2166 = vmatprep.subr.mxu0 0.0
        %2167 = vmatpush2.msra.mxu0 0.0
        %2168 = vmatprep.subr.mxu0 0.0
        %2169 = vmatpush2.msra.mxu0 0.0
        %2170 = vmatprep.subr.mxu0 0.0
        %2171 = vmatpush2.msra.mxu0 0.0
        %2172 = vmatprep.subr.mxu0 0.0
        %2173 = vmatpush2.msra.mxu0 0.0
        %2174 = vmatprep.subr.mxu0 0.0
        %2175 = vmatpush2.msra.mxu0 0.0
        %2176 = vmatprep.subr.mxu0 0.0
        %2177 = vmatpush2.msra.mxu0 0.0
        %2178 = vmatprep.subr.mxu0 0.0
        %2179 = vmatpush2.msra.mxu0 0.0
        %2180 = vmatprep.subr.mxu0 0.0
        %2181 = vmatpush2.msra.mxu0 0.0
        %2182 = vmatprep.subr.mxu0 0.0
        %2183 = vmatpush2.msra.mxu0 0.0
        %2184 = vmatprep.subr.mxu0 0.0
        %2185 = vmatpush2.msra.mxu0 0.0
        %2186 = vmatprep.subr.mxu0 0.0
        %2187 = vmatpush2.msra.mxu0 0.0
        %2188 = vmatprep.subr.mxu0 0.0
        %2189 = vmatpush2.msra.mxu0 0.0
        %2190 = vmatprep.subr.mxu0 0.0
        %2191 = vmatpush2.msra.mxu0 0.0
        %2192 = vmatprep.subr.mxu0 0.0
        %2193 = vmatpush2.msra.mxu0 0.0
        %2194 = vmatprep.subr.mxu0 0.0
        %2195 = vmatpush2.msra.mxu0 0.0
        %2196 = vmatprep.subr.mxu0 0.0
        %2197 = vmatpush2.msra.mxu0 0.0
        %2198 = vmatprep.mubr.f32.mxu0 0.0
        %v2199 = vand.u32 %v1733, 4294901760
        %2200 = vmatmul.mubr.f32.gmra.mxu0 %v2199
        %v2201 = vpop.f32.mrf.mxu0
        %v2202 = vadd.f32 %v2128, %v2201
        %v2203 = vpop.f32.mrf.mxu0
        %v2204 = vadd.f32 %v2130, %v2203
        %2205 = vdwg.mxu0
        %v2206 = vadd.f32 %v1712, %v2202
        %v2207 = vadd.f32 %v1713, %v2204
        %s2208 = scalar_lea.vmem %s1, 32
        %v2209 = vld [vmem:[%s2208] sm:$0xff]
        %v2211 = vsel %vm268, %v2209, 0
        %v2213 = vsel %vm272, %v213, 0
        %v2215 = vsel %vm272, %v230, 0
        %2217 = vmatprep.subr.mxu0 0.0
        %2218 = vmatpush1.msra.mxu0 0.0
        %2219 = vmatprep.subr.mxu0 0.0
        %2220 = vmatpush1.msra.mxu0 0.0
        %2221 = vmatprep.subr.mxu0 0.0
        %2222 = vmatpush1.msra.mxu0 0.0
        %2223 = vmatprep.subr.mxu0 0.0
        %2224 = vmatpush1.msra.mxu0 0.0
        %2225 = vmatprep.subr.mxu0 0.0
        %2226 = vmatpush1.msra.mxu0 0.0
        %2227 = vmatprep.subr.mxu0 0.0
        %2228 = vmatpush1.msra.mxu0 0.0
        %2229 = vmatprep.subr.mxu0 0.0
        %2230 = vmatpush1.msra.mxu0 0.0
        %2231 = vmatprep.subr.mxu0 0.0
        %2232 = vmatpush1.msra.mxu0 0.0
        %2233 = vmatprep.subr.mxu0 0.0
        %2234 = vmatpush1.msra.mxu0 0.0
        %2235 = vmatprep.subr.mxu0 0.0
        %2236 = vmatpush1.msra.mxu0 0.0
        %2237 = vmatprep.subr.mxu0 0.0
        %2238 = vmatpush1.msra.mxu0 0.0
        %2239 = vmatprep.subr.mxu0 0.0
        %2240 = vmatpush1.msra.mxu0 0.0
        %2241 = vmatprep.subr.mxu0 0.0
        %2242 = vmatpush1.msra.mxu0 0.0
        %2243 = vmatprep.subr.mxu0 0.0
        %2244 = vmatpush1.msra.mxu0 0.0
        %2245 = vmatprep.subr.mxu0 0.0
        %2246 = vmatpush1.msra.mxu0 0.0
        %v2247 = vand.u32 %v2215, 4294901760
        %2248 = vmatprep.subr.mxu0 %v2247
        %v2249 = vand.u32 %v2213, 4294901760
        %2250 = vmatpush1.msra.mxu0 %v2249
        %2251 = vmatprep.subr.mxu0 0.0
        %2252 = vmatpush2.msra.mxu0 0.0
        %2253 = vmatprep.subr.mxu0 0.0
        %2254 = vmatpush2.msra.mxu0 0.0
        %2255 = vmatprep.subr.mxu0 0.0
        %2256 = vmatpush2.msra.mxu0 0.0
        %2257 = vmatprep.subr.mxu0 0.0
        %2258 = vmatpush2.msra.mxu0 0.0
        %2259 = vmatprep.subr.mxu0 0.0
        %2260 = vmatpush2.msra.mxu0 0.0
        %2261 = vmatprep.subr.mxu0 0.0
        %2262 = vmatpush2.msra.mxu0 0.0
        %2263 = vmatprep.subr.mxu0 0.0
        %2264 = vmatpush2.msra.mxu0 0.0
        %2265 = vmatprep.subr.mxu0 0.0
        %2266 = vmatpush2.msra.mxu0 0.0
        %2267 = vmatprep.subr.mxu0 0.0
        %2268 = vmatpush2.msra.mxu0 0.0
        %2269 = vmatprep.subr.mxu0 0.0
        %2270 = vmatpush2.msra.mxu0 0.0
        %2271 = vmatprep.subr.mxu0 0.0
        %2272 = vmatpush2.msra.mxu0 0.0
        %2273 = vmatprep.subr.mxu0 0.0
        %2274 = vmatpush2.msra.mxu0 0.0
        %2275 = vmatprep.subr.mxu0 0.0
        %2276 = vmatpush2.msra.mxu0 0.0
        %2277 = vmatprep.subr.mxu0 0.0
        %2278 = vmatpush2.msra.mxu0 0.0
        %2279 = vmatprep.subr.mxu0 0.0
        %2280 = vmatpush2.msra.mxu0 0.0
        %2281 = vmatprep.subr.mxu0 0.0
        %2282 = vmatpush2.msra.mxu0 0.0
        %2283 = vmatprep.mubr.f32.mxu0 0.0
        %v2284 = vand.u32 %v2211, 4294901760
        %v2285 = vsub.f32 %v2211, %v2284
        %v2286 = vand.u32 %v2285, 4294901760
        %v2287 = vsub.f32 %v2285, %v2286
        %v2288 = vand.u32 %v2287, 4294901760
        %2289 = vmatmul.mubr.f32.gmra.mxu0 %v2288
        %v2290 = vpop.f32.mrf.mxu0
        %v2291 = vadd.f32 0.0, %v2290
        %v2292 = vpop.f32.mrf.mxu0
        %v2293 = vadd.f32 0.0, %v2292
        %2294 = vdwg.mxu0
        %2295 = vmatprep.subr.mxu0 0.0
        %2296 = vmatpush1.msra.mxu0 0.0
        %2297 = vmatprep.subr.mxu0 0.0
        %2298 = vmatpush1.msra.mxu0 0.0
        %2299 = vmatprep.subr.mxu0 0.0
        %2300 = vmatpush1.msra.mxu0 0.0
        %2301 = vmatprep.subr.mxu0 0.0
        %2302 = vmatpush1.msra.mxu0 0.0
        %2303 = vmatprep.subr.mxu0 0.0
        %2304 = vmatpush1.msra.mxu0 0.0
        %2305 = vmatprep.subr.mxu0 0.0
        %2306 = vmatpush1.msra.mxu0 0.0
        %2307 = vmatprep.subr.mxu0 0.0
        %2308 = vmatpush1.msra.mxu0 0.0
        %2309 = vmatprep.subr.mxu0 0.0
        %2310 = vmatpush1.msra.mxu0 0.0
        %2311 = vmatprep.subr.mxu0 0.0
        %2312 = vmatpush1.msra.mxu0 0.0
        %2313 = vmatprep.subr.mxu0 0.0
        %2314 = vmatpush1.msra.mxu0 0.0
        %2315 = vmatprep.subr.mxu0 0.0
        %2316 = vmatpush1.msra.mxu0 0.0
        %2317 = vmatprep.subr.mxu0 0.0
        %2318 = vmatpush1.msra.mxu0 0.0
        %2319 = vmatprep.subr.mxu0 0.0
        %2320 = vmatpush1.msra.mxu0 0.0
        %2321 = vmatprep.subr.mxu0 0.0
        %2322 = vmatpush1.msra.mxu0 0.0
        %2323 = vmatprep.subr.mxu0 0.0
        %2324 = vmatpush1.msra.mxu0 0.0
        %v2325 = vand.u32 %v2215, 4294901760
        %v2326 = vsub.f32 %v2215, %v2325
        %v2327 = vand.u32 %v2326, 4294901760
        %v2328 = vsub.f32 %v2326, %v2327
        %v2329 = vand.u32 %v2328, 4294901760
        %2330 = vmatprep.subr.mxu0 %v2329
        %v2331 = vand.u32 %v2213, 4294901760
        %v2332 = vsub.f32 %v2213, %v2331
        %v2333 = vand.u32 %v2332, 4294901760
        %v2334 = vsub.f32 %v2332, %v2333
        %v2335 = vand.u32 %v2334, 4294901760
        %2336 = vmatpush1.msra.mxu0 %v2335
        %2337 = vmatprep.subr.mxu0 0.0
        %2338 = vmatpush2.msra.mxu0 0.0
        %2339 = vmatprep.subr.mxu0 0.0
        %2340 = vmatpush2.msra.mxu0 0.0
        %2341 = vmatprep.subr.mxu0 0.0
        %2342 = vmatpush2.msra.mxu0 0.0
        %2343 = vmatprep.subr.mxu0 0.0
        %2344 = vmatpush2.msra.mxu0 0.0
        %2345 = vmatprep.subr.mxu0 0.0
        %2346 = vmatpush2.msra.mxu0 0.0
        %2347 = vmatprep.subr.mxu0 0.0
        %2348 = vmatpush2.msra.mxu0 0.0
        %2349 = vmatprep.subr.mxu0 0.0
        %2350 = vmatpush2.msra.mxu0 0.0
        %2351 = vmatprep.subr.mxu0 0.0
        %2352 = vmatpush2.msra.mxu0 0.0
        %2353 = vmatprep.subr.mxu0 0.0
        %2354 = vmatpush2.msra.mxu0 0.0
        %2355 = vmatprep.subr.mxu0 0.0
        %2356 = vmatpush2.msra.mxu0 0.0
        %2357 = vmatprep.subr.mxu0 0.0
        %2358 = vmatpush2.msra.mxu0 0.0
        %2359 = vmatprep.subr.mxu0 0.0
        %2360 = vmatpush2.msra.mxu0 0.0
        %2361 = vmatprep.subr.mxu0 0.0
        %2362 = vmatpush2.msra.mxu0 0.0
        %2363 = vmatprep.subr.mxu0 0.0
        %2364 = vmatpush2.msra.mxu0 0.0
        %2365 = vmatprep.subr.mxu0 0.0
        %2366 = vmatpush2.msra.mxu0 0.0
        %2367 = vmatprep.subr.mxu0 0.0
        %2368 = vmatpush2.msra.mxu0 0.0
        %2369 = vmatprep.mubr.f32.mxu0 0.0
        %v2370 = vand.u32 %v2211, 4294901760
        %2371 = vmatmul.mubr.f32.gmra.mxu0 %v2370
        %v2372 = vpop.f32.mrf.mxu0
        %v2373 = vadd.f32 %v2291, %v2372
        %v2374 = vpop.f32.mrf.mxu0
        %v2375 = vadd.f32 %v2293, %v2374
        %2376 = vdwg.mxu0
        %2377 = vmatprep.subr.mxu0 0.0
        %2378 = vmatpush1.msra.mxu0 0.0
        %2379 = vmatprep.subr.mxu0 0.0
        %2380 = vmatpush1.msra.mxu0 0.0
        %2381 = vmatprep.subr.mxu0 0.0
        %2382 = vmatpush1.msra.mxu0 0.0
        %2383 = vmatprep.subr.mxu0 0.0
        %2384 = vmatpush1.msra.mxu0 0.0
        %2385 = vmatprep.subr.mxu0 0.0
        %2386 = vmatpush1.msra.mxu0 0.0
        %2387 = vmatprep.subr.mxu0 0.0
        %2388 = vmatpush1.msra.mxu0 0.0
        %2389 = vmatprep.subr.mxu0 0.0
        %2390 = vmatpush1.msra.mxu0 0.0
        %2391 = vmatprep.subr.mxu0 0.0
        %2392 = vmatpush1.msra.mxu0 0.0
        %2393 = vmatprep.subr.mxu0 0.0
        %2394 = vmatpush1.msra.mxu0 0.0
        %2395 = vmatprep.subr.mxu0 0.0
        %2396 = vmatpush1.msra.mxu0 0.0
        %2397 = vmatprep.subr.mxu0 0.0
        %2398 = vmatpush1.msra.mxu0 0.0
        %2399 = vmatprep.subr.mxu0 0.0
        %2400 = vmatpush1.msra.mxu0 0.0
        %2401 = vmatprep.subr.mxu0 0.0
        %2402 = vmatpush1.msra.mxu0 0.0
        %2403 = vmatprep.subr.mxu0 0.0
        %2404 = vmatpush1.msra.mxu0 0.0
        %2405 = vmatprep.subr.mxu0 0.0
        %2406 = vmatpush1.msra.mxu0 0.0
        %v2407 = vand.u32 %v2215, 4294901760
        %v2408 = vsub.f32 %v2215, %v2407
        %2409 = vmatprep.subr.mxu0 %v2408
        %v2410 = vand.u32 %v2213, 4294901760
        %v2411 = vsub.f32 %v2213, %v2410
        %2412 = vmatpush1.msra.mxu0 %v2411
        %2413 = vmatprep.subr.mxu0 0.0
        %2414 = vmatpush2.msra.mxu0 0.0
        %2415 = vmatprep.subr.mxu0 0.0
        %2416 = vmatpush2.msra.mxu0 0.0
        %2417 = vmatprep.subr.mxu0 0.0
        %2418 = vmatpush2.msra.mxu0 0.0
        %2419 = vmatprep.subr.mxu0 0.0
        %2420 = vmatpush2.msra.mxu0 0.0
        %2421 = vmatprep.subr.mxu0 0.0
        %2422 = vmatpush2.msra.mxu0 0.0
        %2423 = vmatprep.subr.mxu0 0.0
        %2424 = vmatpush2.msra.mxu0 0.0
        %2425 = vmatprep.subr.mxu0 0.0
        %2426 = vmatpush2.msra.mxu0 0.0
        %2427 = vmatprep.subr.mxu0 0.0
        %2428 = vmatpush2.msra.mxu0 0.0
        %2429 = vmatprep.subr.mxu0 0.0
        %2430 = vmatpush2.msra.mxu0 0.0
        %2431 = vmatprep.subr.mxu0 0.0
        %2432 = vmatpush2.msra.mxu0 0.0
        %2433 = vmatprep.subr.mxu0 0.0
        %2434 = vmatpush2.msra.mxu0 0.0
        %2435 = vmatprep.subr.mxu0 0.0
        %2436 = vmatpush2.msra.mxu0 0.0
        %2437 = vmatprep.subr.mxu0 0.0
        %2438 = vmatpush2.msra.mxu0 0.0
        %2439 = vmatprep.subr.mxu0 0.0
        %2440 = vmatpush2.msra.mxu0 0.0
        %2441 = vmatprep.subr.mxu0 0.0
        %2442 = vmatpush2.msra.mxu0 0.0
        %2443 = vmatprep.subr.mxu0 0.0
        %2444 = vmatpush2.msra.mxu0 0.0
        %2445 = vmatprep.mubr.f32.mxu0 0.0
        %v2446 = vand.u32 %v2211, 4294901760
        %v2447 = vsub.f32 %v2211, %v2446
        %2448 = vmatmul.mubr.f32.gmra.mxu0 %v2447
        %v2449 = vpop.f32.mrf.mxu0
        %v2450 = vadd.f32 %v2373, %v2449
        %v2451 = vpop.f32.mrf.mxu0
        %v2452 = vadd.f32 %v2375, %v2451
        %2453 = vdwg.mxu0
        %2454 = vmatprep.subr.mxu0 0.0
        %2455 = vmatpush1.msra.mxu0 0.0
        %2456 = vmatprep.subr.mxu0 0.0
        %2457 = vmatpush1.msra.mxu0 0.0
        %2458 = vmatprep.subr.mxu0 0.0
        %2459 = vmatpush1.msra.mxu0 0.0
        %2460 = vmatprep.subr.mxu0 0.0
        %2461 = vmatpush1.msra.mxu0 0.0
        %2462 = vmatprep.subr.mxu0 0.0
        %2463 = vmatpush1.msra.mxu0 0.0
        %2464 = vmatprep.subr.mxu0 0.0
        %2465 = vmatpush1.msra.mxu0 0.0
        %2466 = vmatprep.subr.mxu0 0.0
        %2467 = vmatpush1.msra.mxu0 0.0
        %2468 = vmatprep.subr.mxu0 0.0
        %2469 = vmatpush1.msra.mxu0 0.0
        %2470 = vmatprep.subr.mxu0 0.0
        %2471 = vmatpush1.msra.mxu0 0.0
        %2472 = vmatprep.subr.mxu0 0.0
        %2473 = vmatpush1.msra.mxu0 0.0
        %2474 = vmatprep.subr.mxu0 0.0
        %2475 = vmatpush1.msra.mxu0 0.0
        %2476 = vmatprep.subr.mxu0 0.0
        %2477 = vmatpush1.msra.mxu0 0.0
        %2478 = vmatprep.subr.mxu0 0.0
        %2479 = vmatpush1.msra.mxu0 0.0
        %2480 = vmatprep.subr.mxu0 0.0
        %2481 = vmatpush1.msra.mxu0 0.0
        %2482 = vmatprep.subr.mxu0 0.0
        %2483 = vmatpush1.msra.mxu0 0.0
        %v2484 = vand.u32 %v2215, 4294901760
        %2485 = vmatprep.subr.mxu0 %v2484
        %v2486 = vand.u32 %v2213, 4294901760
        %2487 = vmatpush1.msra.mxu0 %v2486
        %2488 = vmatprep.subr.mxu0 0.0
        %2489 = vmatpush2.msra.mxu0 0.0
        %2490 = vmatprep.subr.mxu0 0.0
        %2491 = vmatpush2.msra.mxu0 0.0
        %2492 = vmatprep.subr.mxu0 0.0
        %2493 = vmatpush2.msra.mxu0 0.0
        %2494 = vmatprep.subr.mxu0 0.0
        %2495 = vmatpush2.msra.mxu0 0.0
        %2496 = vmatprep.subr.mxu0 0.0
        %2497 = vmatpush2.msra.mxu0 0.0
        %2498 = vmatprep.subr.mxu0 0.0
        %2499 = vmatpush2.msra.mxu0 0.0
        %2500 = vmatprep.subr.mxu0 0.0
        %2501 = vmatpush2.msra.mxu0 0.0
        %2502 = vmatprep.subr.mxu0 0.0
        %2503 = vmatpush2.msra.mxu0 0.0
        %2504 = vmatprep.subr.mxu0 0.0
        %2505 = vmatpush2.msra.mxu0 0.0
        %2506 = vmatprep.subr.mxu0 0.0
        %2507 = vmatpush2.msra.mxu0 0.0
        %2508 = vmatprep.subr.mxu0 0.0
        %2509 = vmatpush2.msra.mxu0 0.0
        %2510 = vmatprep.subr.mxu0 0.0
        %2511 = vmatpush2.msra.mxu0 0.0
        %2512 = vmatprep.subr.mxu0 0.0
        %2513 = vmatpush2.msra.mxu0 0.0
        %2514 = vmatprep.subr.mxu0 0.0
        %2515 = vmatpush2.msra.mxu0 0.0
        %2516 = vmatprep.subr.mxu0 0.0
        %2517 = vmatpush2.msra.mxu0 0.0
        %2518 = vmatprep.subr.mxu0 0.0
        %2519 = vmatpush2.msra.mxu0 0.0
        %2520 = vmatprep.mubr.f32.mxu0 0.0
        %v2521 = vand.u32 %v2211, 4294901760
        %v2522 = vsub.f32 %v2211, %v2521
        %v2523 = vand.u32 %v2522, 4294901760
        %2524 = vmatmul.mubr.f32.gmra.mxu0 %v2523
        %v2525 = vpop.f32.mrf.mxu0
        %v2526 = vadd.f32 %v2450, %v2525
        %v2527 = vpop.f32.mrf.mxu0
        %v2528 = vadd.f32 %v2452, %v2527
        %2529 = vdwg.mxu0
        %2530 = vmatprep.subr.mxu0 0.0
        %2531 = vmatpush1.msra.mxu0 0.0
        %2532 = vmatprep.subr.mxu0 0.0
        %2533 = vmatpush1.msra.mxu0 0.0
        %2534 = vmatprep.subr.mxu0 0.0
        %2535 = vmatpush1.msra.mxu0 0.0
        %2536 = vmatprep.subr.mxu0 0.0
        %2537 = vmatpush1.msra.mxu0 0.0
        %2538 = vmatprep.subr.mxu0 0.0
        %2539 = vmatpush1.msra.mxu0 0.0
        %2540 = vmatprep.subr.mxu0 0.0
        %2541 = vmatpush1.msra.mxu0 0.0
        %2542 = vmatprep.subr.mxu0 0.0
        %2543 = vmatpush1.msra.mxu0 0.0
        %2544 = vmatprep.subr.mxu0 0.0
        %2545 = vmatpush1.msra.mxu0 0.0
        %2546 = vmatprep.subr.mxu0 0.0
        %2547 = vmatpush1.msra.mxu0 0.0
        %2548 = vmatprep.subr.mxu0 0.0
        %2549 = vmatpush1.msra.mxu0 0.0
        %2550 = vmatprep.subr.mxu0 0.0
        %2551 = vmatpush1.msra.mxu0 0.0
        %2552 = vmatprep.subr.mxu0 0.0
        %2553 = vmatpush1.msra.mxu0 0.0
        %2554 = vmatprep.subr.mxu0 0.0
        %2555 = vmatpush1.msra.mxu0 0.0
        %2556 = vmatprep.subr.mxu0 0.0
        %2557 = vmatpush1.msra.mxu0 0.0
        %2558 = vmatprep.subr.mxu0 0.0
        %2559 = vmatpush1.msra.mxu0 0.0
        %v2560 = vand.u32 %v2215, 4294901760
        %v2561 = vsub.f32 %v2215, %v2560
        %v2562 = vand.u32 %v2561, 4294901760
        %2563 = vmatprep.subr.mxu0 %v2562
        %v2564 = vand.u32 %v2213, 4294901760
        %v2565 = vsub.f32 %v2213, %v2564
        %v2566 = vand.u32 %v2565, 4294901760
        %2567 = vmatpush1.msra.mxu0 %v2566
        %2568 = vmatprep.subr.mxu0 0.0
        %2569 = vmatpush2.msra.mxu0 0.0
        %2570 = vmatprep.subr.mxu0 0.0
        %2571 = vmatpush2.msra.mxu0 0.0
        %2572 = vmatprep.subr.mxu0 0.0
        %2573 = vmatpush2.msra.mxu0 0.0
        %2574 = vmatprep.subr.mxu0 0.0
        %2575 = vmatpush2.msra.mxu0 0.0
        %2576 = vmatprep.subr.mxu0 0.0
        %2577 = vmatpush2.msra.mxu0 0.0
        %2578 = vmatprep.subr.mxu0 0.0
        %2579 = vmatpush2.msra.mxu0 0.0
        %2580 = vmatprep.subr.mxu0 0.0
        %2581 = vmatpush2.msra.mxu0 0.0
        %2582 = vmatprep.subr.mxu0 0.0
        %2583 = vmatpush2.msra.mxu0 0.0
        %2584 = vmatprep.subr.mxu0 0.0
        %2585 = vmatpush2.msra.mxu0 0.0
        %2586 = vmatprep.subr.mxu0 0.0
        %2587 = vmatpush2.msra.mxu0 0.0
        %2588 = vmatprep.subr.mxu0 0.0
        %2589 = vmatpush2.msra.mxu0 0.0
        %2590 = vmatprep.subr.mxu0 0.0
        %2591 = vmatpush2.msra.mxu0 0.0
        %2592 = vmatprep.subr.mxu0 0.0
        %2593 = vmatpush2.msra.mxu0 0.0
        %2594 = vmatprep.subr.mxu0 0.0
        %2595 = vmatpush2.msra.mxu0 0.0
        %2596 = vmatprep.subr.mxu0 0.0
        %2597 = vmatpush2.msra.mxu0 0.0
        %2598 = vmatprep.subr.mxu0 0.0
        %2599 = vmatpush2.msra.mxu0 0.0
        %2600 = vmatprep.mubr.f32.mxu0 0.0
        %v2601 = vand.u32 %v2211, 4294901760
        %2602 = vmatmul.mubr.f32.gmra.mxu0 %v2601
        %v2603 = vpop.f32.mrf.mxu0
        %v2604 = vadd.f32 %v2526, %v2603
        %v2605 = vpop.f32.mrf.mxu0
        %v2606 = vadd.f32 %v2528, %v2605
        %2607 = vdwg.mxu0
        %2608 = vmatprep.subr.mxu0 0.0
        %2609 = vmatpush1.msra.mxu0 0.0
        %2610 = vmatprep.subr.mxu0 0.0
        %2611 = vmatpush1.msra.mxu0 0.0
        %2612 = vmatprep.subr.mxu0 0.0
        %2613 = vmatpush1.msra.mxu0 0.0
        %2614 = vmatprep.subr.mxu0 0.0
        %2615 = vmatpush1.msra.mxu0 0.0
        %2616 = vmatprep.subr.mxu0 0.0
        %2617 = vmatpush1.msra.mxu0 0.0
        %2618 = vmatprep.subr.mxu0 0.0
        %2619 = vmatpush1.msra.mxu0 0.0
        %2620 = vmatprep.subr.mxu0 0.0
        %2621 = vmatpush1.msra.mxu0 0.0
        %2622 = vmatprep.subr.mxu0 0.0
        %2623 = vmatpush1.msra.mxu0 0.0
        %2624 = vmatprep.subr.mxu0 0.0
        %2625 = vmatpush1.msra.mxu0 0.0
        %2626 = vmatprep.subr.mxu0 0.0
        %2627 = vmatpush1.msra.mxu0 0.0
        %2628 = vmatprep.subr.mxu0 0.0
        %2629 = vmatpush1.msra.mxu0 0.0
        %2630 = vmatprep.subr.mxu0 0.0
        %2631 = vmatpush1.msra.mxu0 0.0
        %2632 = vmatprep.subr.mxu0 0.0
        %2633 = vmatpush1.msra.mxu0 0.0
        %2634 = vmatprep.subr.mxu0 0.0
        %2635 = vmatpush1.msra.mxu0 0.0
        %2636 = vmatprep.subr.mxu0 0.0
        %2637 = vmatpush1.msra.mxu0 0.0
        %v2638 = vand.u32 %v2215, 4294901760
        %2639 = vmatprep.subr.mxu0 %v2638
        %v2640 = vand.u32 %v2213, 4294901760
        %2641 = vmatpush1.msra.mxu0 %v2640
        %2642 = vmatprep.subr.mxu0 0.0
        %2643 = vmatpush2.msra.mxu0 0.0
        %2644 = vmatprep.subr.mxu0 0.0
        %2645 = vmatpush2.msra.mxu0 0.0
        %2646 = vmatprep.subr.mxu0 0.0
        %2647 = vmatpush2.msra.mxu0 0.0
        %2648 = vmatprep.subr.mxu0 0.0
        %2649 = vmatpush2.msra.mxu0 0.0
        %2650 = vmatprep.subr.mxu0 0.0
        %2651 = vmatpush2.msra.mxu0 0.0
        %2652 = vmatprep.subr.mxu0 0.0
        %2653 = vmatpush2.msra.mxu0 0.0
        %2654 = vmatprep.subr.mxu0 0.0
        %2655 = vmatpush2.msra.mxu0 0.0
        %2656 = vmatprep.subr.mxu0 0.0
        %2657 = vmatpush2.msra.mxu0 0.0
        %2658 = vmatprep.subr.mxu0 0.0
        %2659 = vmatpush2.msra.mxu0 0.0
        %2660 = vmatprep.subr.mxu0 0.0
        %2661 = vmatpush2.msra.mxu0 0.0
        %2662 = vmatprep.subr.mxu0 0.0
        %2663 = vmatpush2.msra.mxu0 0.0
        %2664 = vmatprep.subr.mxu0 0.0
        %2665 = vmatpush2.msra.mxu0 0.0
        %2666 = vmatprep.subr.mxu0 0.0
        %2667 = vmatpush2.msra.mxu0 0.0
        %2668 = vmatprep.subr.mxu0 0.0
        %2669 = vmatpush2.msra.mxu0 0.0
        %2670 = vmatprep.subr.mxu0 0.0
        %2671 = vmatpush2.msra.mxu0 0.0
        %2672 = vmatprep.subr.mxu0 0.0
        %2673 = vmatpush2.msra.mxu0 0.0
        %2674 = vmatprep.mubr.f32.mxu0 0.0
        %v2675 = vand.u32 %v2211, 4294901760
        %2676 = vmatmul.mubr.f32.gmra.mxu0 %v2675
        %v2677 = vpop.f32.mrf.mxu0
        %v2678 = vadd.f32 %v2604, %v2677
        %v2679 = vpop.f32.mrf.mxu0
        %v2680 = vadd.f32 %v2606, %v2679
        %2681 = vdwg.mxu0
        %v2682 = vadd.f32 %v2206, %v2678
        %v2683 = vadd.f32 %v2207, %v2680
        %2684 = vrot.lane.b32.xlu0 %v213, 127
        %v2685 = vpop.permute.xlu0 %2684
        %2686 = vrot.lane.b32.xlu0 %v230, 127
        %v2687 = vpop.permute.xlu0 %2686
        %vm2688 = vcmask 1039360
        %v2689 = vsel %vm2688, %v2685, %v2687
        %v2693 = vsel %vm2688, %v2687, %v2685
        %v2694 = vsel %vm227, 1, 0
        %v2695 = vsel %vm228, 1, 0
        %vm2696 = vcmp.eq.s32.totalorder %v2694, 1
        %vm2697 = vcmp.eq.s32.totalorder %v2695, 1
        %v2698 = vsel %vm2696, %v2689, 0.0
        %v2699 = vsel %vm2697, %v2693, 0.0
        %s2700 = scalar_lea.vmem %s1, 40
        %v2701 = vld [vmem:[%s2700] sm:$0xff]
        %v2703 = vsel %vm268, %v2701, 0
        %v2706 = vsel %vm272, %v2698, 0
        %v2709 = vsel %vm272, %v2699, 0
        %2711 = vmatprep.subr.mxu0 0.0
        %2712 = vmatpush1.msra.mxu0 0.0
        %2713 = vmatprep.subr.mxu0 0.0
        %2714 = vmatpush1.msra.mxu0 0.0
        %2715 = vmatprep.subr.mxu0 0.0
        %2716 = vmatpush1.msra.mxu0 0.0
        %2717 = vmatprep.subr.mxu0 0.0
        %2718 = vmatpush1.msra.mxu0 0.0
        %2719 = vmatprep.subr.mxu0 0.0
        %2720 = vmatpush1.msra.mxu0 0.0
        %2721 = vmatprep.subr.mxu0 0.0
        %2722 = vmatpush1.msra.mxu0 0.0
        %2723 = vmatprep.subr.mxu0 0.0
        %2724 = vmatpush1.msra.mxu0 0.0
        %2725 = vmatprep.subr.mxu0 0.0
        %2726 = vmatpush1.msra.mxu0 0.0
        %2727 = vmatprep.subr.mxu0 0.0
        %2728 = vmatpush1.msra.mxu0 0.0
        %2729 = vmatprep.subr.mxu0 0.0
        %2730 = vmatpush1.msra.mxu0 0.0
        %2731 = vmatprep.subr.mxu0 0.0
        %2732 = vmatpush1.msra.mxu0 0.0
        %2733 = vmatprep.subr.mxu0 0.0
        %2734 = vmatpush1.msra.mxu0 0.0
        %2735 = vmatprep.subr.mxu0 0.0
        %2736 = vmatpush1.msra.mxu0 0.0
        %2737 = vmatprep.subr.mxu0 0.0
        %2738 = vmatpush1.msra.mxu0 0.0
        %2739 = vmatprep.subr.mxu0 0.0
        %2740 = vmatpush1.msra.mxu0 0.0
        %v2741 = vand.u32 %v2709, 4294901760
        %2742 = vmatprep.subr.mxu0 %v2741
        %v2743 = vand.u32 %v2706, 4294901760
        %2744 = vmatpush1.msra.mxu0 %v2743
        %2745 = vmatprep.subr.mxu0 0.0
        %2746 = vmatpush2.msra.mxu0 0.0
        %2747 = vmatprep.subr.mxu0 0.0
        %2748 = vmatpush2.msra.mxu0 0.0
        %2749 = vmatprep.subr.mxu0 0.0
        %2750 = vmatpush2.msra.mxu0 0.0
        %2751 = vmatprep.subr.mxu0 0.0
        %2752 = vmatpush2.msra.mxu0 0.0
        %2753 = vmatprep.subr.mxu0 0.0
        %2754 = vmatpush2.msra.mxu0 0.0
        %2755 = vmatprep.subr.mxu0 0.0
        %2756 = vmatpush2.msra.mxu0 0.0
        %2757 = vmatprep.subr.mxu0 0.0
        %2758 = vmatpush2.msra.mxu0 0.0
        %2759 = vmatprep.subr.mxu0 0.0
        %2760 = vmatpush2.msra.mxu0 0.0
        %2761 = vmatprep.subr.mxu0 0.0
        %2762 = vmatpush2.msra.mxu0 0.0
        %2763 = vmatprep.subr.mxu0 0.0
        %2764 = vmatpush2.msra.mxu0 0.0
        %2765 = vmatprep.subr.mxu0 0.0
        %2766 = vmatpush2.msra.mxu0 0.0
        %2767 = vmatprep.subr.mxu0 0.0
        %2768 = vmatpush2.msra.mxu0 0.0
        %2769 = vmatprep.subr.mxu0 0.0
        %2770 = vmatpush2.msra.mxu0 0.0
        %2771 = vmatprep.subr.mxu0 0.0
        %2772 = vmatpush2.msra.mxu0 0.0
        %2773 = vmatprep.subr.mxu0 0.0
        %2774 = vmatpush2.msra.mxu0 0.0
        %2775 = vmatprep.subr.mxu0 0.0
        %2776 = vmatpush2.msra.mxu0 0.0
        %2777 = vmatprep.mubr.f32.mxu0 0.0
        %v2778 = vand.u32 %v2703, 4294901760
        %v2779 = vsub.f32 %v2703, %v2778
        %v2780 = vand.u32 %v2779, 4294901760
        %v2781 = vsub.f32 %v2779, %v2780
        %v2782 = vand.u32 %v2781, 4294901760
        %2783 = vmatmul.mubr.f32.gmra.mxu0 %v2782
        %v2784 = vpop.f32.mrf.mxu0
        %v2785 = vadd.f32 0.0, %v2784
        %v2786 = vpop.f32.mrf.mxu0
        %v2787 = vadd.f32 0.0, %v2786
        %2788 = vdwg.mxu0
        %2789 = vmatprep.subr.mxu0 0.0
        %2790 = vmatpush1.msra.mxu0 0.0
        %2791 = vmatprep.subr.mxu0 0.0
        %2792 = vmatpush1.msra.mxu0 0.0
        %2793 = vmatprep.subr.mxu0 0.0
        %2794 = vmatpush1.msra.mxu0 0.0
        %2795 = vmatprep.subr.mxu0 0.0
        %2796 = vmatpush1.msra.mxu0 0.0
        %2797 = vmatprep.subr.mxu0 0.0
        %2798 = vmatpush1.msra.mxu0 0.0
        %2799 = vmatprep.subr.mxu0 0.0
        %2800 = vmatpush1.msra.mxu0 0.0
        %2801 = vmatprep.subr.mxu0 0.0
        %2802 = vmatpush1.msra.mxu0 0.0
        %2803 = vmatprep.subr.mxu0 0.0
        %2804 = vmatpush1.msra.mxu0 0.0
        %2805 = vmatprep.subr.mxu0 0.0
        %2806 = vmatpush1.msra.mxu0 0.0
        %2807 = vmatprep.subr.mxu0 0.0
        %2808 = vmatpush1.msra.mxu0 0.0
        %2809 = vmatprep.subr.mxu0 0.0
        %2810 = vmatpush1.msra.mxu0 0.0
        %2811 = vmatprep.subr.mxu0 0.0
        %2812 = vmatpush1.msra.mxu0 0.0
        %2813 = vmatprep.subr.mxu0 0.0
        %2814 = vmatpush1.msra.mxu0 0.0
        %2815 = vmatprep.subr.mxu0 0.0
        %2816 = vmatpush1.msra.mxu0 0.0
        %2817 = vmatprep.subr.mxu0 0.0
        %2818 = vmatpush1.msra.mxu0 0.0
        %v2819 = vand.u32 %v2709, 4294901760
        %v2820 = vsub.f32 %v2709, %v2819
        %v2821 = vand.u32 %v2820, 4294901760
        %v2822 = vsub.f32 %v2820, %v2821
        %v2823 = vand.u32 %v2822, 4294901760
        %2824 = vmatprep.subr.mxu0 %v2823
        %v2825 = vand.u32 %v2706, 4294901760
        %v2826 = vsub.f32 %v2706, %v2825
        %v2827 = vand.u32 %v2826, 4294901760
        %v2828 = vsub.f32 %v2826, %v2827
        %v2829 = vand.u32 %v2828, 4294901760
        %2830 = vmatpush1.msra.mxu0 %v2829
        %2831 = vmatprep.subr.mxu0 0.0
        %2832 = vmatpush2.msra.mxu0 0.0
        %2833 = vmatprep.subr.mxu0 0.0
        %2834 = vmatpush2.msra.mxu0 0.0
        %2835 = vmatprep.subr.mxu0 0.0
        %2836 = vmatpush2.msra.mxu0 0.0
        %2837 = vmatprep.subr.mxu0 0.0
        %2838 = vmatpush2.msra.mxu0 0.0
        %2839 = vmatprep.subr.mxu0 0.0
        %2840 = vmatpush2.msra.mxu0 0.0
        %2841 = vmatprep.subr.mxu0 0.0
        %2842 = vmatpush2.msra.mxu0 0.0
        %2843 = vmatprep.subr.mxu0 0.0
        %2844 = vmatpush2.msra.mxu0 0.0
        %2845 = vmatprep.subr.mxu0 0.0
        %2846 = vmatpush2.msra.mxu0 0.0
        %2847 = vmatprep.subr.mxu0 0.0
        %2848 = vmatpush2.msra.mxu0 0.0
        %2849 = vmatprep.subr.mxu0 0.0
        %2850 = vmatpush2.msra.mxu0 0.0
        %2851 = vmatprep.subr.mxu0 0.0
        %2852 = vmatpush2.msra.mxu0 0.0
        %2853 = vmatprep.subr.mxu0 0.0
        %2854 = vmatpush2.msra.mxu0 0.0
        %2855 = vmatprep.subr.mxu0 0.0
        %2856 = vmatpush2.msra.mxu0 0.0
        %2857 = vmatprep.subr.mxu0 0.0
        %2858 = vmatpush2.msra.mxu0 0.0
        %2859 = vmatprep.subr.mxu0 0.0
        %2860 = vmatpush2.msra.mxu0 0.0
        %2861 = vmatprep.subr.mxu0 0.0
        %2862 = vmatpush2.msra.mxu0 0.0
        %2863 = vmatprep.mubr.f32.mxu0 0.0
        %v2864 = vand.u32 %v2703, 4294901760
        %2865 = vmatmul.mubr.f32.gmra.mxu0 %v2864
        %v2866 = vpop.f32.mrf.mxu0
        %v2867 = vadd.f32 %v2785, %v2866
        %v2868 = vpop.f32.mrf.mxu0
        %v2869 = vadd.f32 %v2787, %v2868
        %2870 = vdwg.mxu0
        %2871 = vmatprep.subr.mxu0 0.0
        %2872 = vmatpush1.msra.mxu0 0.0
        %2873 = vmatprep.subr.mxu0 0.0
        %2874 = vmatpush1.msra.mxu0 0.0
        %2875 = vmatprep.subr.mxu0 0.0
        %2876 = vmatpush1.msra.mxu0 0.0
        %2877 = vmatprep.subr.mxu0 0.0
        %2878 = vmatpush1.msra.mxu0 0.0
        %2879 = vmatprep.subr.mxu0 0.0
        %2880 = vmatpush1.msra.mxu0 0.0
        %2881 = vmatprep.subr.mxu0 0.0
        %2882 = vmatpush1.msra.mxu0 0.0
        %2883 = vmatprep.subr.mxu0 0.0
        %2884 = vmatpush1.msra.mxu0 0.0
        %2885 = vmatprep.subr.mxu0 0.0
        %2886 = vmatpush1.msra.mxu0 0.0
        %2887 = vmatprep.subr.mxu0 0.0
        %2888 = vmatpush1.msra.mxu0 0.0
        %2889 = vmatprep.subr.mxu0 0.0
        %2890 = vmatpush1.msra.mxu0 0.0
        %2891 = vmatprep.subr.mxu0 0.0
        %2892 = vmatpush1.msra.mxu0 0.0
        %2893 = vmatprep.subr.mxu0 0.0
        %2894 = vmatpush1.msra.mxu0 0.0
        %2895 = vmatprep.subr.mxu0 0.0
        %2896 = vmatpush1.msra.mxu0 0.0
        %2897 = vmatprep.subr.mxu0 0.0
        %2898 = vmatpush1.msra.mxu0 0.0
        %2899 = vmatprep.subr.mxu0 0.0
        %2900 = vmatpush1.msra.mxu0 0.0
        %v2901 = vand.u32 %v2709, 4294901760
        %v2902 = vsub.f32 %v2709, %v2901
        %2903 = vmatprep.subr.mxu0 %v2902
        %v2904 = vand.u32 %v2706, 4294901760
        %v2905 = vsub.f32 %v2706, %v2904
        %2906 = vmatpush1.msra.mxu0 %v2905
        %2907 = vmatprep.subr.mxu0 0.0
        %2908 = vmatpush2.msra.mxu0 0.0
        %2909 = vmatprep.subr.mxu0 0.0
        %2910 = vmatpush2.msra.mxu0 0.0
        %2911 = vmatprep.subr.mxu0 0.0
        %2912 = vmatpush2.msra.mxu0 0.0
        %2913 = vmatprep.subr.mxu0 0.0
        %2914 = vmatpush2.msra.mxu0 0.0
        %2915 = vmatprep.subr.mxu0 0.0
        %2916 = vmatpush2.msra.mxu0 0.0
        %2917 = vmatprep.subr.mxu0 0.0
        %2918 = vmatpush2.msra.mxu0 0.0
        %2919 = vmatprep.subr.mxu0 0.0
        %2920 = vmatpush2.msra.mxu0 0.0
        %2921 = vmatprep.subr.mxu0 0.0
        %2922 = vmatpush2.msra.mxu0 0.0
        %2923 = vmatprep.subr.mxu0 0.0
        %2924 = vmatpush2.msra.mxu0 0.0
        %2925 = vmatprep.subr.mxu0 0.0
        %2926 = vmatpush2.msra.mxu0 0.0
        %2927 = vmatprep.subr.mxu0 0.0
        %2928 = vmatpush2.msra.mxu0 0.0
        %2929 = vmatprep.subr.mxu0 0.0
        %2930 = vmatpush2.msra.mxu0 0.0
        %2931 = vmatprep.subr.mxu0 0.0
        %2932 = vmatpush2.msra.mxu0 0.0
        %2933 = vmatprep.subr.mxu0 0.0
        %2934 = vmatpush2.msra.mxu0 0.0
        %2935 = vmatprep.subr.mxu0 0.0
        %2936 = vmatpush2.msra.mxu0 0.0
        %2937 = vmatprep.subr.mxu0 0.0
        %2938 = vmatpush2.msra.mxu0 0.0
        %2939 = vmatprep.mubr.f32.mxu0 0.0
        %v2940 = vand.u32 %v2703, 4294901760
        %v2941 = vsub.f32 %v2703, %v2940
        %2942 = vmatmul.mubr.f32.gmra.mxu0 %v2941
        %v2943 = vpop.f32.mrf.mxu0
        %v2944 = vadd.f32 %v2867, %v2943
        %v2945 = vpop.f32.mrf.mxu0
        %v2946 = vadd.f32 %v2869, %v2945
        %2947 = vdwg.mxu0
        %2948 = vmatprep.subr.mxu0 0.0
        %2949 = vmatpush1.msra.mxu0 0.0
        %2950 = vmatprep.subr.mxu0 0.0
        %2951 = vmatpush1.msra.mxu0 0.0
        %2952 = vmatprep.subr.mxu0 0.0
        %2953 = vmatpush1.msra.mxu0 0.0
        %2954 = vmatprep.subr.mxu0 0.0
        %2955 = vmatpush1.msra.mxu0 0.0
        %2956 = vmatprep.subr.mxu0 0.0
        %2957 = vmatpush1.msra.mxu0 0.0
        %2958 = vmatprep.subr.mxu0 0.0
        %2959 = vmatpush1.msra.mxu0 0.0
        %2960 = vmatprep.subr.mxu0 0.0
        %2961 = vmatpush1.msra.mxu0 0.0
        %2962 = vmatprep.subr.mxu0 0.0
        %2963 = vmatpush1.msra.mxu0 0.0
        %2964 = vmatprep.subr.mxu0 0.0
        %2965 = vmatpush1.msra.mxu0 0.0
        %2966 = vmatprep.subr.mxu0 0.0
        %2967 = vmatpush1.msra.mxu0 0.0
        %2968 = vmatprep.subr.mxu0 0.0
        %2969 = vmatpush1.msra.mxu0 0.0
        %2970 = vmatprep.subr.mxu0 0.0
        %2971 = vmatpush1.msra.mxu0 0.0
        %2972 = vmatprep.subr.mxu0 0.0
        %2973 = vmatpush1.msra.mxu0 0.0
        %2974 = vmatprep.subr.mxu0 0.0
        %2975 = vmatpush1.msra.mxu0 0.0
        %2976 = vmatprep.subr.mxu0 0.0
        %2977 = vmatpush1.msra.mxu0 0.0
        %v2978 = vand.u32 %v2709, 4294901760
        %2979 = vmatprep.subr.mxu0 %v2978
        %v2980 = vand.u32 %v2706, 4294901760
        %2981 = vmatpush1.msra.mxu0 %v2980
        %2982 = vmatprep.subr.mxu0 0.0
        %2983 = vmatpush2.msra.mxu0 0.0
        %2984 = vmatprep.subr.mxu0 0.0
        %2985 = vmatpush2.msra.mxu0 0.0
        %2986 = vmatprep.subr.mxu0 0.0
        %2987 = vmatpush2.msra.mxu0 0.0
        %2988 = vmatprep.subr.mxu0 0.0
        %2989 = vmatpush2.msra.mxu0 0.0
        %2990 = vmatprep.subr.mxu0 0.0
        %2991 = vmatpush2.msra.mxu0 0.0
        %2992 = vmatprep.subr.mxu0 0.0
        %2993 = vmatpush2.msra.mxu0 0.0
        %2994 = vmatprep.subr.mxu0 0.0
        %2995 = vmatpush2.msra.mxu0 0.0
        %2996 = vmatprep.subr.mxu0 0.0
        %2997 = vmatpush2.msra.mxu0 0.0
        %2998 = vmatprep.subr.mxu0 0.0
        %2999 = vmatpush2.msra.mxu0 0.0
        %3000 = vmatprep.subr.mxu0 0.0
        %3001 = vmatpush2.msra.mxu0 0.0
        %3002 = vmatprep.subr.mxu0 0.0
        %3003 = vmatpush2.msra.mxu0 0.0
        %3004 = vmatprep.subr.mxu0 0.0
        %3005 = vmatpush2.msra.mxu0 0.0
        %3006 = vmatprep.subr.mxu0 0.0
        %3007 = vmatpush2.msra.mxu0 0.0
        %3008 = vmatprep.subr.mxu0 0.0
        %3009 = vmatpush2.msra.mxu0 0.0
        %3010 = vmatprep.subr.mxu0 0.0
        %3011 = vmatpush2.msra.mxu0 0.0
        %3012 = vmatprep.subr.mxu0 0.0
        %3013 = vmatpush2.msra.mxu0 0.0
        %3014 = vmatprep.mubr.f32.mxu0 0.0
        %v3015 = vand.u32 %v2703, 4294901760
        %v3016 = vsub.f32 %v2703, %v3015
        %v3017 = vand.u32 %v3016, 4294901760
        %3018 = vmatmul.mubr.f32.gmra.mxu0 %v3017
        %v3019 = vpop.f32.mrf.mxu0
        %v3020 = vadd.f32 %v2944, %v3019
        %v3021 = vpop.f32.mrf.mxu0
        %v3022 = vadd.f32 %v2946, %v3021
        %3023 = vdwg.mxu0
        %3024 = vmatprep.subr.mxu0 0.0
        %3025 = vmatpush1.msra.mxu0 0.0
        %3026 = vmatprep.subr.mxu0 0.0
        %3027 = vmatpush1.msra.mxu0 0.0
        %3028 = vmatprep.subr.mxu0 0.0
        %3029 = vmatpush1.msra.mxu0 0.0
        %3030 = vmatprep.subr.mxu0 0.0
        %3031 = vmatpush1.msra.mxu0 0.0
        %3032 = vmatprep.subr.mxu0 0.0
        %3033 = vmatpush1.msra.mxu0 0.0
        %3034 = vmatprep.subr.mxu0 0.0
        %3035 = vmatpush1.msra.mxu0 0.0
        %3036 = vmatprep.subr.mxu0 0.0
        %3037 = vmatpush1.msra.mxu0 0.0
        %3038 = vmatprep.subr.mxu0 0.0
        %3039 = vmatpush1.msra.mxu0 0.0
        %3040 = vmatprep.subr.mxu0 0.0
        %3041 = vmatpush1.msra.mxu0 0.0
        %3042 = vmatprep.subr.mxu0 0.0
        %3043 = vmatpush1.msra.mxu0 0.0
        %3044 = vmatprep.subr.mxu0 0.0
        %3045 = vmatpush1.msra.mxu0 0.0
        %3046 = vmatprep.subr.mxu0 0.0
        %3047 = vmatpush1.msra.mxu0 0.0
        %3048 = vmatprep.subr.mxu0 0.0
        %3049 = vmatpush1.msra.mxu0 0.0
        %3050 = vmatprep.subr.mxu0 0.0
        %3051 = vmatpush1.msra.mxu0 0.0
        %3052 = vmatprep.subr.mxu0 0.0
        %3053 = vmatpush1.msra.mxu0 0.0
        %v3054 = vand.u32 %v2709, 4294901760
        %v3055 = vsub.f32 %v2709, %v3054
        %v3056 = vand.u32 %v3055, 4294901760
        %3057 = vmatprep.subr.mxu0 %v3056
        %v3058 = vand.u32 %v2706, 4294901760
        %v3059 = vsub.f32 %v2706, %v3058
        %v3060 = vand.u32 %v3059, 4294901760
        %3061 = vmatpush1.msra.mxu0 %v3060
        %3062 = vmatprep.subr.mxu0 0.0
        %3063 = vmatpush2.msra.mxu0 0.0
        %3064 = vmatprep.subr.mxu0 0.0
        %3065 = vmatpush2.msra.mxu0 0.0
        %3066 = vmatprep.subr.mxu0 0.0
        %3067 = vmatpush2.msra.mxu0 0.0
        %3068 = vmatprep.subr.mxu0 0.0
        %3069 = vmatpush2.msra.mxu0 0.0
        %3070 = vmatprep.subr.mxu0 0.0
        %3071 = vmatpush2.msra.mxu0 0.0
        %3072 = vmatprep.subr.mxu0 0.0
        %3073 = vmatpush2.msra.mxu0 0.0
        %3074 = vmatprep.subr.mxu0 0.0
        %3075 = vmatpush2.msra.mxu0 0.0
        %3076 = vmatprep.subr.mxu0 0.0
        %3077 = vmatpush2.msra.mxu0 0.0
        %3078 = vmatprep.subr.mxu0 0.0
        %3079 = vmatpush2.msra.mxu0 0.0
        %3080 = vmatprep.subr.mxu0 0.0
        %3081 = vmatpush2.msra.mxu0 0.0
        %3082 = vmatprep.subr.mxu0 0.0
        %3083 = vmatpush2.msra.mxu0 0.0
        %3084 = vmatprep.subr.mxu0 0.0
        %3085 = vmatpush2.msra.mxu0 0.0
        %3086 = vmatprep.subr.mxu0 0.0
        %3087 = vmatpush2.msra.mxu0 0.0
        %3088 = vmatprep.subr.mxu0 0.0
        %3089 = vmatpush2.msra.mxu0 0.0
        %3090 = vmatprep.subr.mxu0 0.0
        %3091 = vmatpush2.msra.mxu0 0.0
        %3092 = vmatprep.subr.mxu0 0.0
        %3093 = vmatpush2.msra.mxu0 0.0
        %3094 = vmatprep.mubr.f32.mxu0 0.0
        %v3095 = vand.u32 %v2703, 4294901760
        %3096 = vmatmul.mubr.f32.gmra.mxu0 %v3095
        %v3097 = vpop.f32.mrf.mxu0
        %v3098 = vadd.f32 %v3020, %v3097
        %v3099 = vpop.f32.mrf.mxu0
        %v3100 = vadd.f32 %v3022, %v3099
        %3101 = vdwg.mxu0
        %3102 = vmatprep.subr.mxu0 0.0
        %3103 = vmatpush1.msra.mxu0 0.0
        %3104 = vmatprep.subr.mxu0 0.0
        %3105 = vmatpush1.msra.mxu0 0.0
        %3106 = vmatprep.subr.mxu0 0.0
        %3107 = vmatpush1.msra.mxu0 0.0
        %3108 = vmatprep.subr.mxu0 0.0
        %3109 = vmatpush1.msra.mxu0 0.0
        %3110 = vmatprep.subr.mxu0 0.0
        %3111 = vmatpush1.msra.mxu0 0.0
        %3112 = vmatprep.subr.mxu0 0.0
        %3113 = vmatpush1.msra.mxu0 0.0
        %3114 = vmatprep.subr.mxu0 0.0
        %3115 = vmatpush1.msra.mxu0 0.0
        %3116 = vmatprep.subr.mxu0 0.0
        %3117 = vmatpush1.msra.mxu0 0.0
        %3118 = vmatprep.subr.mxu0 0.0
        %3119 = vmatpush1.msra.mxu0 0.0
        %3120 = vmatprep.subr.mxu0 0.0
        %3121 = vmatpush1.msra.mxu0 0.0
        %3122 = vmatprep.subr.mxu0 0.0
        %3123 = vmatpush1.msra.mxu0 0.0
        %3124 = vmatprep.subr.mxu0 0.0
        %3125 = vmatpush1.msra.mxu0 0.0
        %3126 = vmatprep.subr.mxu0 0.0
        %3127 = vmatpush1.msra.mxu0 0.0
        %3128 = vmatprep.subr.mxu0 0.0
        %3129 = vmatpush1.msra.mxu0 0.0
        %3130 = vmatprep.subr.mxu0 0.0
        %3131 = vmatpush1.msra.mxu0 0.0
        %v3132 = vand.u32 %v2709, 4294901760
        %3133 = vmatprep.subr.mxu0 %v3132
        %v3134 = vand.u32 %v2706, 4294901760
        %3135 = vmatpush1.msra.mxu0 %v3134
        %3136 = vmatprep.subr.mxu0 0.0
        %3137 = vmatpush2.msra.mxu0 0.0
        %3138 = vmatprep.subr.mxu0 0.0
        %3139 = vmatpush2.msra.mxu0 0.0
        %3140 = vmatprep.subr.mxu0 0.0
        %3141 = vmatpush2.msra.mxu0 0.0
        %3142 = vmatprep.subr.mxu0 0.0
        %3143 = vmatpush2.msra.mxu0 0.0
        %3144 = vmatprep.subr.mxu0 0.0
        %3145 = vmatpush2.msra.mxu0 0.0
        %3146 = vmatprep.subr.mxu0 0.0
        %3147 = vmatpush2.msra.mxu0 0.0
        %3148 = vmatprep.subr.mxu0 0.0
        %3149 = vmatpush2.msra.mxu0 0.0
        %3150 = vmatprep.subr.mxu0 0.0
        %3151 = vmatpush2.msra.mxu0 0.0
        %3152 = vmatprep.subr.mxu0 0.0
        %3153 = vmatpush2.msra.mxu0 0.0
        %3154 = vmatprep.subr.mxu0 0.0
        %3155 = vmatpush2.msra.mxu0 0.0
        %3156 = vmatprep.subr.mxu0 0.0
        %3157 = vmatpush2.msra.mxu0 0.0
        %3158 = vmatprep.subr.mxu0 0.0
        %3159 = vmatpush2.msra.mxu0 0.0
        %3160 = vmatprep.subr.mxu0 0.0
        %3161 = vmatpush2.msra.mxu0 0.0
        %3162 = vmatprep.subr.mxu0 0.0
        %3163 = vmatpush2.msra.mxu0 0.0
        %3164 = vmatprep.subr.mxu0 0.0
        %3165 = vmatpush2.msra.mxu0 0.0
        %3166 = vmatprep.subr.mxu0 0.0
        %3167 = vmatpush2.msra.mxu0 0.0
        %3168 = vmatprep.mubr.f32.mxu0 0.0
        %v3169 = vand.u32 %v2703, 4294901760
        %3170 = vmatmul.mubr.f32.gmra.mxu0 %v3169
        %v3171 = vpop.f32.mrf.mxu0
        %v3172 = vadd.f32 %v3098, %v3171
        %v3173 = vpop.f32.mrf.mxu0
        %v3174 = vadd.f32 %v3100, %v3173
        %3175 = vdwg.mxu0
        %v3176 = vadd.f32 %v2682, %v3172
        %v3177 = vadd.f32 %v2683, %v3174
        %3178 = vrot.lane.b32.xlu0 %v213, 113
        %v3179 = vpop.permute.xlu0 %3178
        %3180 = vrot.lane.b32.xlu0 %v230, 113
        %v3181 = vpop.permute.xlu0 %3180
        %vm3182 = vcmask 924672
        %v3183 = vsel %vm3182, %v3179, %v3181
        %v3187 = vsel %vm3182, %v3181, %v3179
        %vm3188 = vmand %vm223, %vm225
        %vm3189 = vmand %vm224, %vm226
        %v3190 = vsel %vm3188, 1, 0
        %v3191 = vsel %vm3189, 1, 0
        %vm3192 = vcmp.eq.s32.totalorder %v3190, 1
        %vm3193 = vcmp.eq.s32.totalorder %v3191, 1
        %v3194 = vsel %vm3192, %v3183, 0.0
        %v3195 = vsel %vm3193, %v3187, 0.0
        %s3196 = scalar_lea.vmem %s1, 48
        %v3197 = vld [vmem:[%s3196] sm:$0xff]
        %v3199 = vsel %vm268, %v3197, 0
        %v3202 = vsel %vm272, %v3194, 0
        %v3205 = vsel %vm272, %v3195, 0
        %3207 = vmatprep.subr.mxu0 0.0
        %3208 = vmatpush1.msra.mxu0 0.0
        %3209 = vmatprep.subr.mxu0 0.0
        %3210 = vmatpush1.msra.mxu0 0.0
        %3211 = vmatprep.subr.mxu0 0.0
        %3212 = vmatpush1.msra.mxu0 0.0
        %3213 = vmatprep.subr.mxu0 0.0
        %3214 = vmatpush1.msra.mxu0 0.0
        %3215 = vmatprep.subr.mxu0 0.0
        %3216 = vmatpush1.msra.mxu0 0.0
        %3217 = vmatprep.subr.mxu0 0.0
        %3218 = vmatpush1.msra.mxu0 0.0
        %3219 = vmatprep.subr.mxu0 0.0
        %3220 = vmatpush1.msra.mxu0 0.0
        %3221 = vmatprep.subr.mxu0 0.0
        %3222 = vmatpush1.msra.mxu0 0.0
        %3223 = vmatprep.subr.mxu0 0.0
        %3224 = vmatpush1.msra.mxu0 0.0
        %3225 = vmatprep.subr.mxu0 0.0
        %3226 = vmatpush1.msra.mxu0 0.0
        %3227 = vmatprep.subr.mxu0 0.0
        %3228 = vmatpush1.msra.mxu0 0.0
        %3229 = vmatprep.subr.mxu0 0.0
        %3230 = vmatpush1.msra.mxu0 0.0
        %3231 = vmatprep.subr.mxu0 0.0
        %3232 = vmatpush1.msra.mxu0 0.0
        %3233 = vmatprep.subr.mxu0 0.0
        %3234 = vmatpush1.msra.mxu0 0.0
        %3235 = vmatprep.subr.mxu0 0.0
        %3236 = vmatpush1.msra.mxu0 0.0
        %v3237 = vand.u32 %v3205, 4294901760
        %3238 = vmatprep.subr.mxu0 %v3237
        %v3239 = vand.u32 %v3202, 4294901760
        %3240 = vmatpush1.msra.mxu0 %v3239
        %3241 = vmatprep.subr.mxu0 0.0
        %3242 = vmatpush2.msra.mxu0 0.0
        %3243 = vmatprep.subr.mxu0 0.0
        %3244 = vmatpush2.msra.mxu0 0.0
        %3245 = vmatprep.subr.mxu0 0.0
        %3246 = vmatpush2.msra.mxu0 0.0
        %3247 = vmatprep.subr.mxu0 0.0
        %3248 = vmatpush2.msra.mxu0 0.0
        %3249 = vmatprep.subr.mxu0 0.0
        %3250 = vmatpush2.msra.mxu0 0.0
        %3251 = vmatprep.subr.mxu0 0.0
        %3252 = vmatpush2.msra.mxu0 0.0
        %3253 = vmatprep.subr.mxu0 0.0
        %3254 = vmatpush2.msra.mxu0 0.0
        %3255 = vmatprep.subr.mxu0 0.0
        %3256 = vmatpush2.msra.mxu0 0.0
        %3257 = vmatprep.subr.mxu0 0.0
        %3258 = vmatpush2.msra.mxu0 0.0
        %3259 = vmatprep.subr.mxu0 0.0
        %3260 = vmatpush2.msra.mxu0 0.0
        %3261 = vmatprep.subr.mxu0 0.0
        %3262 = vmatpush2.msra.mxu0 0.0
        %3263 = vmatprep.subr.mxu0 0.0
        %3264 = vmatpush2.msra.mxu0 0.0
        %3265 = vmatprep.subr.mxu0 0.0
        %3266 = vmatpush2.msra.mxu0 0.0
        %3267 = vmatprep.subr.mxu0 0.0
        %3268 = vmatpush2.msra.mxu0 0.0
        %3269 = vmatprep.subr.mxu0 0.0
        %3270 = vmatpush2.msra.mxu0 0.0
        %3271 = vmatprep.subr.mxu0 0.0
        %3272 = vmatpush2.msra.mxu0 0.0
        %3273 = vmatprep.mubr.f32.mxu0 0.0
        %v3274 = vand.u32 %v3199, 4294901760
        %v3275 = vsub.f32 %v3199, %v3274
        %v3276 = vand.u32 %v3275, 4294901760
        %v3277 = vsub.f32 %v3275, %v3276
        %v3278 = vand.u32 %v3277, 4294901760
        %3279 = vmatmul.mubr.f32.gmra.mxu0 %v3278
        %v3280 = vpop.f32.mrf.mxu0
        %v3281 = vadd.f32 0.0, %v3280
        %v3282 = vpop.f32.mrf.mxu0
        %v3283 = vadd.f32 0.0, %v3282
        %3284 = vdwg.mxu0
        %3285 = vmatprep.subr.mxu0 0.0
        %3286 = vmatpush1.msra.mxu0 0.0
        %3287 = vmatprep.subr.mxu0 0.0
        %3288 = vmatpush1.msra.mxu0 0.0
        %3289 = vmatprep.subr.mxu0 0.0
        %3290 = vmatpush1.msra.mxu0 0.0
        %3291 = vmatprep.subr.mxu0 0.0
        %3292 = vmatpush1.msra.mxu0 0.0
        %3293 = vmatprep.subr.mxu0 0.0
        %3294 = vmatpush1.msra.mxu0 0.0
        %3295 = vmatprep.subr.mxu0 0.0
        %3296 = vmatpush1.msra.mxu0 0.0
        %3297 = vmatprep.subr.mxu0 0.0
        %3298 = vmatpush1.msra.mxu0 0.0
        %3299 = vmatprep.subr.mxu0 0.0
        %3300 = vmatpush1.msra.mxu0 0.0
        %3301 = vmatprep.subr.mxu0 0.0
        %3302 = vmatpush1.msra.mxu0 0.0
        %3303 = vmatprep.subr.mxu0 0.0
        %3304 = vmatpush1.msra.mxu0 0.0
        %3305 = vmatprep.subr.mxu0 0.0
        %3306 = vmatpush1.msra.mxu0 0.0
        %3307 = vmatprep.subr.mxu0 0.0
        %3308 = vmatpush1.msra.mxu0 0.0
        %3309 = vmatprep.subr.mxu0 0.0
        %3310 = vmatpush1.msra.mxu0 0.0
        %3311 = vmatprep.subr.mxu0 0.0
        %3312 = vmatpush1.msra.mxu0 0.0
        %3313 = vmatprep.subr.mxu0 0.0
        %3314 = vmatpush1.msra.mxu0 0.0
        %v3315 = vand.u32 %v3205, 4294901760
        %v3316 = vsub.f32 %v3205, %v3315
        %v3317 = vand.u32 %v3316, 4294901760
        %v3318 = vsub.f32 %v3316, %v3317
        %v3319 = vand.u32 %v3318, 4294901760
        %3320 = vmatprep.subr.mxu0 %v3319
        %v3321 = vand.u32 %v3202, 4294901760
        %v3322 = vsub.f32 %v3202, %v3321
        %v3323 = vand.u32 %v3322, 4294901760
        %v3324 = vsub.f32 %v3322, %v3323
        %v3325 = vand.u32 %v3324, 4294901760
        %3326 = vmatpush1.msra.mxu0 %v3325
        %3327 = vmatprep.subr.mxu0 0.0
        %3328 = vmatpush2.msra.mxu0 0.0
        %3329 = vmatprep.subr.mxu0 0.0
        %3330 = vmatpush2.msra.mxu0 0.0
        %3331 = vmatprep.subr.mxu0 0.0
        %3332 = vmatpush2.msra.mxu0 0.0
        %3333 = vmatprep.subr.mxu0 0.0
        %3334 = vmatpush2.msra.mxu0 0.0
        %3335 = vmatprep.subr.mxu0 0.0
        %3336 = vmatpush2.msra.mxu0 0.0
        %3337 = vmatprep.subr.mxu0 0.0
        %3338 = vmatpush2.msra.mxu0 0.0
        %3339 = vmatprep.subr.mxu0 0.0
        %3340 = vmatpush2.msra.mxu0 0.0
        %3341 = vmatprep.subr.mxu0 0.0
        %3342 = vmatpush2.msra.mxu0 0.0
        %3343 = vmatprep.subr.mxu0 0.0
        %3344 = vmatpush2.msra.mxu0 0.0
        %3345 = vmatprep.subr.mxu0 0.0
        %3346 = vmatpush2.msra.mxu0 0.0
        %3347 = vmatprep.subr.mxu0 0.0
        %3348 = vmatpush2.msra.mxu0 0.0
        %3349 = vmatprep.subr.mxu0 0.0
        %3350 = vmatpush2.msra.mxu0 0.0
        %3351 = vmatprep.subr.mxu0 0.0
        %3352 = vmatpush2.msra.mxu0 0.0
        %3353 = vmatprep.subr.mxu0 0.0
        %3354 = vmatpush2.msra.mxu0 0.0
        %3355 = vmatprep.subr.mxu0 0.0
        %3356 = vmatpush2.msra.mxu0 0.0
        %3357 = vmatprep.subr.mxu0 0.0
        %3358 = vmatpush2.msra.mxu0 0.0
        %3359 = vmatprep.mubr.f32.mxu0 0.0
        %v3360 = vand.u32 %v3199, 4294901760
        %3361 = vmatmul.mubr.f32.gmra.mxu0 %v3360
        %v3362 = vpop.f32.mrf.mxu0
        %v3363 = vadd.f32 %v3281, %v3362
        %v3364 = vpop.f32.mrf.mxu0
        %v3365 = vadd.f32 %v3283, %v3364
        %3366 = vdwg.mxu0
        %3367 = vmatprep.subr.mxu0 0.0
        %3368 = vmatpush1.msra.mxu0 0.0
        %3369 = vmatprep.subr.mxu0 0.0
        %3370 = vmatpush1.msra.mxu0 0.0
        %3371 = vmatprep.subr.mxu0 0.0
        %3372 = vmatpush1.msra.mxu0 0.0
        %3373 = vmatprep.subr.mxu0 0.0
        %3374 = vmatpush1.msra.mxu0 0.0
        %3375 = vmatprep.subr.mxu0 0.0
        %3376 = vmatpush1.msra.mxu0 0.0
        %3377 = vmatprep.subr.mxu0 0.0
        %3378 = vmatpush1.msra.mxu0 0.0
        %3379 = vmatprep.subr.mxu0 0.0
        %3380 = vmatpush1.msra.mxu0 0.0
        %3381 = vmatprep.subr.mxu0 0.0
        %3382 = vmatpush1.msra.mxu0 0.0
        %3383 = vmatprep.subr.mxu0 0.0
        %3384 = vmatpush1.msra.mxu0 0.0
        %3385 = vmatprep.subr.mxu0 0.0
        %3386 = vmatpush1.msra.mxu0 0.0
        %3387 = vmatprep.subr.mxu0 0.0
        %3388 = vmatpush1.msra.mxu0 0.0
        %3389 = vmatprep.subr.mxu0 0.0
        %3390 = vmatpush1.msra.mxu0 0.0
        %3391 = vmatprep.subr.mxu0 0.0
        %3392 = vmatpush1.msra.mxu0 0.0
        %3393 = vmatprep.subr.mxu0 0.0
        %3394 = vmatpush1.msra.mxu0 0.0
        %3395 = vmatprep.subr.mxu0 0.0
        %3396 = vmatpush1.msra.mxu0 0.0
        %v3397 = vand.u32 %v3205, 4294901760
        %v3398 = vsub.f32 %v3205, %v3397
        %3399 = vmatprep.subr.mxu0 %v3398
        %v3400 = vand.u32 %v3202, 4294901760
        %v3401 = vsub.f32 %v3202, %v3400
        %3402 = vmatpush1.msra.mxu0 %v3401
        %3403 = vmatprep.subr.mxu0 0.0
        %3404 = vmatpush2.msra.mxu0 0.0
        %3405 = vmatprep.subr.mxu0 0.0
        %3406 = vmatpush2.msra.mxu0 0.0
        %3407 = vmatprep.subr.mxu0 0.0
        %3408 = vmatpush2.msra.mxu0 0.0
        %3409 = vmatprep.subr.mxu0 0.0
        %3410 = vmatpush2.msra.mxu0 0.0
        %3411 = vmatprep.subr.mxu0 0.0
        %3412 = vmatpush2.msra.mxu0 0.0
        %3413 = vmatprep.subr.mxu0 0.0
        %3414 = vmatpush2.msra.mxu0 0.0
        %3415 = vmatprep.subr.mxu0 0.0
        %3416 = vmatpush2.msra.mxu0 0.0
        %3417 = vmatprep.subr.mxu0 0.0
        %3418 = vmatpush2.msra.mxu0 0.0
        %3419 = vmatprep.subr.mxu0 0.0
        %3420 = vmatpush2.msra.mxu0 0.0
        %3421 = vmatprep.subr.mxu0 0.0
        %3422 = vmatpush2.msra.mxu0 0.0
        %3423 = vmatprep.subr.mxu0 0.0
        %3424 = vmatpush2.msra.mxu0 0.0
        %3425 = vmatprep.subr.mxu0 0.0
        %3426 = vmatpush2.msra.mxu0 0.0
        %3427 = vmatprep.subr.mxu0 0.0
        %3428 = vmatpush2.msra.mxu0 0.0
        %3429 = vmatprep.subr.mxu0 0.0
        %3430 = vmatpush2.msra.mxu0 0.0
        %3431 = vmatprep.subr.mxu0 0.0
        %3432 = vmatpush2.msra.mxu0 0.0
        %3433 = vmatprep.subr.mxu0 0.0
        %3434 = vmatpush2.msra.mxu0 0.0
        %3435 = vmatprep.mubr.f32.mxu0 0.0
        %v3436 = vand.u32 %v3199, 4294901760
        %v3437 = vsub.f32 %v3199, %v3436
        %3438 = vmatmul.mubr.f32.gmra.mxu0 %v3437
        %v3439 = vpop.f32.mrf.mxu0
        %v3440 = vadd.f32 %v3363, %v3439
        %v3441 = vpop.f32.mrf.mxu0
        %v3442 = vadd.f32 %v3365, %v3441
        %3443 = vdwg.mxu0
        %3444 = vmatprep.subr.mxu0 0.0
        %3445 = vmatpush1.msra.mxu0 0.0
        %3446 = vmatprep.subr.mxu0 0.0
        %3447 = vmatpush1.msra.mxu0 0.0
        %3448 = vmatprep.subr.mxu0 0.0
        %3449 = vmatpush1.msra.mxu0 0.0
        %3450 = vmatprep.subr.mxu0 0.0
        %3451 = vmatpush1.msra.mxu0 0.0
        %3452 = vmatprep.subr.mxu0 0.0
        %3453 = vmatpush1.msra.mxu0 0.0
        %3454 = vmatprep.subr.mxu0 0.0
        %3455 = vmatpush1.msra.mxu0 0.0
        %3456 = vmatprep.subr.mxu0 0.0
        %3457 = vmatpush1.msra.mxu0 0.0
        %3458 = vmatprep.subr.mxu0 0.0
        %3459 = vmatpush1.msra.mxu0 0.0
        %3460 = vmatprep.subr.mxu0 0.0
        %3461 = vmatpush1.msra.mxu0 0.0
        %3462 = vmatprep.subr.mxu0 0.0
        %3463 = vmatpush1.msra.mxu0 0.0
        %3464 = vmatprep.subr.mxu0 0.0
        %3465 = vmatpush1.msra.mxu0 0.0
        %3466 = vmatprep.subr.mxu0 0.0
        %3467 = vmatpush1.msra.mxu0 0.0
        %3468 = vmatprep.subr.mxu0 0.0
        %3469 = vmatpush1.msra.mxu0 0.0
        %3470 = vmatprep.subr.mxu0 0.0
        %3471 = vmatpush1.msra.mxu0 0.0
        %3472 = vmatprep.subr.mxu0 0.0
        %3473 = vmatpush1.msra.mxu0 0.0
        %v3474 = vand.u32 %v3205, 4294901760
        %3475 = vmatprep.subr.mxu0 %v3474
        %v3476 = vand.u32 %v3202, 4294901760
        %3477 = vmatpush1.msra.mxu0 %v3476
        %3478 = vmatprep.subr.mxu0 0.0
        %3479 = vmatpush2.msra.mxu0 0.0
        %3480 = vmatprep.subr.mxu0 0.0
        %3481 = vmatpush2.msra.mxu0 0.0
        %3482 = vmatprep.subr.mxu0 0.0
        %3483 = vmatpush2.msra.mxu0 0.0
        %3484 = vmatprep.subr.mxu0 0.0
        %3485 = vmatpush2.msra.mxu0 0.0
        %3486 = vmatprep.subr.mxu0 0.0
        %3487 = vmatpush2.msra.mxu0 0.0
        %3488 = vmatprep.subr.mxu0 0.0
        %3489 = vmatpush2.msra.mxu0 0.0
        %3490 = vmatprep.subr.mxu0 0.0
        %3491 = vmatpush2.msra.mxu0 0.0
        %3492 = vmatprep.subr.mxu0 0.0
        %3493 = vmatpush2.msra.mxu0 0.0
        %3494 = vmatprep.subr.mxu0 0.0
        %3495 = vmatpush2.msra.mxu0 0.0
        %3496 = vmatprep.subr.mxu0 0.0
        %3497 = vmatpush2.msra.mxu0 0.0
        %3498 = vmatprep.subr.mxu0 0.0
        %3499 = vmatpush2.msra.mxu0 0.0
        %3500 = vmatprep.subr.mxu0 0.0
        %3501 = vmatpush2.msra.mxu0 0.0
        %3502 = vmatprep.subr.mxu0 0.0
        %3503 = vmatpush2.msra.mxu0 0.0
        %3504 = vmatprep.subr.mxu0 0.0
        %3505 = vmatpush2.msra.mxu0 0.0
        %3506 = vmatprep.subr.mxu0 0.0
        %3507 = vmatpush2.msra.mxu0 0.0
        %3508 = vmatprep.subr.mxu0 0.0
        %3509 = vmatpush2.msra.mxu0 0.0
        %3510 = vmatprep.mubr.f32.mxu0 0.0
        %v3511 = vand.u32 %v3199, 4294901760
        %v3512 = vsub.f32 %v3199, %v3511
        %v3513 = vand.u32 %v3512, 4294901760
        %3514 = vmatmul.mubr.f32.gmra.mxu0 %v3513
        %v3515 = vpop.f32.mrf.mxu0
        %v3516 = vadd.f32 %v3440, %v3515
        %v3517 = vpop.f32.mrf.mxu0
        %v3518 = vadd.f32 %v3442, %v3517
        %3519 = vdwg.mxu0
        %3520 = vmatprep.subr.mxu0 0.0
        %3521 = vmatpush1.msra.mxu0 0.0
        %3522 = vmatprep.subr.mxu0 0.0
        %3523 = vmatpush1.msra.mxu0 0.0
        %3524 = vmatprep.subr.mxu0 0.0
        %3525 = vmatpush1.msra.mxu0 0.0
        %3526 = vmatprep.subr.mxu0 0.0
        %3527 = vmatpush1.msra.mxu0 0.0
        %3528 = vmatprep.subr.mxu0 0.0
        %3529 = vmatpush1.msra.mxu0 0.0
        %3530 = vmatprep.subr.mxu0 0.0
        %3531 = vmatpush1.msra.mxu0 0.0
        %3532 = vmatprep.subr.mxu0 0.0
        %3533 = vmatpush1.msra.mxu0 0.0
        %3534 = vmatprep.subr.mxu0 0.0
        %3535 = vmatpush1.msra.mxu0 0.0
        %3536 = vmatprep.subr.mxu0 0.0
        %3537 = vmatpush1.msra.mxu0 0.0
        %3538 = vmatprep.subr.mxu0 0.0
        %3539 = vmatpush1.msra.mxu0 0.0
        %3540 = vmatprep.subr.mxu0 0.0
        %3541 = vmatpush1.msra.mxu0 0.0
        %3542 = vmatprep.subr.mxu0 0.0
        %3543 = vmatpush1.msra.mxu0 0.0
        %3544 = vmatprep.subr.mxu0 0.0
        %3545 = vmatpush1.msra.mxu0 0.0
        %3546 = vmatprep.subr.mxu0 0.0
        %3547 = vmatpush1.msra.mxu0 0.0
        %3548 = vmatprep.subr.mxu0 0.0
        %3549 = vmatpush1.msra.mxu0 0.0
        %v3550 = vand.u32 %v3205, 4294901760
        %v3551 = vsub.f32 %v3205, %v3550
        %v3552 = vand.u32 %v3551, 4294901760
        %3553 = vmatprep.subr.mxu0 %v3552
        %v3554 = vand.u32 %v3202, 4294901760
        %v3555 = vsub.f32 %v3202, %v3554
        %v3556 = vand.u32 %v3555, 4294901760
        %3557 = vmatpush1.msra.mxu0 %v3556
        %3558 = vmatprep.subr.mxu0 0.0
        %3559 = vmatpush2.msra.mxu0 0.0
        %3560 = vmatprep.subr.mxu0 0.0
        %3561 = vmatpush2.msra.mxu0 0.0
        %3562 = vmatprep.subr.mxu0 0.0
        %3563 = vmatpush2.msra.mxu0 0.0
        %3564 = vmatprep.subr.mxu0 0.0
        %3565 = vmatpush2.msra.mxu0 0.0
        %3566 = vmatprep.subr.mxu0 0.0
        %3567 = vmatpush2.msra.mxu0 0.0
        %3568 = vmatprep.subr.mxu0 0.0
        %3569 = vmatpush2.msra.mxu0 0.0
        %3570 = vmatprep.subr.mxu0 0.0
        %3571 = vmatpush2.msra.mxu0 0.0
        %3572 = vmatprep.subr.mxu0 0.0
        %3573 = vmatpush2.msra.mxu0 0.0
        %3574 = vmatprep.subr.mxu0 0.0
        %3575 = vmatpush2.msra.mxu0 0.0
        %3576 = vmatprep.subr.mxu0 0.0
        %3577 = vmatpush2.msra.mxu0 0.0
        %3578 = vmatprep.subr.mxu0 0.0
        %3579 = vmatpush2.msra.mxu0 0.0
        %3580 = vmatprep.subr.mxu0 0.0
        %3581 = vmatpush2.msra.mxu0 0.0
        %3582 = vmatprep.subr.mxu0 0.0
        %3583 = vmatpush2.msra.mxu0 0.0
        %3584 = vmatprep.subr.mxu0 0.0
        %3585 = vmatpush2.msra.mxu0 0.0
        %3586 = vmatprep.subr.mxu0 0.0
        %3587 = vmatpush2.msra.mxu0 0.0
        %3588 = vmatprep.subr.mxu0 0.0
        %3589 = vmatpush2.msra.mxu0 0.0
        %3590 = vmatprep.mubr.f32.mxu0 0.0
        %v3591 = vand.u32 %v3199, 4294901760
        %3592 = vmatmul.mubr.f32.gmra.mxu0 %v3591
        %v3593 = vpop.f32.mrf.mxu0
        %v3594 = vadd.f32 %v3516, %v3593
        %v3595 = vpop.f32.mrf.mxu0
        %v3596 = vadd.f32 %v3518, %v3595
        %3597 = vdwg.mxu0
        %3598 = vmatprep.subr.mxu0 0.0
        %3599 = vmatpush1.msra.mxu0 0.0
        %3600 = vmatprep.subr.mxu0 0.0
        %3601 = vmatpush1.msra.mxu0 0.0
        %3602 = vmatprep.subr.mxu0 0.0
        %3603 = vmatpush1.msra.mxu0 0.0
        %3604 = vmatprep.subr.mxu0 0.0
        %3605 = vmatpush1.msra.mxu0 0.0
        %3606 = vmatprep.subr.mxu0 0.0
        %3607 = vmatpush1.msra.mxu0 0.0
        %3608 = vmatprep.subr.mxu0 0.0
        %3609 = vmatpush1.msra.mxu0 0.0
        %3610 = vmatprep.subr.mxu0 0.0
        %3611 = vmatpush1.msra.mxu0 0.0
        %3612 = vmatprep.subr.mxu0 0.0
        %3613 = vmatpush1.msra.mxu0 0.0
        %3614 = vmatprep.subr.mxu0 0.0
        %3615 = vmatpush1.msra.mxu0 0.0
        %3616 = vmatprep.subr.mxu0 0.0
        %3617 = vmatpush1.msra.mxu0 0.0
        %3618 = vmatprep.subr.mxu0 0.0
        %3619 = vmatpush1.msra.mxu0 0.0
        %3620 = vmatprep.subr.mxu0 0.0
        %3621 = vmatpush1.msra.mxu0 0.0
        %3622 = vmatprep.subr.mxu0 0.0
        %3623 = vmatpush1.msra.mxu0 0.0
        %3624 = vmatprep.subr.mxu0 0.0
        %3625 = vmatpush1.msra.mxu0 0.0
        %3626 = vmatprep.subr.mxu0 0.0
        %3627 = vmatpush1.msra.mxu0 0.0
        %v3628 = vand.u32 %v3205, 4294901760
        %3629 = vmatprep.subr.mxu0 %v3628
        %v3630 = vand.u32 %v3202, 4294901760
        %3631 = vmatpush1.msra.mxu0 %v3630
        %3632 = vmatprep.subr.mxu0 0.0
        %3633 = vmatpush2.msra.mxu0 0.0
        %3634 = vmatprep.subr.mxu0 0.0
        %3635 = vmatpush2.msra.mxu0 0.0
        %3636 = vmatprep.subr.mxu0 0.0
        %3637 = vmatpush2.msra.mxu0 0.0
        %3638 = vmatprep.subr.mxu0 0.0
        %3639 = vmatpush2.msra.mxu0 0.0
        %3640 = vmatprep.subr.mxu0 0.0
        %3641 = vmatpush2.msra.mxu0 0.0
        %3642 = vmatprep.subr.mxu0 0.0
        %3643 = vmatpush2.msra.mxu0 0.0
        %3644 = vmatprep.subr.mxu0 0.0
        %3645 = vmatpush2.msra.mxu0 0.0
        %3646 = vmatprep.subr.mxu0 0.0
        %3647 = vmatpush2.msra.mxu0 0.0
        %3648 = vmatprep.subr.mxu0 0.0
        %3649 = vmatpush2.msra.mxu0 0.0
        %3650 = vmatprep.subr.mxu0 0.0
        %3651 = vmatpush2.msra.mxu0 0.0
        %3652 = vmatprep.subr.mxu0 0.0
        %3653 = vmatpush2.msra.mxu0 0.0
        %3654 = vmatprep.subr.mxu0 0.0
        %3655 = vmatpush2.msra.mxu0 0.0
        %3656 = vmatprep.subr.mxu0 0.0
        %3657 = vmatpush2.msra.mxu0 0.0
        %3658 = vmatprep.subr.mxu0 0.0
        %3659 = vmatpush2.msra.mxu0 0.0
        %3660 = vmatprep.subr.mxu0 0.0
        %3661 = vmatpush2.msra.mxu0 0.0
        %3662 = vmatprep.subr.mxu0 0.0
        %3663 = vmatpush2.msra.mxu0 0.0
        %3664 = vmatprep.mubr.f32.mxu0 0.0
        %v3665 = vand.u32 %v3199, 4294901760
        %3666 = vmatmul.mubr.f32.gmra.mxu0 %v3665
        %v3667 = vpop.f32.mrf.mxu0
        %v3668 = vadd.f32 %v3594, %v3667
        %v3669 = vpop.f32.mrf.mxu0
        %v3670 = vadd.f32 %v3596, %v3669
        %3671 = vdwg.mxu0
        %v3672 = vadd.f32 %v3176, %v3668
        %v3673 = vadd.f32 %v3177, %v3670
        %3674 = vrot.lane.b32.xlu0 %v213, 112
        %v3675 = vpop.permute.xlu0 %3674
        %3676 = vrot.lane.b32.xlu0 %v230, 112
        %v3677 = vpop.permute.xlu0 %3676
        %vm3678 = vcmask 916480
        %v3679 = vsel %vm3678, %v3675, %v3677
        %v3683 = vsel %vm3678, %v3677, %v3675
        %v3684 = vsel %vm223, 1, 0
        %v3685 = vsel %vm224, 1, 0
        %vm3686 = vcmp.eq.s32.totalorder %v3684, 1
        %vm3687 = vcmp.eq.s32.totalorder %v3685, 1
        %v3688 = vsel %vm3686, %v3679, 0.0
        %v3689 = vsel %vm3687, %v3683, 0.0
        %s3690 = scalar_lea.vmem %s1, 56
        %v3691 = vld [vmem:[%s3690] sm:$0xff]
        %v3693 = vsel %vm268, %v3691, 0
        %v3696 = vsel %vm272, %v3688, 0
        %v3699 = vsel %vm272, %v3689, 0
        %3701 = vmatprep.subr.mxu0 0.0
        %3702 = vmatpush1.msra.mxu0 0.0
        %3703 = vmatprep.subr.mxu0 0.0
        %3704 = vmatpush1.msra.mxu0 0.0
        %3705 = vmatprep.subr.mxu0 0.0
        %3706 = vmatpush1.msra.mxu0 0.0
        %3707 = vmatprep.subr.mxu0 0.0
        %3708 = vmatpush1.msra.mxu0 0.0
        %3709 = vmatprep.subr.mxu0 0.0
        %3710 = vmatpush1.msra.mxu0 0.0
        %3711 = vmatprep.subr.mxu0 0.0
        %3712 = vmatpush1.msra.mxu0 0.0
        %3713 = vmatprep.subr.mxu0 0.0
        %3714 = vmatpush1.msra.mxu0 0.0
        %3715 = vmatprep.subr.mxu0 0.0
        %3716 = vmatpush1.msra.mxu0 0.0
        %3717 = vmatprep.subr.mxu0 0.0
        %3718 = vmatpush1.msra.mxu0 0.0
        %3719 = vmatprep.subr.mxu0 0.0
        %3720 = vmatpush1.msra.mxu0 0.0
        %3721 = vmatprep.subr.mxu0 0.0
        %3722 = vmatpush1.msra.mxu0 0.0
        %3723 = vmatprep.subr.mxu0 0.0
        %3724 = vmatpush1.msra.mxu0 0.0
        %3725 = vmatprep.subr.mxu0 0.0
        %3726 = vmatpush1.msra.mxu0 0.0
        %3727 = vmatprep.subr.mxu0 0.0
        %3728 = vmatpush1.msra.mxu0 0.0
        %3729 = vmatprep.subr.mxu0 0.0
        %3730 = vmatpush1.msra.mxu0 0.0
        %v3731 = vand.u32 %v3699, 4294901760
        %3732 = vmatprep.subr.mxu0 %v3731
        %v3733 = vand.u32 %v3696, 4294901760
        %3734 = vmatpush1.msra.mxu0 %v3733
        %3735 = vmatprep.subr.mxu0 0.0
        %3736 = vmatpush2.msra.mxu0 0.0
        %3737 = vmatprep.subr.mxu0 0.0
        %3738 = vmatpush2.msra.mxu0 0.0
        %3739 = vmatprep.subr.mxu0 0.0
        %3740 = vmatpush2.msra.mxu0 0.0
        %3741 = vmatprep.subr.mxu0 0.0
        %3742 = vmatpush2.msra.mxu0 0.0
        %3743 = vmatprep.subr.mxu0 0.0
        %3744 = vmatpush2.msra.mxu0 0.0
        %3745 = vmatprep.subr.mxu0 0.0
        %3746 = vmatpush2.msra.mxu0 0.0
        %3747 = vmatprep.subr.mxu0 0.0
        %3748 = vmatpush2.msra.mxu0 0.0
        %3749 = vmatprep.subr.mxu0 0.0
        %3750 = vmatpush2.msra.mxu0 0.0
        %3751 = vmatprep.subr.mxu0 0.0
        %3752 = vmatpush2.msra.mxu0 0.0
        %3753 = vmatprep.subr.mxu0 0.0
        %3754 = vmatpush2.msra.mxu0 0.0
        %3755 = vmatprep.subr.mxu0 0.0
        %3756 = vmatpush2.msra.mxu0 0.0
        %3757 = vmatprep.subr.mxu0 0.0
        %3758 = vmatpush2.msra.mxu0 0.0
        %3759 = vmatprep.subr.mxu0 0.0
        %3760 = vmatpush2.msra.mxu0 0.0
        %3761 = vmatprep.subr.mxu0 0.0
        %3762 = vmatpush2.msra.mxu0 0.0
        %3763 = vmatprep.subr.mxu0 0.0
        %3764 = vmatpush2.msra.mxu0 0.0
        %3765 = vmatprep.subr.mxu0 0.0
        %3766 = vmatpush2.msra.mxu0 0.0
        %3767 = vmatprep.mubr.f32.mxu0 0.0
        %v3768 = vand.u32 %v3693, 4294901760
        %v3769 = vsub.f32 %v3693, %v3768
        %v3770 = vand.u32 %v3769, 4294901760
        %v3771 = vsub.f32 %v3769, %v3770
        %v3772 = vand.u32 %v3771, 4294901760
        %3773 = vmatmul.mubr.f32.gmra.mxu0 %v3772
        %v3774 = vpop.f32.mrf.mxu0
        %v3775 = vadd.f32 0.0, %v3774
        %v3776 = vpop.f32.mrf.mxu0
        %v3777 = vadd.f32 0.0, %v3776
        %3778 = vdwg.mxu0
        %3779 = vmatprep.subr.mxu0 0.0
        %3780 = vmatpush1.msra.mxu0 0.0
        %3781 = vmatprep.subr.mxu0 0.0
        %3782 = vmatpush1.msra.mxu0 0.0
        %3783 = vmatprep.subr.mxu0 0.0
        %3784 = vmatpush1.msra.mxu0 0.0
        %3785 = vmatprep.subr.mxu0 0.0
        %3786 = vmatpush1.msra.mxu0 0.0
        %3787 = vmatprep.subr.mxu0 0.0
        %3788 = vmatpush1.msra.mxu0 0.0
        %3789 = vmatprep.subr.mxu0 0.0
        %3790 = vmatpush1.msra.mxu0 0.0
        %3791 = vmatprep.subr.mxu0 0.0
        %3792 = vmatpush1.msra.mxu0 0.0
        %3793 = vmatprep.subr.mxu0 0.0
        %3794 = vmatpush1.msra.mxu0 0.0
        %3795 = vmatprep.subr.mxu0 0.0
        %3796 = vmatpush1.msra.mxu0 0.0
        %3797 = vmatprep.subr.mxu0 0.0
        %3798 = vmatpush1.msra.mxu0 0.0
        %3799 = vmatprep.subr.mxu0 0.0
        %3800 = vmatpush1.msra.mxu0 0.0
        %3801 = vmatprep.subr.mxu0 0.0
        %3802 = vmatpush1.msra.mxu0 0.0
        %3803 = vmatprep.subr.mxu0 0.0
        %3804 = vmatpush1.msra.mxu0 0.0
        %3805 = vmatprep.subr.mxu0 0.0
        %3806 = vmatpush1.msra.mxu0 0.0
        %3807 = vmatprep.subr.mxu0 0.0
        %3808 = vmatpush1.msra.mxu0 0.0
        %v3809 = vand.u32 %v3699, 4294901760
        %v3810 = vsub.f32 %v3699, %v3809
        %v3811 = vand.u32 %v3810, 4294901760
        %v3812 = vsub.f32 %v3810, %v3811
        %v3813 = vand.u32 %v3812, 4294901760
        %3814 = vmatprep.subr.mxu0 %v3813
        %v3815 = vand.u32 %v3696, 4294901760
        %v3816 = vsub.f32 %v3696, %v3815
        %v3817 = vand.u32 %v3816, 4294901760
        %v3818 = vsub.f32 %v3816, %v3817
        %v3819 = vand.u32 %v3818, 4294901760
        %3820 = vmatpush1.msra.mxu0 %v3819
        %3821 = vmatprep.subr.mxu0 0.0
        %3822 = vmatpush2.msra.mxu0 0.0
        %3823 = vmatprep.subr.mxu0 0.0
        %3824 = vmatpush2.msra.mxu0 0.0
        %3825 = vmatprep.subr.mxu0 0.0
        %3826 = vmatpush2.msra.mxu0 0.0
        %3827 = vmatprep.subr.mxu0 0.0
        %3828 = vmatpush2.msra.mxu0 0.0
        %3829 = vmatprep.subr.mxu0 0.0
        %3830 = vmatpush2.msra.mxu0 0.0
        %3831 = vmatprep.subr.mxu0 0.0
        %3832 = vmatpush2.msra.mxu0 0.0
        %3833 = vmatprep.subr.mxu0 0.0
        %3834 = vmatpush2.msra.mxu0 0.0
        %3835 = vmatprep.subr.mxu0 0.0
        %3836 = vmatpush2.msra.mxu0 0.0
        %3837 = vmatprep.subr.mxu0 0.0
        %3838 = vmatpush2.msra.mxu0 0.0
        %3839 = vmatprep.subr.mxu0 0.0
        %3840 = vmatpush2.msra.mxu0 0.0
        %3841 = vmatprep.subr.mxu0 0.0
        %3842 = vmatpush2.msra.mxu0 0.0
        %3843 = vmatprep.subr.mxu0 0.0
        %3844 = vmatpush2.msra.mxu0 0.0
        %3845 = vmatprep.subr.mxu0 0.0
        %3846 = vmatpush2.msra.mxu0 0.0
        %3847 = vmatprep.subr.mxu0 0.0
        %3848 = vmatpush2.msra.mxu0 0.0
        %3849 = vmatprep.subr.mxu0 0.0
        %3850 = vmatpush2.msra.mxu0 0.0
        %3851 = vmatprep.subr.mxu0 0.0
        %3852 = vmatpush2.msra.mxu0 0.0
        %3853 = vmatprep.mubr.f32.mxu0 0.0
        %v3854 = vand.u32 %v3693, 4294901760
        %3855 = vmatmul.mubr.f32.gmra.mxu0 %v3854
        %v3856 = vpop.f32.mrf.mxu0
        %v3857 = vadd.f32 %v3775, %v3856
        %v3858 = vpop.f32.mrf.mxu0
        %v3859 = vadd.f32 %v3777, %v3858
        %3860 = vdwg.mxu0
        %3861 = vmatprep.subr.mxu0 0.0
        %3862 = vmatpush1.msra.mxu0 0.0
        %3863 = vmatprep.subr.mxu0 0.0
        %3864 = vmatpush1.msra.mxu0 0.0
        %3865 = vmatprep.subr.mxu0 0.0
        %3866 = vmatpush1.msra.mxu0 0.0
        %3867 = vmatprep.subr.mxu0 0.0
        %3868 = vmatpush1.msra.mxu0 0.0
        %3869 = vmatprep.subr.mxu0 0.0
        %3870 = vmatpush1.msra.mxu0 0.0
        %3871 = vmatprep.subr.mxu0 0.0
        %3872 = vmatpush1.msra.mxu0 0.0
        %3873 = vmatprep.subr.mxu0 0.0
        %3874 = vmatpush1.msra.mxu0 0.0
        %3875 = vmatprep.subr.mxu0 0.0
        %3876 = vmatpush1.msra.mxu0 0.0
        %3877 = vmatprep.subr.mxu0 0.0
        %3878 = vmatpush1.msra.mxu0 0.0
        %3879 = vmatprep.subr.mxu0 0.0
        %3880 = vmatpush1.msra.mxu0 0.0
        %3881 = vmatprep.subr.mxu0 0.0
        %3882 = vmatpush1.msra.mxu0 0.0
        %3883 = vmatprep.subr.mxu0 0.0
        %3884 = vmatpush1.msra.mxu0 0.0
        %3885 = vmatprep.subr.mxu0 0.0
        %3886 = vmatpush1.msra.mxu0 0.0
        %3887 = vmatprep.subr.mxu0 0.0
        %3888 = vmatpush1.msra.mxu0 0.0
        %3889 = vmatprep.subr.mxu0 0.0
        %3890 = vmatpush1.msra.mxu0 0.0
        %v3891 = vand.u32 %v3699, 4294901760
        %v3892 = vsub.f32 %v3699, %v3891
        %3893 = vmatprep.subr.mxu0 %v3892
        %v3894 = vand.u32 %v3696, 4294901760
        %v3895 = vsub.f32 %v3696, %v3894
        %3896 = vmatpush1.msra.mxu0 %v3895
        %3897 = vmatprep.subr.mxu0 0.0
        %3898 = vmatpush2.msra.mxu0 0.0
        %3899 = vmatprep.subr.mxu0 0.0
        %3900 = vmatpush2.msra.mxu0 0.0
        %3901 = vmatprep.subr.mxu0 0.0
        %3902 = vmatpush2.msra.mxu0 0.0
        %3903 = vmatprep.subr.mxu0 0.0
        %3904 = vmatpush2.msra.mxu0 0.0
        %3905 = vmatprep.subr.mxu0 0.0
        %3906 = vmatpush2.msra.mxu0 0.0
        %3907 = vmatprep.subr.mxu0 0.0
        %3908 = vmatpush2.msra.mxu0 0.0
        %3909 = vmatprep.subr.mxu0 0.0
        %3910 = vmatpush2.msra.mxu0 0.0
        %3911 = vmatprep.subr.mxu0 0.0
        %3912 = vmatpush2.msra.mxu0 0.0
        %3913 = vmatprep.subr.mxu0 0.0
        %3914 = vmatpush2.msra.mxu0 0.0
        %3915 = vmatprep.subr.mxu0 0.0
        %3916 = vmatpush2.msra.mxu0 0.0
        %3917 = vmatprep.subr.mxu0 0.0
        %3918 = vmatpush2.msra.mxu0 0.0
        %3919 = vmatprep.subr.mxu0 0.0
        %3920 = vmatpush2.msra.mxu0 0.0
        %3921 = vmatprep.subr.mxu0 0.0
        %3922 = vmatpush2.msra.mxu0 0.0
        %3923 = vmatprep.subr.mxu0 0.0
        %3924 = vmatpush2.msra.mxu0 0.0
        %3925 = vmatprep.subr.mxu0 0.0
        %3926 = vmatpush2.msra.mxu0 0.0
        %3927 = vmatprep.subr.mxu0 0.0
        %3928 = vmatpush2.msra.mxu0 0.0
        %3929 = vmatprep.mubr.f32.mxu0 0.0
        %v3930 = vand.u32 %v3693, 4294901760
        %v3931 = vsub.f32 %v3693, %v3930
        %3932 = vmatmul.mubr.f32.gmra.mxu0 %v3931
        %v3933 = vpop.f32.mrf.mxu0
        %v3934 = vadd.f32 %v3857, %v3933
        %v3935 = vpop.f32.mrf.mxu0
        %v3936 = vadd.f32 %v3859, %v3935
        %3937 = vdwg.mxu0
        %3938 = vmatprep.subr.mxu0 0.0
        %3939 = vmatpush1.msra.mxu0 0.0
        %3940 = vmatprep.subr.mxu0 0.0
        %3941 = vmatpush1.msra.mxu0 0.0
        %3942 = vmatprep.subr.mxu0 0.0
        %3943 = vmatpush1.msra.mxu0 0.0
        %3944 = vmatprep.subr.mxu0 0.0
        %3945 = vmatpush1.msra.mxu0 0.0
        %3946 = vmatprep.subr.mxu0 0.0
        %3947 = vmatpush1.msra.mxu0 0.0
        %3948 = vmatprep.subr.mxu0 0.0
        %3949 = vmatpush1.msra.mxu0 0.0
        %3950 = vmatprep.subr.mxu0 0.0
        %3951 = vmatpush1.msra.mxu0 0.0
        %3952 = vmatprep.subr.mxu0 0.0
        %3953 = vmatpush1.msra.mxu0 0.0
        %3954 = vmatprep.subr.mxu0 0.0
        %3955 = vmatpush1.msra.mxu0 0.0
        %3956 = vmatprep.subr.mxu0 0.0
        %3957 = vmatpush1.msra.mxu0 0.0
        %3958 = vmatprep.subr.mxu0 0.0
        %3959 = vmatpush1.msra.mxu0 0.0
        %3960 = vmatprep.subr.mxu0 0.0
        %3961 = vmatpush1.msra.mxu0 0.0
        %3962 = vmatprep.subr.mxu0 0.0
        %3963 = vmatpush1.msra.mxu0 0.0
        %3964 = vmatprep.subr.mxu0 0.0
        %3965 = vmatpush1.msra.mxu0 0.0
        %3966 = vmatprep.subr.mxu0 0.0
        %3967 = vmatpush1.msra.mxu0 0.0
        %v3968 = vand.u32 %v3699, 4294901760
        %3969 = vmatprep.subr.mxu0 %v3968
        %v3970 = vand.u32 %v3696, 4294901760
        %3971 = vmatpush1.msra.mxu0 %v3970
        %3972 = vmatprep.subr.mxu0 0.0
        %3973 = vmatpush2.msra.mxu0 0.0
        %3974 = vmatprep.subr.mxu0 0.0
        %3975 = vmatpush2.msra.mxu0 0.0
        %3976 = vmatprep.subr.mxu0 0.0
        %3977 = vmatpush2.msra.mxu0 0.0
        %3978 = vmatprep.subr.mxu0 0.0
        %3979 = vmatpush2.msra.mxu0 0.0
        %3980 = vmatprep.subr.mxu0 0.0
        %3981 = vmatpush2.msra.mxu0 0.0
        %3982 = vmatprep.subr.mxu0 0.0
        %3983 = vmatpush2.msra.mxu0 0.0
        %3984 = vmatprep.subr.mxu0 0.0
        %3985 = vmatpush2.msra.mxu0 0.0
        %3986 = vmatprep.subr.mxu0 0.0
        %3987 = vmatpush2.msra.mxu0 0.0
        %3988 = vmatprep.subr.mxu0 0.0
        %3989 = vmatpush2.msra.mxu0 0.0
        %3990 = vmatprep.subr.mxu0 0.0
        %3991 = vmatpush2.msra.mxu0 0.0
        %3992 = vmatprep.subr.mxu0 0.0
        %3993 = vmatpush2.msra.mxu0 0.0
        %3994 = vmatprep.subr.mxu0 0.0
        %3995 = vmatpush2.msra.mxu0 0.0
        %3996 = vmatprep.subr.mxu0 0.0
        %3997 = vmatpush2.msra.mxu0 0.0
        %3998 = vmatprep.subr.mxu0 0.0
        %3999 = vmatpush2.msra.mxu0 0.0
        %4000 = vmatprep.subr.mxu0 0.0
        %4001 = vmatpush2.msra.mxu0 0.0
        %4002 = vmatprep.subr.mxu0 0.0
        %4003 = vmatpush2.msra.mxu0 0.0
        %4004 = vmatprep.mubr.f32.mxu0 0.0
        %v4005 = vand.u32 %v3693, 4294901760
        %v4006 = vsub.f32 %v3693, %v4005
        %v4007 = vand.u32 %v4006, 4294901760
        %4008 = vmatmul.mubr.f32.gmra.mxu0 %v4007
        %v4009 = vpop.f32.mrf.mxu0
        %v4010 = vadd.f32 %v3934, %v4009
        %v4011 = vpop.f32.mrf.mxu0
        %v4012 = vadd.f32 %v3936, %v4011
        %4013 = vdwg.mxu0
        %4014 = vmatprep.subr.mxu0 0.0
        %4015 = vmatpush1.msra.mxu0 0.0
        %4016 = vmatprep.subr.mxu0 0.0
        %4017 = vmatpush1.msra.mxu0 0.0
        %4018 = vmatprep.subr.mxu0 0.0
        %4019 = vmatpush1.msra.mxu0 0.0
        %4020 = vmatprep.subr.mxu0 0.0
        %4021 = vmatpush1.msra.mxu0 0.0
        %4022 = vmatprep.subr.mxu0 0.0
        %4023 = vmatpush1.msra.mxu0 0.0
        %4024 = vmatprep.subr.mxu0 0.0
        %4025 = vmatpush1.msra.mxu0 0.0
        %4026 = vmatprep.subr.mxu0 0.0
        %4027 = vmatpush1.msra.mxu0 0.0
        %4028 = vmatprep.subr.mxu0 0.0
        %4029 = vmatpush1.msra.mxu0 0.0
        %4030 = vmatprep.subr.mxu0 0.0
        %4031 = vmatpush1.msra.mxu0 0.0
        %4032 = vmatprep.subr.mxu0 0.0
        %4033 = vmatpush1.msra.mxu0 0.0
        %4034 = vmatprep.subr.mxu0 0.0
        %4035 = vmatpush1.msra.mxu0 0.0
        %4036 = vmatprep.subr.mxu0 0.0
        %4037 = vmatpush1.msra.mxu0 0.0
        %4038 = vmatprep.subr.mxu0 0.0
        %4039 = vmatpush1.msra.mxu0 0.0
        %4040 = vmatprep.subr.mxu0 0.0
        %4041 = vmatpush1.msra.mxu0 0.0
        %4042 = vmatprep.subr.mxu0 0.0
        %4043 = vmatpush1.msra.mxu0 0.0
        %v4044 = vand.u32 %v3699, 4294901760
        %v4045 = vsub.f32 %v3699, %v4044
        %v4046 = vand.u32 %v4045, 4294901760
        %4047 = vmatprep.subr.mxu0 %v4046
        %v4048 = vand.u32 %v3696, 4294901760
        %v4049 = vsub.f32 %v3696, %v4048
        %v4050 = vand.u32 %v4049, 4294901760
        %4051 = vmatpush1.msra.mxu0 %v4050
        %4052 = vmatprep.subr.mxu0 0.0
        %4053 = vmatpush2.msra.mxu0 0.0
        %4054 = vmatprep.subr.mxu0 0.0
        %4055 = vmatpush2.msra.mxu0 0.0
        %4056 = vmatprep.subr.mxu0 0.0
        %4057 = vmatpush2.msra.mxu0 0.0
        %4058 = vmatprep.subr.mxu0 0.0
        %4059 = vmatpush2.msra.mxu0 0.0
        %4060 = vmatprep.subr.mxu0 0.0
        %4061 = vmatpush2.msra.mxu0 0.0
        %4062 = vmatprep.subr.mxu0 0.0
        %4063 = vmatpush2.msra.mxu0 0.0
        %4064 = vmatprep.subr.mxu0 0.0
        %4065 = vmatpush2.msra.mxu0 0.0
        %4066 = vmatprep.subr.mxu0 0.0
        %4067 = vmatpush2.msra.mxu0 0.0
        %4068 = vmatprep.subr.mxu0 0.0
        %4069 = vmatpush2.msra.mxu0 0.0
        %4070 = vmatprep.subr.mxu0 0.0
        %4071 = vmatpush2.msra.mxu0 0.0
        %4072 = vmatprep.subr.mxu0 0.0
        %4073 = vmatpush2.msra.mxu0 0.0
        %4074 = vmatprep.subr.mxu0 0.0
        %4075 = vmatpush2.msra.mxu0 0.0
        %4076 = vmatprep.subr.mxu0 0.0
        %4077 = vmatpush2.msra.mxu0 0.0
        %4078 = vmatprep.subr.mxu0 0.0
        %4079 = vmatpush2.msra.mxu0 0.0
        %4080 = vmatprep.subr.mxu0 0.0
        %4081 = vmatpush2.msra.mxu0 0.0
        %4082 = vmatprep.subr.mxu0 0.0
        %4083 = vmatpush2.msra.mxu0 0.0
        %4084 = vmatprep.mubr.f32.mxu0 0.0
        %v4085 = vand.u32 %v3693, 4294901760
        %4086 = vmatmul.mubr.f32.gmra.mxu0 %v4085
        %v4087 = vpop.f32.mrf.mxu0
        %v4088 = vadd.f32 %v4010, %v4087
        %v4089 = vpop.f32.mrf.mxu0
        %v4090 = vadd.f32 %v4012, %v4089
        %4091 = vdwg.mxu0
        %4092 = vmatprep.subr.mxu0 0.0
        %4093 = vmatpush1.msra.mxu0 0.0
        %4094 = vmatprep.subr.mxu0 0.0
        %4095 = vmatpush1.msra.mxu0 0.0
        %4096 = vmatprep.subr.mxu0 0.0
        %4097 = vmatpush1.msra.mxu0 0.0
        %4098 = vmatprep.subr.mxu0 0.0
        %4099 = vmatpush1.msra.mxu0 0.0
        %4100 = vmatprep.subr.mxu0 0.0
        %4101 = vmatpush1.msra.mxu0 0.0
        %4102 = vmatprep.subr.mxu0 0.0
        %4103 = vmatpush1.msra.mxu0 0.0
        %4104 = vmatprep.subr.mxu0 0.0
        %4105 = vmatpush1.msra.mxu0 0.0
        %4106 = vmatprep.subr.mxu0 0.0
        %4107 = vmatpush1.msra.mxu0 0.0
        %4108 = vmatprep.subr.mxu0 0.0
        %4109 = vmatpush1.msra.mxu0 0.0
        %4110 = vmatprep.subr.mxu0 0.0
        %4111 = vmatpush1.msra.mxu0 0.0
        %4112 = vmatprep.subr.mxu0 0.0
        %4113 = vmatpush1.msra.mxu0 0.0
        %4114 = vmatprep.subr.mxu0 0.0
        %4115 = vmatpush1.msra.mxu0 0.0
        %4116 = vmatprep.subr.mxu0 0.0
        %4117 = vmatpush1.msra.mxu0 0.0
        %4118 = vmatprep.subr.mxu0 0.0
        %4119 = vmatpush1.msra.mxu0 0.0
        %4120 = vmatprep.subr.mxu0 0.0
        %4121 = vmatpush1.msra.mxu0 0.0
        %v4122 = vand.u32 %v3699, 4294901760
        %4123 = vmatprep.subr.mxu0 %v4122
        %v4124 = vand.u32 %v3696, 4294901760
        %4125 = vmatpush1.msra.mxu0 %v4124
        %4126 = vmatprep.subr.mxu0 0.0
        %4127 = vmatpush2.msra.mxu0 0.0
        %4128 = vmatprep.subr.mxu0 0.0
        %4129 = vmatpush2.msra.mxu0 0.0
        %4130 = vmatprep.subr.mxu0 0.0
        %4131 = vmatpush2.msra.mxu0 0.0
        %4132 = vmatprep.subr.mxu0 0.0
        %4133 = vmatpush2.msra.mxu0 0.0
        %4134 = vmatprep.subr.mxu0 0.0
        %4135 = vmatpush2.msra.mxu0 0.0
        %4136 = vmatprep.subr.mxu0 0.0
        %4137 = vmatpush2.msra.mxu0 0.0
        %4138 = vmatprep.subr.mxu0 0.0
        %4139 = vmatpush2.msra.mxu0 0.0
        %4140 = vmatprep.subr.mxu0 0.0
        %4141 = vmatpush2.msra.mxu0 0.0
        %4142 = vmatprep.subr.mxu0 0.0
        %4143 = vmatpush2.msra.mxu0 0.0
        %4144 = vmatprep.subr.mxu0 0.0
        %4145 = vmatpush2.msra.mxu0 0.0
        %4146 = vmatprep.subr.mxu0 0.0
        %4147 = vmatpush2.msra.mxu0 0.0
        %4148 = vmatprep.subr.mxu0 0.0
        %4149 = vmatpush2.msra.mxu0 0.0
        %4150 = vmatprep.subr.mxu0 0.0
        %4151 = vmatpush2.msra.mxu0 0.0
        %4152 = vmatprep.subr.mxu0 0.0
        %4153 = vmatpush2.msra.mxu0 0.0
        %4154 = vmatprep.subr.mxu0 0.0
        %4155 = vmatpush2.msra.mxu0 0.0
        %4156 = vmatprep.subr.mxu0 0.0
        %4157 = vmatpush2.msra.mxu0 0.0
        %4158 = vmatprep.mubr.f32.mxu0 0.0
        %v4159 = vand.u32 %v3693, 4294901760
        %4160 = vmatmul.mubr.f32.gmra.mxu0 %v4159
        %v4161 = vpop.f32.mrf.mxu0
        %v4162 = vadd.f32 %v4088, %v4161
        %v4163 = vpop.f32.mrf.mxu0
        %v4164 = vadd.f32 %v4090, %v4163
        %4165 = vdwg.mxu0
        %v4166 = vadd.f32 %v3672, %v4162
        %v4167 = vadd.f32 %v3673, %v4164
        %4168 = vrot.lane.b32.xlu0 %v213, 111
        %v4169 = vpop.permute.xlu0 %4168
        %4170 = vrot.lane.b32.xlu0 %v230, 111
        %v4171 = vpop.permute.xlu0 %4170
        %vm4172 = vcmask 908288
        %v4173 = vsel %vm4172, %v4169, %v4171
        %v4177 = vsel %vm4172, %v4171, %v4169
        %vm4178 = vmand %vm223, %vm227
        %vm4179 = vmand %vm224, %vm228
        %v4180 = vsel %vm4178, 1, 0
        %v4181 = vsel %vm4179, 1, 0
        %vm4182 = vcmp.eq.s32.totalorder %v4180, 1
        %vm4183 = vcmp.eq.s32.totalorder %v4181, 1
        %v4184 = vsel %vm4182, %v4173, 0.0
        %v4185 = vsel %vm4183, %v4177, 0.0
        %s4186 = scalar_lea.vmem %s1, 64
        %v4187 = vld [vmem:[%s4186] sm:$0xff]
        %v4189 = vsel %vm268, %v4187, 0
        %v4192 = vsel %vm272, %v4184, 0
        %v4195 = vsel %vm272, %v4185, 0
        %4197 = vmatprep.subr.mxu0 0.0
        %4198 = vmatpush1.msra.mxu0 0.0
        %4199 = vmatprep.subr.mxu0 0.0
        %4200 = vmatpush1.msra.mxu0 0.0
        %4201 = vmatprep.subr.mxu0 0.0
        %4202 = vmatpush1.msra.mxu0 0.0
        %4203 = vmatprep.subr.mxu0 0.0
        %4204 = vmatpush1.msra.mxu0 0.0
        %4205 = vmatprep.subr.mxu0 0.0
        %4206 = vmatpush1.msra.mxu0 0.0
        %4207 = vmatprep.subr.mxu0 0.0
        %4208 = vmatpush1.msra.mxu0 0.0
        %4209 = vmatprep.subr.mxu0 0.0
        %4210 = vmatpush1.msra.mxu0 0.0
        %4211 = vmatprep.subr.mxu0 0.0
        %4212 = vmatpush1.msra.mxu0 0.0
        %4213 = vmatprep.subr.mxu0 0.0
        %4214 = vmatpush1.msra.mxu0 0.0
        %4215 = vmatprep.subr.mxu0 0.0
        %4216 = vmatpush1.msra.mxu0 0.0
        %4217 = vmatprep.subr.mxu0 0.0
        %4218 = vmatpush1.msra.mxu0 0.0
        %4219 = vmatprep.subr.mxu0 0.0
        %4220 = vmatpush1.msra.mxu0 0.0
        %4221 = vmatprep.subr.mxu0 0.0
        %4222 = vmatpush1.msra.mxu0 0.0
        %4223 = vmatprep.subr.mxu0 0.0
        %4224 = vmatpush1.msra.mxu0 0.0
        %4225 = vmatprep.subr.mxu0 0.0
        %4226 = vmatpush1.msra.mxu0 0.0
        %v4227 = vand.u32 %v4195, 4294901760
        %4228 = vmatprep.subr.mxu0 %v4227
        %v4229 = vand.u32 %v4192, 4294901760
        %4230 = vmatpush1.msra.mxu0 %v4229
        %4231 = vmatprep.subr.mxu0 0.0
        %4232 = vmatpush2.msra.mxu0 0.0
        %4233 = vmatprep.subr.mxu0 0.0
        %4234 = vmatpush2.msra.mxu0 0.0
        %4235 = vmatprep.subr.mxu0 0.0
        %4236 = vmatpush2.msra.mxu0 0.0
        %4237 = vmatprep.subr.mxu0 0.0
        %4238 = vmatpush2.msra.mxu0 0.0
        %4239 = vmatprep.subr.mxu0 0.0
        %4240 = vmatpush2.msra.mxu0 0.0
        %4241 = vmatprep.subr.mxu0 0.0
        %4242 = vmatpush2.msra.mxu0 0.0
        %4243 = vmatprep.subr.mxu0 0.0
        %4244 = vmatpush2.msra.mxu0 0.0
        %4245 = vmatprep.subr.mxu0 0.0
        %4246 = vmatpush2.msra.mxu0 0.0
        %4247 = vmatprep.subr.mxu0 0.0
        %4248 = vmatpush2.msra.mxu0 0.0
        %4249 = vmatprep.subr.mxu0 0.0
        %4250 = vmatpush2.msra.mxu0 0.0
        %4251 = vmatprep.subr.mxu0 0.0
        %4252 = vmatpush2.msra.mxu0 0.0
        %4253 = vmatprep.subr.mxu0 0.0
        %4254 = vmatpush2.msra.mxu0 0.0
        %4255 = vmatprep.subr.mxu0 0.0
        %4256 = vmatpush2.msra.mxu0 0.0
        %4257 = vmatprep.subr.mxu0 0.0
        %4258 = vmatpush2.msra.mxu0 0.0
        %4259 = vmatprep.subr.mxu0 0.0
        %4260 = vmatpush2.msra.mxu0 0.0
        %4261 = vmatprep.subr.mxu0 0.0
        %4262 = vmatpush2.msra.mxu0 0.0
        %4263 = vmatprep.mubr.f32.mxu0 0.0
        %v4264 = vand.u32 %v4189, 4294901760
        %v4265 = vsub.f32 %v4189, %v4264
        %v4266 = vand.u32 %v4265, 4294901760
        %v4267 = vsub.f32 %v4265, %v4266
        %v4268 = vand.u32 %v4267, 4294901760
        %4269 = vmatmul.mubr.f32.gmra.mxu0 %v4268
        %v4270 = vpop.f32.mrf.mxu0
        %v4271 = vadd.f32 0.0, %v4270
        %v4272 = vpop.f32.mrf.mxu0
        %v4273 = vadd.f32 0.0, %v4272
        %4274 = vdwg.mxu0
        %4275 = vmatprep.subr.mxu0 0.0
        %4276 = vmatpush1.msra.mxu0 0.0
        %4277 = vmatprep.subr.mxu0 0.0
        %4278 = vmatpush1.msra.mxu0 0.0
        %4279 = vmatprep.subr.mxu0 0.0
        %4280 = vmatpush1.msra.mxu0 0.0
        %4281 = vmatprep.subr.mxu0 0.0
        %4282 = vmatpush1.msra.mxu0 0.0
        %4283 = vmatprep.subr.mxu0 0.0
        %4284 = vmatpush1.msra.mxu0 0.0
        %4285 = vmatprep.subr.mxu0 0.0
        %4286 = vmatpush1.msra.mxu0 0.0
        %4287 = vmatprep.subr.mxu0 0.0
        %4288 = vmatpush1.msra.mxu0 0.0
        %4289 = vmatprep.subr.mxu0 0.0
        %4290 = vmatpush1.msra.mxu0 0.0
        %4291 = vmatprep.subr.mxu0 0.0
        %4292 = vmatpush1.msra.mxu0 0.0
        %4293 = vmatprep.subr.mxu0 0.0
        %4294 = vmatpush1.msra.mxu0 0.0
        %4295 = vmatprep.subr.mxu0 0.0
        %4296 = vmatpush1.msra.mxu0 0.0
        %4297 = vmatprep.subr.mxu0 0.0
        %4298 = vmatpush1.msra.mxu0 0.0
        %4299 = vmatprep.subr.mxu0 0.0
        %4300 = vmatpush1.msra.mxu0 0.0
        %4301 = vmatprep.subr.mxu0 0.0
        %4302 = vmatpush1.msra.mxu0 0.0
        %4303 = vmatprep.subr.mxu0 0.0
        %4304 = vmatpush1.msra.mxu0 0.0
        %v4305 = vand.u32 %v4195, 4294901760
        %v4306 = vsub.f32 %v4195, %v4305
        %v4307 = vand.u32 %v4306, 4294901760
        %v4308 = vsub.f32 %v4306, %v4307
        %v4309 = vand.u32 %v4308, 4294901760
        %4310 = vmatprep.subr.mxu0 %v4309
        %v4311 = vand.u32 %v4192, 4294901760
        %v4312 = vsub.f32 %v4192, %v4311
        %v4313 = vand.u32 %v4312, 4294901760
        %v4314 = vsub.f32 %v4312, %v4313
        %v4315 = vand.u32 %v4314, 4294901760
        %4316 = vmatpush1.msra.mxu0 %v4315
        %4317 = vmatprep.subr.mxu0 0.0
        %4318 = vmatpush2.msra.mxu0 0.0
        %4319 = vmatprep.subr.mxu0 0.0
        %4320 = vmatpush2.msra.mxu0 0.0
        %4321 = vmatprep.subr.mxu0 0.0
        %4322 = vmatpush2.msra.mxu0 0.0
        %4323 = vmatprep.subr.mxu0 0.0
        %4324 = vmatpush2.msra.mxu0 0.0
        %4325 = vmatprep.subr.mxu0 0.0
        %4326 = vmatpush2.msra.mxu0 0.0
        %4327 = vmatprep.subr.mxu0 0.0
        %4328 = vmatpush2.msra.mxu0 0.0
        %4329 = vmatprep.subr.mxu0 0.0
        %4330 = vmatpush2.msra.mxu0 0.0
        %4331 = vmatprep.subr.mxu0 0.0
        %4332 = vmatpush2.msra.mxu0 0.0
        %4333 = vmatprep.subr.mxu0 0.0
        %4334 = vmatpush2.msra.mxu0 0.0
        %4335 = vmatprep.subr.mxu0 0.0
        %4336 = vmatpush2.msra.mxu0 0.0
        %4337 = vmatprep.subr.mxu0 0.0
        %4338 = vmatpush2.msra.mxu0 0.0
        %4339 = vmatprep.subr.mxu0 0.0
        %4340 = vmatpush2.msra.mxu0 0.0
        %4341 = vmatprep.subr.mxu0 0.0
        %4342 = vmatpush2.msra.mxu0 0.0
        %4343 = vmatprep.subr.mxu0 0.0
        %4344 = vmatpush2.msra.mxu0 0.0
        %4345 = vmatprep.subr.mxu0 0.0
        %4346 = vmatpush2.msra.mxu0 0.0
        %4347 = vmatprep.subr.mxu0 0.0
        %4348 = vmatpush2.msra.mxu0 0.0
        %4349 = vmatprep.mubr.f32.mxu0 0.0
        %v4350 = vand.u32 %v4189, 4294901760
        %4351 = vmatmul.mubr.f32.gmra.mxu0 %v4350
        %v4352 = vpop.f32.mrf.mxu0
        %v4353 = vadd.f32 %v4271, %v4352
        %v4354 = vpop.f32.mrf.mxu0
        %v4355 = vadd.f32 %v4273, %v4354
        %4356 = vdwg.mxu0
        %4357 = vmatprep.subr.mxu0 0.0
        %4358 = vmatpush1.msra.mxu0 0.0
        %4359 = vmatprep.subr.mxu0 0.0
        %4360 = vmatpush1.msra.mxu0 0.0
        %4361 = vmatprep.subr.mxu0 0.0
        %4362 = vmatpush1.msra.mxu0 0.0
        %4363 = vmatprep.subr.mxu0 0.0
        %4364 = vmatpush1.msra.mxu0 0.0
        %4365 = vmatprep.subr.mxu0 0.0
        %4366 = vmatpush1.msra.mxu0 0.0
        %4367 = vmatprep.subr.mxu0 0.0
        %4368 = vmatpush1.msra.mxu0 0.0
        %4369 = vmatprep.subr.mxu0 0.0
        %4370 = vmatpush1.msra.mxu0 0.0
        %4371 = vmatprep.subr.mxu0 0.0
        %4372 = vmatpush1.msra.mxu0 0.0
        %4373 = vmatprep.subr.mxu0 0.0
        %4374 = vmatpush1.msra.mxu0 0.0
        %4375 = vmatprep.subr.mxu0 0.0
        %4376 = vmatpush1.msra.mxu0 0.0
        %4377 = vmatprep.subr.mxu0 0.0
        %4378 = vmatpush1.msra.mxu0 0.0
        %4379 = vmatprep.subr.mxu0 0.0
        %4380 = vmatpush1.msra.mxu0 0.0
        %4381 = vmatprep.subr.mxu0 0.0
        %4382 = vmatpush1.msra.mxu0 0.0
        %4383 = vmatprep.subr.mxu0 0.0
        %4384 = vmatpush1.msra.mxu0 0.0
        %4385 = vmatprep.subr.mxu0 0.0
        %4386 = vmatpush1.msra.mxu0 0.0
        %v4387 = vand.u32 %v4195, 4294901760
        %v4388 = vsub.f32 %v4195, %v4387
        %4389 = vmatprep.subr.mxu0 %v4388
        %v4390 = vand.u32 %v4192, 4294901760
        %v4391 = vsub.f32 %v4192, %v4390
        %4392 = vmatpush1.msra.mxu0 %v4391
        %4393 = vmatprep.subr.mxu0 0.0
        %4394 = vmatpush2.msra.mxu0 0.0
        %4395 = vmatprep.subr.mxu0 0.0
        %4396 = vmatpush2.msra.mxu0 0.0
        %4397 = vmatprep.subr.mxu0 0.0
        %4398 = vmatpush2.msra.mxu0 0.0
        %4399 = vmatprep.subr.mxu0 0.0
        %4400 = vmatpush2.msra.mxu0 0.0
        %4401 = vmatprep.subr.mxu0 0.0
        %4402 = vmatpush2.msra.mxu0 0.0
        %4403 = vmatprep.subr.mxu0 0.0
        %4404 = vmatpush2.msra.mxu0 0.0
        %4405 = vmatprep.subr.mxu0 0.0
        %4406 = vmatpush2.msra.mxu0 0.0
        %4407 = vmatprep.subr.mxu0 0.0
        %4408 = vmatpush2.msra.mxu0 0.0
        %4409 = vmatprep.subr.mxu0 0.0
        %4410 = vmatpush2.msra.mxu0 0.0
        %4411 = vmatprep.subr.mxu0 0.0
        %4412 = vmatpush2.msra.mxu0 0.0
        %4413 = vmatprep.subr.mxu0 0.0
        %4414 = vmatpush2.msra.mxu0 0.0
        %4415 = vmatprep.subr.mxu0 0.0
        %4416 = vmatpush2.msra.mxu0 0.0
        %4417 = vmatprep.subr.mxu0 0.0
        %4418 = vmatpush2.msra.mxu0 0.0
        %4419 = vmatprep.subr.mxu0 0.0
        %4420 = vmatpush2.msra.mxu0 0.0
        %4421 = vmatprep.subr.mxu0 0.0
        %4422 = vmatpush2.msra.mxu0 0.0
        %4423 = vmatprep.subr.mxu0 0.0
        %4424 = vmatpush2.msra.mxu0 0.0
        %4425 = vmatprep.mubr.f32.mxu0 0.0
        %v4426 = vand.u32 %v4189, 4294901760
        %v4427 = vsub.f32 %v4189, %v4426
        %4428 = vmatmul.mubr.f32.gmra.mxu0 %v4427
        %v4429 = vpop.f32.mrf.mxu0
        %v4430 = vadd.f32 %v4353, %v4429
        %v4431 = vpop.f32.mrf.mxu0
        %v4432 = vadd.f32 %v4355, %v4431
        %4433 = vdwg.mxu0
        %4434 = vmatprep.subr.mxu0 0.0
        %4435 = vmatpush1.msra.mxu0 0.0
        %4436 = vmatprep.subr.mxu0 0.0
        %4437 = vmatpush1.msra.mxu0 0.0
        %4438 = vmatprep.subr.mxu0 0.0
        %4439 = vmatpush1.msra.mxu0 0.0
        %4440 = vmatprep.subr.mxu0 0.0
        %4441 = vmatpush1.msra.mxu0 0.0
        %4442 = vmatprep.subr.mxu0 0.0
        %4443 = vmatpush1.msra.mxu0 0.0
        %4444 = vmatprep.subr.mxu0 0.0
        %4445 = vmatpush1.msra.mxu0 0.0
        %4446 = vmatprep.subr.mxu0 0.0
        %4447 = vmatpush1.msra.mxu0 0.0
        %4448 = vmatprep.subr.mxu0 0.0
        %4449 = vmatpush1.msra.mxu0 0.0
        %4450 = vmatprep.subr.mxu0 0.0
        %4451 = vmatpush1.msra.mxu0 0.0
        %4452 = vmatprep.subr.mxu0 0.0
        %4453 = vmatpush1.msra.mxu0 0.0
        %4454 = vmatprep.subr.mxu0 0.0
        %4455 = vmatpush1.msra.mxu0 0.0
        %4456 = vmatprep.subr.mxu0 0.0
        %4457 = vmatpush1.msra.mxu0 0.0
        %4458 = vmatprep.subr.mxu0 0.0
        %4459 = vmatpush1.msra.mxu0 0.0
        %4460 = vmatprep.subr.mxu0 0.0
        %4461 = vmatpush1.msra.mxu0 0.0
        %4462 = vmatprep.subr.mxu0 0.0
        %4463 = vmatpush1.msra.mxu0 0.0
        %v4464 = vand.u32 %v4195, 4294901760
        %4465 = vmatprep.subr.mxu0 %v4464
        %v4466 = vand.u32 %v4192, 4294901760
        %4467 = vmatpush1.msra.mxu0 %v4466
        %4468 = vmatprep.subr.mxu0 0.0
        %4469 = vmatpush2.msra.mxu0 0.0
        %4470 = vmatprep.subr.mxu0 0.0
        %4471 = vmatpush2.msra.mxu0 0.0
        %4472 = vmatprep.subr.mxu0 0.0
        %4473 = vmatpush2.msra.mxu0 0.0
        %4474 = vmatprep.subr.mxu0 0.0
        %4475 = vmatpush2.msra.mxu0 0.0
        %4476 = vmatprep.subr.mxu0 0.0
        %4477 = vmatpush2.msra.mxu0 0.0
        %4478 = vmatprep.subr.mxu0 0.0
        %4479 = vmatpush2.msra.mxu0 0.0
        %4480 = vmatprep.subr.mxu0 0.0
        %4481 = vmatpush2.msra.mxu0 0.0
        %4482 = vmatprep.subr.mxu0 0.0
        %4483 = vmatpush2.msra.mxu0 0.0
        %4484 = vmatprep.subr.mxu0 0.0
        %4485 = vmatpush2.msra.mxu0 0.0
        %4486 = vmatprep.subr.mxu0 0.0
        %4487 = vmatpush2.msra.mxu0 0.0
        %4488 = vmatprep.subr.mxu0 0.0
        %4489 = vmatpush2.msra.mxu0 0.0
        %4490 = vmatprep.subr.mxu0 0.0
        %4491 = vmatpush2.msra.mxu0 0.0
        %4492 = vmatprep.subr.mxu0 0.0
        %4493 = vmatpush2.msra.mxu0 0.0
        %4494 = vmatprep.subr.mxu0 0.0
        %4495 = vmatpush2.msra.mxu0 0.0
        %4496 = vmatprep.subr.mxu0 0.0
        %4497 = vmatpush2.msra.mxu0 0.0
        %4498 = vmatprep.subr.mxu0 0.0
        %4499 = vmatpush2.msra.mxu0 0.0
        %4500 = vmatprep.mubr.f32.mxu0 0.0
        %v4501 = vand.u32 %v4189, 4294901760
        %v4502 = vsub.f32 %v4189, %v4501
        %v4503 = vand.u32 %v4502, 4294901760
        %4504 = vmatmul.mubr.f32.gmra.mxu0 %v4503
        %v4505 = vpop.f32.mrf.mxu0
        %v4506 = vadd.f32 %v4430, %v4505
        %v4507 = vpop.f32.mrf.mxu0
        %v4508 = vadd.f32 %v4432, %v4507
        %4509 = vdwg.mxu0
        %4510 = vmatprep.subr.mxu0 0.0
        %4511 = vmatpush1.msra.mxu0 0.0
        %4512 = vmatprep.subr.mxu0 0.0
        %4513 = vmatpush1.msra.mxu0 0.0
        %4514 = vmatprep.subr.mxu0 0.0
        %4515 = vmatpush1.msra.mxu0 0.0
        %4516 = vmatprep.subr.mxu0 0.0
        %4517 = vmatpush1.msra.mxu0 0.0
        %4518 = vmatprep.subr.mxu0 0.0
        %4519 = vmatpush1.msra.mxu0 0.0
        %4520 = vmatprep.subr.mxu0 0.0
        %4521 = vmatpush1.msra.mxu0 0.0
        %4522 = vmatprep.subr.mxu0 0.0
        %4523 = vmatpush1.msra.mxu0 0.0
        %4524 = vmatprep.subr.mxu0 0.0
        %4525 = vmatpush1.msra.mxu0 0.0
        %4526 = vmatprep.subr.mxu0 0.0
        %4527 = vmatpush1.msra.mxu0 0.0
        %4528 = vmatprep.subr.mxu0 0.0
        %4529 = vmatpush1.msra.mxu0 0.0
        %4530 = vmatprep.subr.mxu0 0.0
        %4531 = vmatpush1.msra.mxu0 0.0
        %4532 = vmatprep.subr.mxu0 0.0
        %4533 = vmatpush1.msra.mxu0 0.0
        %4534 = vmatprep.subr.mxu0 0.0
        %4535 = vmatpush1.msra.mxu0 0.0
        %4536 = vmatprep.subr.mxu0 0.0
        %4537 = vmatpush1.msra.mxu0 0.0
        %4538 = vmatprep.subr.mxu0 0.0
        %4539 = vmatpush1.msra.mxu0 0.0
        %v4540 = vand.u32 %v4195, 4294901760
        %v4541 = vsub.f32 %v4195, %v4540
        %v4542 = vand.u32 %v4541, 4294901760
        %4543 = vmatprep.subr.mxu0 %v4542
        %v4544 = vand.u32 %v4192, 4294901760
        %v4545 = vsub.f32 %v4192, %v4544
        %v4546 = vand.u32 %v4545, 4294901760
        %4547 = vmatpush1.msra.mxu0 %v4546
        %4548 = vmatprep.subr.mxu0 0.0
        %4549 = vmatpush2.msra.mxu0 0.0
        %4550 = vmatprep.subr.mxu0 0.0
        %4551 = vmatpush2.msra.mxu0 0.0
        %4552 = vmatprep.subr.mxu0 0.0
        %4553 = vmatpush2.msra.mxu0 0.0
        %4554 = vmatprep.subr.mxu0 0.0
        %4555 = vmatpush2.msra.mxu0 0.0
        %4556 = vmatprep.subr.mxu0 0.0
        %4557 = vmatpush2.msra.mxu0 0.0
        %4558 = vmatprep.subr.mxu0 0.0
        %4559 = vmatpush2.msra.mxu0 0.0
        %4560 = vmatprep.subr.mxu0 0.0
        %4561 = vmatpush2.msra.mxu0 0.0
        %4562 = vmatprep.subr.mxu0 0.0
        %4563 = vmatpush2.msra.mxu0 0.0
        %4564 = vmatprep.subr.mxu0 0.0
        %4565 = vmatpush2.msra.mxu0 0.0
        %4566 = vmatprep.subr.mxu0 0.0
        %4567 = vmatpush2.msra.mxu0 0.0
        %4568 = vmatprep.subr.mxu0 0.0
        %4569 = vmatpush2.msra.mxu0 0.0
        %4570 = vmatprep.subr.mxu0 0.0
        %4571 = vmatpush2.msra.mxu0 0.0
        %4572 = vmatprep.subr.mxu0 0.0
        %4573 = vmatpush2.msra.mxu0 0.0
        %4574 = vmatprep.subr.mxu0 0.0
        %4575 = vmatpush2.msra.mxu0 0.0
        %4576 = vmatprep.subr.mxu0 0.0
        %4577 = vmatpush2.msra.mxu0 0.0
        %4578 = vmatprep.subr.mxu0 0.0
        %4579 = vmatpush2.msra.mxu0 0.0
        %4580 = vmatprep.mubr.f32.mxu0 0.0
        %v4581 = vand.u32 %v4189, 4294901760
        %4582 = vmatmul.mubr.f32.gmra.mxu0 %v4581
        %v4583 = vpop.f32.mrf.mxu0
        %v4584 = vadd.f32 %v4506, %v4583
        %v4585 = vpop.f32.mrf.mxu0
        %v4586 = vadd.f32 %v4508, %v4585
        %4587 = vdwg.mxu0
        %4588 = vmatprep.subr.mxu0 0.0
        %4589 = vmatpush1.msra.mxu0 0.0
        %4590 = vmatprep.subr.mxu0 0.0
        %4591 = vmatpush1.msra.mxu0 0.0
        %4592 = vmatprep.subr.mxu0 0.0
        %4593 = vmatpush1.msra.mxu0 0.0
        %4594 = vmatprep.subr.mxu0 0.0
        %4595 = vmatpush1.msra.mxu0 0.0
        %4596 = vmatprep.subr.mxu0 0.0
        %4597 = vmatpush1.msra.mxu0 0.0
        %4598 = vmatprep.subr.mxu0 0.0
        %4599 = vmatpush1.msra.mxu0 0.0
        %4600 = vmatprep.subr.mxu0 0.0
        %4601 = vmatpush1.msra.mxu0 0.0
        %4602 = vmatprep.subr.mxu0 0.0
        %4603 = vmatpush1.msra.mxu0 0.0
        %4604 = vmatprep.subr.mxu0 0.0
        %4605 = vmatpush1.msra.mxu0 0.0
        %4606 = vmatprep.subr.mxu0 0.0
        %4607 = vmatpush1.msra.mxu0 0.0
        %4608 = vmatprep.subr.mxu0 0.0
        %4609 = vmatpush1.msra.mxu0 0.0
        %4610 = vmatprep.subr.mxu0 0.0
        %4611 = vmatpush1.msra.mxu0 0.0
        %4612 = vmatprep.subr.mxu0 0.0
        %4613 = vmatpush1.msra.mxu0 0.0
        %4614 = vmatprep.subr.mxu0 0.0
        %4615 = vmatpush1.msra.mxu0 0.0
        %4616 = vmatprep.subr.mxu0 0.0
        %4617 = vmatpush1.msra.mxu0 0.0
        %v4618 = vand.u32 %v4195, 4294901760
        %4619 = vmatprep.subr.mxu0 %v4618
        %v4620 = vand.u32 %v4192, 4294901760
        %4621 = vmatpush1.msra.mxu0 %v4620
        %4622 = vmatprep.subr.mxu0 0.0
        %4623 = vmatpush2.msra.mxu0 0.0
        %4624 = vmatprep.subr.mxu0 0.0
        %4625 = vmatpush2.msra.mxu0 0.0
        %4626 = vmatprep.subr.mxu0 0.0
        %4627 = vmatpush2.msra.mxu0 0.0
        %4628 = vmatprep.subr.mxu0 0.0
        %4629 = vmatpush2.msra.mxu0 0.0
        %4630 = vmatprep.subr.mxu0 0.0
        %4631 = vmatpush2.msra.mxu0 0.0
        %4632 = vmatprep.subr.mxu0 0.0
        %4633 = vmatpush2.msra.mxu0 0.0
        %4634 = vmatprep.subr.mxu0 0.0
        %4635 = vmatpush2.msra.mxu0 0.0
        %4636 = vmatprep.subr.mxu0 0.0
        %4637 = vmatpush2.msra.mxu0 0.0
        %4638 = vmatprep.subr.mxu0 0.0
        %4639 = vmatpush2.msra.mxu0 0.0
        %4640 = vmatprep.subr.mxu0 0.0
        %4641 = vmatpush2.msra.mxu0 0.0
        %4642 = vmatprep.subr.mxu0 0.0
        %4643 = vmatpush2.msra.mxu0 0.0
        %4644 = vmatprep.subr.mxu0 0.0
        %4645 = vmatpush2.msra.mxu0 0.0
        %4646 = vmatprep.subr.mxu0 0.0
        %4647 = vmatpush2.msra.mxu0 0.0
        %4648 = vmatprep.subr.mxu0 0.0
        %4649 = vmatpush2.msra.mxu0 0.0
        %4650 = vmatprep.subr.mxu0 0.0
        %4651 = vmatpush2.msra.mxu0 0.0
        %4652 = vmatprep.subr.mxu0 0.0
        %4653 = vmatpush2.msra.mxu0 0.0
        %4654 = vmatprep.mubr.f32.mxu0 0.0
        %v4655 = vand.u32 %v4189, 4294901760
        %4656 = vmatmul.mubr.f32.gmra.mxu0 %v4655
        %v4657 = vpop.f32.mrf.mxu0
        %v4658 = vadd.f32 %v4584, %v4657
        %v4659 = vpop.f32.mrf.mxu0
        %v4660 = vadd.f32 %v4586, %v4659
        %4661 = vdwg.mxu0
        %v4662 = vadd.f32 %v4166, %v4658
        %v4663 = vadd.f32 %v4167, %v4660
        %v4664 = vld [vmem:[%s2] sm:$0xff]
        %4666 = vset.pattern.permute.xlu0 0
        %4667 = vperm.xlu0 %4666, %v4664
        %v4668 = vpop.permute.xlu0 %4667
        %v4670 = vadd.f32 %v4662, %v4668
        %v4671 = vadd.f32 %v4663, %v4668
        %v4672 = vrot.slane %v4670, 4
        %v4673 = vmax.f32 %v4670, %v4672
        %v4674 = vrot.slane %v4673, 2
        %v4675 = vmax.f32 %v4673, %v4674
        %v4676 = vrot.slane %v4675, 1
        %v4677 = vmax.f32 %v4675, %v4676
        %v4678 = vrot.slane %v4671, 4
        %v4679 = vmax.f32 %v4671, %v4678
        %v4680 = vrot.slane %v4679, 2
        %v4681 = vmax.f32 %v4679, %v4680
        %v4682 = vrot.slane %v4681, 1
        %v4683 = vmax.f32 %v4681, %v4682
        %v4684 = vsub.f32 %v4670, %v4677
        %v4685 = vsub.f32 %v4671, %v4683
        %v4686 = vmul.f32 %v4684, 1.442695
        %v4687 = vpow.pop %v4686
        %v4688 = vmul.f32 %v4685, 1.442695
        %v4689 = vpow.pop %v4688
        %v4690 = vrot.slane %v4687, 4
        %v4691 = vadd.f32 %v4687, %v4690
        %v4692 = vrot.slane %v4691, 2
        %v4693 = vadd.f32 %v4691, %v4692
        %v4694 = vrot.slane %v4693, 1
        %v4695 = vadd.f32 %v4693, %v4694
        %v4696 = vrot.slane %v4689, 4
        %v4697 = vadd.f32 %v4689, %v4696
        %v4698 = vrot.slane %v4697, 2
        %v4699 = vadd.f32 %v4697, %v4698
        %v4700 = vrot.slane %v4699, 1
        %v4701 = vadd.f32 %v4699, %v4700
        %v4702 = vld [vmem:[%s212] sm:$0xff]
        %4704 = vset.pattern.permute.xlu0 0
        %4705 = vperm.xlu0 %4704, %v4702
        %v4706 = vpop.permute.xlu0 %4705
        %v4708 = vmul.f32 %v4687, %v4706
        %v4709 = vmul.f32 %v4689, %v4706
        %v4710 = vrot.slane %v4708, 4
        %v4711 = vadd.f32 %v4708, %v4710
        %v4712 = vrot.slane %v4711, 2
        %v4713 = vadd.f32 %v4711, %v4712
        %v4714 = vrot.slane %v4713, 1
        %v4715 = vadd.f32 %v4713, %v4714
        %v4716 = vrot.slane %v4709, 4
        %v4717 = vadd.f32 %v4709, %v4716
        %v4718 = vrot.slane %v4717, 2
        %v4719 = vadd.f32 %v4717, %v4718
        %v4720 = vrot.slane %v4719, 1
        %v4721 = vadd.f32 %v4719, %v4720
        %v4722 = vrcp.pop %v4695
        %v4723 = vmul.f32 %v4715, %v4722
        %v4724 = vrcp.pop %v4701
        %v4725 = vmul.f32 %v4721, %v4724
        %vm4726 = vcmp.eq.s32.totalorder %v217, 0
        %vm4727 = vcmp.eq.s32.totalorder %v218, 0
        %4729 = vrot.lane.b32.xlu0 %v4725, 16
        %v4730 = vpop.permute.xlu0 %4729
        %4733 = vrot.lane.b32.xlu0 %v4723, 16
        %v4734 = vpop.permute.xlu0 %4733
        %v4735 = vsel %vm255, %v4734, %v4730
        %v4738 = vsel %vm255, %v4730, %v4734
        %v4739 = vsel %vm4726, %v4723, %v4738
        %v4740 = vsel %vm4727, %v4725, %v4735
        %vm4741 = vcmp.eq.s32.totalorder %v217, 15
        %vm4742 = vcmp.eq.s32.totalorder %v218, 15
        %4743 = vrot.lane.b32.xlu0 %v4723, 112
        %v4744 = vpop.permute.xlu0 %4743
        %4745 = vrot.lane.b32.xlu0 %v4725, 112
        %v4746 = vpop.permute.xlu0 %4745
        %v4747 = vsel %vm3678, %v4744, %v4746
        %v4751 = vsel %vm3678, %v4746, %v4744
        %v4752 = vsel %vm4741, %v4723, %v4747
        %v4753 = vsel %vm4742, %v4725, %v4751
        %v4754 = vmul.f32 %v4723, 0.75
        %v4755 = vmul.f32 %v4725, 0.75
        %v4756 = vmul.f32 %v4739, 0.25
        %v4757 = vmul.f32 %v4740, 0.25
        %v4758 = vadd.f32 %v4754, %v4756
        %v4759 = vadd.f32 %v4755, %v4757
        %v4760 = vmul.f32 %v4752, 0.25
        %v4761 = vmul.f32 %v4753, 0.25
        %v4762 = vadd.f32 %v4754, %v4760
        %v4763 = vadd.f32 %v4755, %v4761
        %v4764 = vlaneseq
        %v4765 = vshrl.u32 %v4764, 7
        %vm4766 = vcmp.lt.s32.totalorder %v4765, 2
        %v4767 = vlaneseq
        %v4768 = vshrl.u32 %v4767, 7
        %v4769 = vsub.s32 0, %v4768
        %v4770 = vrot.slane %v4758, %v4769
        %v4771 = vlaneseq
        %v4772 = vshrl.u32 %v4771, 7
        %v4773 = vsub.s32 0, %v4772
        %v4774 = vrot.slane %v4759, %v4773
        %v4775 = vlaneseq
        %v4776 = vshrl.u32 %v4775, 7
        %v4777 = vsub.s32 0, %v4776
        %v4778 = vrot.slane %v4762, %v4777
        %v4779 = vlaneseq
        %v4780 = vshrl.u32 %v4779, 7
        %v4781 = vsub.s32 0, %v4780
        %v4782 = vrot.slane %v4763, %v4781
        %v4783 = vsel %vm4766, %v4770, %v4778
        %v4784 = vsel %vm4766, %v4774, %v4782
        %vm4785 = vcmp.eq.s32.totalorder %v219, 0
        %vm4786 = vcmp.eq.s32.totalorder %v220, 0
        %4788 = vrot.lane.b32.xlu0 %v4784, 1
        %v4789 = vpop.permute.xlu0 %4788
        %4792 = vrot.lane.b32.xlu0 %v4783, 1
        %v4793 = vpop.permute.xlu0 %4792
        %v4794 = vsel %vm1719, %v4793, %v4789
        %v4797 = vsel %vm1719, %v4789, %v4793
        %v4798 = vsel %vm4785, 1, 0
        %v4799 = vsel %vm4786, 1, 0
        %vm4800 = vcmp.eq.s32.totalorder %v4798, 1
        %vm4801 = vcmp.eq.s32.totalorder %v4799, 1
        %v4802 = vsel %vm4800, %v4783, %v4797
        %v4803 = vsel %vm4801, %v4784, %v4794
        %vm4804 = vcmp.eq.s32.totalorder %v219, 15
        %vm4805 = vcmp.eq.s32.totalorder %v220, 15
        %4806 = vrot.lane.b32.xlu0 %v4783, 127
        %v4807 = vpop.permute.xlu0 %4806
        %4808 = vrot.lane.b32.xlu0 %v4784, 127
        %v4809 = vpop.permute.xlu0 %4808
        %v4810 = vsel %vm2688, %v4807, %v4809
        %v4814 = vsel %vm2688, %v4809, %v4807
        %v4815 = vsel %vm4804, 1, 0
        %v4816 = vsel %vm4805, 1, 0
        %vm4817 = vcmp.eq.s32.totalorder %v4815, 1
        %vm4818 = vcmp.eq.s32.totalorder %v4816, 1
        %v4819 = vsel %vm4817, %v4783, %v4810
        %v4820 = vsel %vm4818, %v4784, %v4814
        %v4821 = vand.u32 %v4765, 1
        %vm4822 = vcmp.eq.s32.totalorder %v4821, 0
        %v4823 = vsel %vm4822, %v4802, %v4819
        %v4824 = vsel %vm4822, %v4803, %v4820
        %v4825 = vmul.f32 %v4783, 0.75
        %v4826 = vmul.f32 %v4784, 0.75
        %v4827 = vmul.f32 %v4823, 0.25
        %v4828 = vmul.f32 %v4824, 0.25
        %v4829 = vadd.f32 %v4825, %v4827
        %v4830 = vadd.f32 %v4826, %v4828
        %v4833 = vcombine.low %v4829, %v4830
        %4835 = vst [vmem:[%s203] sm:$0xff] %v4833
        %s4836 = sand.u32 %s120, 1
        %s4837 = scalar_lea.sflag [#allocation3], %s4836
        %s4838 = sand.u32 %s120, 1
        %s4839 = smul.addr %s4838, 8
        %s4840 = scalar_lea.vmem [#allocation2], %s4839
        // Predicated region
        $region37: #{tpu_custom_call.1} parent=35 // pred_check
          %p4841 = pneg %p130
        $region38: #{tpu_custom_call.1} parent=35 // pred_check_branch
          %4843 = sbr.rel (%p4841) target = $region40
        $region39: #{tpu_custom_call.1} parent=35 // pred_region
          %s4845 = ssub.s32 128, 128
          %4846 = vsyncadd %s4837, %s4845
          %s4847 = smul.addr %s18, 2
          %s4848 = smul.addr %s4847, 64
          %s4849 = scalar_lea.hbm %s4, %s4848
          %s4851 = sshll.u32 %s4840, 4
          %s4852 = int_to_ptr.vmem [resolvable:$true] %s4851
          %4854 = dma.vmem_to_hbm [thread:$0]  %s4852, 128, %s4849, %s4837
        $region40: #{tpu_custom_call.1} parent=35 // pred_fallthru
          _
      $region36: #{tpu_custom_call.1} parent=5 // pred_fallthru
        _
      %p4855 = scmp.le.s32.totalorder 2, %s13
      // Predicated region
      $region41: #{tpu_custom_call.1} parent=5 // pred_check
        %p4856 = pneg %p4855
      $region42: #{tpu_custom_call.1} parent=5 // pred_check_branch
        %4858 = sbr.rel (%p4856) target = $region44
      $region43: #{tpu_custom_call.1} parent=5 // pred_region
        %s4859 = ssub.s32 %s13, 2
        // Predicated region
        $region45: #{tpu_custom_call.1} parent=43 // pred_check
          %p4860 = pneg %p136
        $region46: #{tpu_custom_call.1} parent=43 // pred_check_branch
          %4862 = sbr.rel (%p4860) target = $region48
        $region47: #{tpu_custom_call.1} parent=43 // pred_region
          %s4863 = sand.u32 %s121, 1
          %s4864 = scalar_lea.sflag [#allocation3], %s4863
          %s4865 = sand.u32 %s121, 1
          %s4866 = smul.addr %s4865, 8
          %s4867 = scalar_lea.vmem [#allocation2], %s4866
          %4868 = dma.done %s4864, 128
        $region48: #{tpu_custom_call.1} parent=43 // pred_fallthru
          _
      $region44: #{tpu_custom_call.1} parent=5 // pred_fallthru
        _
    $region6: #{tpu_custom_call.1} parent=1 // loop_footer
      %s17 = sadd.s32 1, %s13
    $region7: #{tpu_custom_call.1} parent=1 // loop_footer_branch
      %12 = sbr.rel target = $region3
    $region8: #{tpu_custom_call.1} parent=1 // loop_exit
      _
    %4869 = vsyncpa [#allocation3], 1
    %s4870 = scalar_lea.sflag [#allocation3], 1
    %4871 = vsyncpa %s4870, 1

</llo_original>
